<compile_context>
chip_gen: v5e
topology: v5e:2x2
jax: 0.10.0
libtpu: 0.0.40
codegen_flags: <defaults>
</compile_context>

<pallas_src>
import jax
import jax.numpy as jnp
from jax.experimental import pallas as pl
from jax.experimental.pallas import tpu as pltpu


def _round_up(v, m):
    return ((v + m - 1) // m) * m


def _pick_band_rows(H, target):
    th = max(1, min(target, H))
    while H % th != 0:
        th -= 1
    return th


def _make_kernel(TH, W, C, C2p):
    R1 = TH + 2  # conv1 output rows per band (1-row halo on each side)

    def kernel(xb_ref, w1_ref, shift_ref, w2_ref, xres_ref, o_ref, mid_ref):
        # xb_ref   : (TH+4, W+2, C)   bf16  pre-haloed, zero-padded input band
        # w1_ref   : (9, C, C2p)      bf16  conv1 weights (BN scale folded), tap-major
        # shift_ref: (1, C2p)         f32   folded BN shift
        # w2_ref   : (9, C2p, C)      bf16  conv2 weights, tap-major
        # xres_ref : (TH, W, C)       f32   original x band (residual)
        # o_ref    : (TH, W, C)       f32   output band
        # mid_ref  : (R1, W+2, C2p)   bf16  conv1 output + 1-column zero pad
        b = pl.program_id(1)
        nb = pl.num_programs(1)

        # ---- Conv1 with fused input ReLU, computed on R1 = TH+2 rows -------
        # (f32 accumulator stays in vregs/VMEM; bands are sized to keep it small)
        acc1 = jnp.zeros((R1 * W, C2p), jnp.float32)
        for ky in range(3):
            for kx in range(3):
                patch = jnp.maximum(xb_ref[ky:ky + R1, kx:kx + W, :], 0)
                acc1 = acc1 + jnp.dot(
                    patch.reshape(R1 * W, C), w1_ref[ky * 3 + kx],
                    preferred_element_type=jnp.float32)

        # ---- BatchNorm shift (scale pre-folded into w1) + ReLU --------------
        y = jnp.maximum(acc1 + shift_ref[...], 0.0)
        y3 = y.reshape(R1, W, C2p).astype(mid_ref.dtype)

        # ---- Stage intermediate into the W-padded scratch -------------------
        # Border columns are conv2's zero padding; re-zeroed every step (2 tiny
        # stores) so the kernel has no cross-grid-step scratch dependence.
        mid_ref[:, 0:1, :] = jnp.zeros((R1, 1, C2p), mid_ref.dtype)
        mid_ref[:, W + 1:W + 2, :] = jnp.zeros((R1, 1, C2p), mid_ref.dtype)
        mid_ref[:, 1:1 + W, :] = y3

        # Halo rows falling outside the image are conv2's zero padding, not
        # real conv1 outputs -> zero them on the boundary bands only.
        @pl.when(b == 0)
        def _():
            mid_ref[0:1, 1:1 + W, :] = jnp.zeros((1, W, C2p), mid_ref.dtype)

        @pl.when(b == nb - 1)
        def _():
            mid_ref[R1 - 1:R1, 1:1 + W, :] = jnp.zeros((1, W, C2p), mid_ref.dtype)

        # ---- Conv2: 9 tap-sized loads from the scratch ref ------------------
        acc2 = jnp.zeros((TH * W, C), jnp.float32)
        for ky in range(3):
            for kx in range(3):
                patch = mid_ref[ky:ky + TH, kx:kx + W, :]
                acc2 = acc2 + jnp.dot(
                    patch.reshape(TH * W, C2p), w2_ref[ky * 3 + kx],
                    preferred_element_type=jnp.float32)

        # ---- Residual add in f32 --------------------------------------------
        o_ref[...] = (acc2.reshape(TH, W, C) + xres_ref[...]).astype(o_ref.dtype)

    return kernel


def residual_conv_forward(x_nchw, w1, w2, bn_scale, bn_shift, band_rows=64):
    """ResidualConv forward.

    x_nchw: (N, C, H, W) f32; w1: (C/2, C, 3, 3); w2: (C, C/2, 3, 3) (OIHW).
    bn_scale/bn_shift: eval-mode BatchNorm folded to per-channel scale/shift.
    """
    N, C, H, W = x_nchw.shape
    C2 = w1.shape[0]
    assert C2 * 2 == C and w2.shape[0] == C and w2.shape[1] == C2

    TH = _pick_band_rows(H, band_rows)   # output rows per grid step
    nb = H // TH
    C2p = _round_up(C2, 128)             # lane-dense intermediate channels

    # NCHW -> NHWC. Residual path stays f32 (clean aligned in-kernel read);
    # the conv path is cast to bf16 (MXU-native, halves DMA bytes).
    x_nhwc = jnp.transpose(x_nchw, (0, 2, 3, 1)).astype(jnp.float32)
    x_bf = x_nhwc.astype(jnp.bfloat16)

    # Pad H by 2 / W by 1, then pre-gather overlapping row-bands (with their
    # 2-row halo) so every grid step is a plain non-overlapping BlockSpec DMA.
    # The duplicated halo rows cost only ~4/TH extra bf16 HBM bytes.
    xp = jnp.pad(x_bf, ((0, 0), (2, 2), (1, 1), (0, 0)))        # (N, H+4, W+2, C)
    row_idx = jnp.arange(nb)[:, None] * TH + jnp.arange(TH + 4)[None, :]
    x_bands = xp[:, row_idx]                                    # (N, nb, TH+4, W+2, C)

    # Fold BN scale into conv1 weights; OIHW -> (9, Cin, Cout) tap-major;
    # pad intermediate channels to C2p; cast to bf16 for the MXU.
    bn_scale = bn_scale.astype(jnp.float32).reshape(C2)
    bn_shift = bn_shift.astype(jnp.float32).reshape(C2)
    w1_f = w1.astype(jnp.float32) * bn_scale[:, None, None, None]
    w1_k = jnp.transpose(w1_f, (2, 3, 1, 0)).reshape(9, C, C2)
    w1_k = jnp.pad(w1_k, ((0, 0), (0, 0), (0, C2p - C2))).astype(jnp.bfloat16)
    w2_k = jnp.transpose(w2.astype(jnp.float32), (2, 3, 1, 0)).reshape(9, C2, C)
    w2_k = jnp.pad(w2_k, ((0, 0), (0, C2p - C2), (0, 0))).astype(jnp.bfloat16)
    shift = jnp.pad(bn_shift, (0, C2p - C2)).reshape(1, C2p)

    kernel = _make_kernel(TH, W, C, C2p)

    out_nhwc = pl.pallas_call(
        kernel,
        out_shape=jax.ShapeDtypeStruct((N, H, W, C), jnp.float32),
        grid_spec=pltpu.PrefetchScalarGridSpec(
            num_scalar_prefetch=0,
            grid=(N, nb),
            in_specs=[
                pl.BlockSpec((None, None, TH + 4, W + 2, C),
                             lambda n, b: (n, b, 0, 0, 0)),
                pl.BlockSpec((9, C, C2p), lambda n, b: (0, 0, 0)),
                pl.BlockSpec((1, C2p), lambda n, b: (0, 0)),
                pl.BlockSpec((9, C2p, C), lambda n, b: (0, 0, 0)),
                pl.BlockSpec((None, TH, W, C), lambda n, b: (n, b, 0, 0)),
            ],
            out_specs=pl.BlockSpec((None, TH, W, C), lambda n, b: (n, b, 0, 0)),
            scratch_shapes=[pltpu.VMEM((TH + 2, W + 2, C2p), jnp.bfloat16)],
        ),
        compiler_params=pltpu.CompilerParams(
            dimension_semantics=("parallel", "parallel"),
            vmem_limit_bytes=48 * 1024 * 1024),
    )(x_bands, w1_k, shift, w2_k, x_nhwc)

    # NHWC -> NCHW to match the PyTorch convention.
    return jnp.transpose(out_nhwc, (0, 3, 1, 2))


if __name__ == "__main__":
    # Small deterministic example consistent with the module (inchannels even).
    N, C, H, W = 2, 8, 16, 16
    C2 = C // 2

    key = jax.random.PRNGKey(0)
    kx_, kw1, kw2 = jax.random.split(key, 3)

    x = jax.random.normal(kx_, (N, C, H, W), dtype=jnp.float32)

    # Conv weights: init.normal_(std=0.01), no bias (PyTorch OIHW layout).
    w1 = 0.01 * jax.random.normal(kw1, (C2, C, 3, 3), dtype=jnp.float32)
    w2 = 0.01 * jax.random.normal(kw2, (C, C2, 3, 3), dtype=jnp.float32)

    # BatchNorm2d (eval): gamma=1, beta=0, running_mean=0, running_var=1.
    eps = 1e-5
    gamma = jnp.ones((C2,), jnp.float32)
    beta = jnp.zeros((C2,), jnp.float32)
    mean = jnp.zeros((C2,), jnp.float32)
    var = jnp.ones((C2,), jnp.float32)
    bn_scale = gamma / jnp.sqrt(var + eps)
    bn_shift = beta - mean * bn_scale

    # band_rows=8 -> 2 row-bands, exercising the banded grid path.
    out = residual_conv_forward(x, w1, w2, bn_scale, bn_shift, band_rows=8)
    jax.block_until_ready(out)

    # Pure-JAX f32 reference (module semantics).
    def ref(x):
        h = jax.nn.relu(x)
        h = jax.lax.conv_general_dilated(
            h, w1, (1, 1), ((1, 1), (1, 1)),
            dimension_numbers=("NCHW", "OIHW", "NCHW"),
            precision=jax.lax.Precision.HIGHEST)
        h = h * bn_scale[None, :, None, None] + bn_shift[None, :, None, None]
        h = jax.nn.relu(h)
        h = jax.lax.conv_general_dilated(
            h, w2, (1, 1), ((1, 1), (1, 1)),
            dimension_numbers=("NCHW", "OIHW", "NCHW"),
            precision=jax.lax.Precision.HIGHEST)
        return h + x

    expected = ref(x)
    assert out.shape == (N, C, H, W)
    # The kernel uses bf16 matmul inputs (f32 accumulation), so compare at a
    # bf16-level tolerance against the f32 reference.
    assert jnp.allclose(out, expected, atol=2e-3, rtol=2e-3)

    print("KERNEL_OK")
</pallas_src>

<mosaic_0001>
module attributes {stable_mosaic.version = 11 : i64} {
  func.func @kernel(%arg0: i32, %arg1: i32, %arg2: memref<1x1x12x18x8xbf16, #tpu.memory_space<vmem>>, %arg3: memref<9x8x128xbf16, #tpu.memory_space<vmem>>, %arg4: memref<1x128xf32, #tpu.memory_space<vmem>>, %arg5: memref<9x128x8xbf16, #tpu.memory_space<vmem>>, %arg6: memref<1x8x16x8xf32, #tpu.memory_space<vmem>>, %arg7: memref<1x8x16x8xf32, #tpu.memory_space<vmem>>, %arg8: memref<10x18x128xbf16, #tpu.memory_space<vmem>>) attributes {dimension_semantics = [#tpu.dimension_semantics<parallel>, #tpu.dimension_semantics<parallel>], iteration_bounds = array<i64: 2, 2>, scalar_prefetch = 0 : i64, scratch_operands = 1 : i64, tpu.core_type = #tpu.core_type<tc>, window_params = [{transform_indices = @transform_0, window_bounds = array<i64: 1, 1, 12, 18, 8>}, {pipeline_mode = #tpu.pipeline_mode<synchronous>, transform_indices = @transform_1, window_bounds = array<i64: 9, 8, 128>}, {pipeline_mode = #tpu.pipeline_mode<synchronous>, transform_indices = @transform_2, window_bounds = array<i64: 1, 128>}, {pipeline_mode = #tpu.pipeline_mode<synchronous>, transform_indices = @transform_3, window_bounds = array<i64: 9, 128, 8>}, {transform_indices = @transform_4, window_bounds = array<i64: 1, 8, 16, 8>}, {transform_indices = @transform_5, window_bounds = array<i64: 1, 8, 16, 8>}]} {
    %cst = arith.constant 0.000000e+00 : f32
    %0 = vector.broadcast %cst : f32 to vector<160x128xf32>
    %c0 = arith.constant 0 : index
    %c0_0 = arith.constant 0 : index
    %c0_1 = arith.constant 0 : index
    %c0_2 = arith.constant 0 : index
    %c0_3 = arith.constant 0 : index
    %1 = vector.load %arg2[%c0, %c0_0, %c0_1, %c0_2, %c0_3] : memref<1x1x12x18x8xbf16, #tpu.memory_space<vmem>>, vector<1x1x10x16x8xbf16>
    %2 = vector.shape_cast %1 : vector<1x1x10x16x8xbf16> to vector<10x16x8xbf16>
    %cst_4 = arith.constant 0.000000e+00 : bf16
    %3 = vector.broadcast %cst_4 : bf16 to vector<10x16x8xbf16>
    %4 = arith.maximumf %2, %3 : vector<10x16x8xbf16>
    %5 = vector.shape_cast %4 : vector<10x16x8xbf16> to vector<160x8xbf16>
    %c0_5 = arith.constant 0 : index
    %c0_6 = arith.constant 0 : index
    %c0_7 = arith.constant 0 : index
    %6 = vector.load %arg3[%c0_5, %c0_6, %c0_7] : memref<9x8x128xbf16, #tpu.memory_space<vmem>>, vector<1x8x128xbf16>
    %7 = vector.shape_cast %6 : vector<1x8x128xbf16> to vector<8x128xbf16>
    %cst_8 = arith.constant dense<0.000000e+00> : vector<160x128xf32>
    %8 = tpu.matmul %5, %7, %cst_8 {dimension_numbers = #tpu.dot_dimension_numbers<[1], [0], [0], [1], [0, 0, 1, 1], [], []>} : vector<160x8xbf16>, vector<8x128xbf16>, vector<160x128xf32> -> vector<160x128xf32>
    %9 = arith.addf %0, %8 : vector<160x128xf32>
    %c0_9 = arith.constant 0 : index
    %c0_10 = arith.constant 0 : index
    %c0_11 = arith.constant 0 : index
    %c1 = arith.constant 1 : index
    %c0_12 = arith.constant 0 : index
    %10 = vector.load %arg2[%c0_9, %c0_10, %c0_11, %c1, %c0_12] : memref<1x1x12x18x8xbf16, #tpu.memory_space<vmem>>, vector<1x1x10x16x8xbf16>
    %11 = vector.shape_cast %10 : vector<1x1x10x16x8xbf16> to vector<10x16x8xbf16>
    %cst_13 = arith.constant 0.000000e+00 : bf16
    %12 = vector.broadcast %cst_13 : bf16 to vector<10x16x8xbf16>
    %13 = arith.maximumf %11, %12 : vector<10x16x8xbf16>
    %14 = vector.shape_cast %13 : vector<10x16x8xbf16> to vector<160x8xbf16>
    %c1_14 = arith.constant 1 : index
    %c0_15 = arith.constant 0 : index
    %c0_16 = arith.constant 0 : index
    %15 = vector.load %arg3[%c1_14, %c0_15, %c0_16] : memref<9x8x128xbf16, #tpu.memory_space<vmem>>, vector<1x8x128xbf16>
    %16 = vector.shape_cast %15 : vector<1x8x128xbf16> to vector<8x128xbf16>
    %cst_17 = arith.constant dense<0.000000e+00> : vector<160x128xf32>
    %17 = tpu.matmul %14, %16, %cst_17 {dimension_numbers = #tpu.dot_dimension_numbers<[1], [0], [0], [1], [0, 0, 1, 1], [], []>} : vector<160x8xbf16>, vector<8x128xbf16>, vector<160x128xf32> -> vector<160x128xf32>
    %18 = arith.addf %9, %17 : vector<160x128xf32>
    %c0_18 = arith.constant 0 : index
    %c0_19 = arith.constant 0 : index
    %c0_20 = arith.constant 0 : index
    %c2 = arith.constant 2 : index
    %c0_21 = arith.constant 0 : index
    %19 = vector.load %arg2[%c0_18, %c0_19, %c0_20, %c2, %c0_21] : memref<1x1x12x18x8xbf16, #tpu.memory_space<vmem>>, vector<1x1x10x16x8xbf16>
    %20 = vector.shape_cast %19 : vector<1x1x10x16x8xbf16> to vector<10x16x8xbf16>
    %cst_22 = arith.constant 0.000000e+00 : bf16
    %21 = vector.broadcast %cst_22 : bf16 to vector<10x16x8xbf16>
    %22 = arith.maximumf %20, %21 : vector<10x16x8xbf16>
    %23 = vector.shape_cast %22 : vector<10x16x8xbf16> to vector<160x8xbf16>
    %c2_23 = arith.constant 2 : index
    %c0_24 = arith.constant 0 : index
    %c0_25 = arith.constant 0 : index
    %24 = vector.load %arg3[%c2_23, %c0_24, %c0_25] : memref<9x8x128xbf16, #tpu.memory_space<vmem>>, vector<1x8x128xbf16>
    %25 = vector.shape_cast %24 : vector<1x8x128xbf16> to vector<8x128xbf16>
    %cst_26 = arith.constant dense<0.000000e+00> : vector<160x128xf32>
    %26 = tpu.matmul %23, %25, %cst_26 {dimension_numbers = #tpu.dot_dimension_numbers<[1], [0], [0], [1], [0, 0, 1, 1], [], []>} : vector<160x8xbf16>, vector<8x128xbf16>, vector<160x128xf32> -> vector<160x128xf32>
    %27 = arith.addf %18, %26 : vector<160x128xf32>
    %c0_27 = arith.constant 0 : index
    %c0_28 = arith.constant 0 : index
    %c1_29 = arith.constant 1 : index
    %c0_30 = arith.constant 0 : index
    %c0_31 = arith.constant 0 : index
    %28 = vector.load %arg2[%c0_27, %c0_28, %c1_29, %c0_30, %c0_31] : memref<1x1x12x18x8xbf16, #tpu.memory_space<vmem>>, vector<1x1x10x16x8xbf16>
    %29 = vector.shape_cast %28 : vector<1x1x10x16x8xbf16> to vector<10x16x8xbf16>
    %cst_32 = arith.constant 0.000000e+00 : bf16
    %30 = vector.broadcast %cst_32 : bf16 to vector<10x16x8xbf16>
    %31 = arith.maximumf %29, %30 : vector<10x16x8xbf16>
    %32 = vector.shape_cast %31 : vector<10x16x8xbf16> to vector<160x8xbf16>
    %c3 = arith.constant 3 : index
    %c0_33 = arith.constant 0 : index
    %c0_34 = arith.constant 0 : index
    %33 = vector.load %arg3[%c3, %c0_33, %c0_34] : memref<9x8x128xbf16, #tpu.memory_space<vmem>>, vector<1x8x128xbf16>
    %34 = vector.shape_cast %33 : vector<1x8x128xbf16> to vector<8x128xbf16>
    %cst_35 = arith.constant dense<0.000000e+00> : vector<160x128xf32>
    %35 = tpu.matmul %32, %34, %cst_35 {dimension_numbers = #tpu.dot_dimension_numbers<[1], [0], [0], [1], [0, 0, 1, 1], [], []>} : vector<160x8xbf16>, vector<8x128xbf16>, vector<160x128xf32> -> vector<160x128xf32>
    %36 = arith.addf %27, %35 : vector<160x128xf32>
    %c0_36 = arith.constant 0 : index
    %c0_37 = arith.constant 0 : index
    %c1_38 = arith.constant 1 : index
    %c1_39 = arith.constant 1 : index
    %c0_40 = arith.constant 0 : index
    %37 = vector.load %arg2[%c0_36, %c0_37, %c1_38, %c1_39, %c0_40] : memref<1x1x12x18x8xbf16, #tpu.memory_space<vmem>>, vector<1x1x10x16x8xbf16>
    %38 = vector.shape_cast %37 : vector<1x1x10x16x8xbf16> to vector<10x16x8xbf16>
    %cst_41 = arith.constant 0.000000e+00 : bf16
    %39 = vector.broadcast %cst_41 : bf16 to vector<10x16x8xbf16>
    %40 = arith.maximumf %38, %39 : vector<10x16x8xbf16>
    %41 = vector.shape_cast %40 : vector<10x16x8xbf16> to vector<160x8xbf16>
    %c4 = arith.constant 4 : index
    %c0_42 = arith.constant 0 : index
    %c0_43 = arith.constant 0 : index
    %42 = vector.load %arg3[%c4, %c0_42, %c0_43] : memref<9x8x128xbf16, #tpu.memory_space<vmem>>, vector<1x8x128xbf16>
    %43 = vector.shape_cast %42 : vector<1x8x128xbf16> to vector<8x128xbf16>
    %cst_44 = arith.constant dense<0.000000e+00> : vector<160x128xf32>
    %44 = tpu.matmul %41, %43, %cst_44 {dimension_numbers = #tpu.dot_dimension_numbers<[1], [0], [0], [1], [0, 0, 1, 1], [], []>} : vector<160x8xbf16>, vector<8x128xbf16>, vector<160x128xf32> -> vector<160x128xf32>
    %45 = arith.addf %36, %44 : vector<160x128xf32>
    %c0_45 = arith.constant 0 : index
    %c0_46 = arith.constant 0 : index
    %c1_47 = arith.constant 1 : index
    %c2_48 = arith.constant 2 : index
    %c0_49 = arith.constant 0 : index
    %46 = vector.load %arg2[%c0_45, %c0_46, %c1_47, %c2_48, %c0_49] : memref<1x1x12x18x8xbf16, #tpu.memory_space<vmem>>, vector<1x1x10x16x8xbf16>
    %47 = vector.shape_cast %46 : vector<1x1x10x16x8xbf16> to vector<10x16x8xbf16>
    %cst_50 = arith.constant 0.000000e+00 : bf16
    %48 = vector.broadcast %cst_50 : bf16 to vector<10x16x8xbf16>
    %49 = arith.maximumf %47, %48 : vector<10x16x8xbf16>
    %50 = vector.shape_cast %49 : vector<10x16x8xbf16> to vector<160x8xbf16>
    %c5 = arith.constant 5 : index
    %c0_51 = arith.constant 0 : index
    %c0_52 = arith.constant 0 : index
    %51 = vector.load %arg3[%c5, %c0_51, %c0_52] : memref<9x8x128xbf16, #tpu.memory_space<vmem>>, vector<1x8x128xbf16>
    %52 = vector.shape_cast %51 : vector<1x8x128xbf16> to vector<8x128xbf16>
    %cst_53 = arith.constant dense<0.000000e+00> : vector<160x128xf32>
    %53 = tpu.matmul %50, %52, %cst_53 {dimension_numbers = #tpu.dot_dimension_numbers<[1], [0], [0], [1], [0, 0, 1, 1], [], []>} : vector<160x8xbf16>, vector<8x128xbf16>, vector<160x128xf32> -> vector<160x128xf32>
    %54 = arith.addf %45, %53 : vector<160x128xf32>
    %c0_54 = arith.constant 0 : index
    %c0_55 = arith.constant 0 : index
    %c2_56 = arith.constant 2 : index
    %c0_57 = arith.constant 0 : index
    %c0_58 = arith.constant 0 : index
    %55 = vector.load %arg2[%c0_54, %c0_55, %c2_56, %c0_57, %c0_58] : memref<1x1x12x18x8xbf16, #tpu.memory_space<vmem>>, vector<1x1x10x16x8xbf16>
    %56 = vector.shape_cast %55 : vector<1x1x10x16x8xbf16> to vector<10x16x8xbf16>
    %cst_59 = arith.constant 0.000000e+00 : bf16
    %57 = vector.broadcast %cst_59 : bf16 to vector<10x16x8xbf16>
    %58 = arith.maximumf %56, %57 : vector<10x16x8xbf16>
    %59 = vector.shape_cast %58 : vector<10x16x8xbf16> to vector<160x8xbf16>
    %c6 = arith.constant 6 : index
    %c0_60 = arith.constant 0 : index
    %c0_61 = arith.constant 0 : index
    %60 = vector.load %arg3[%c6, %c0_60, %c0_61] : memref<9x8x128xbf16, #tpu.memory_space<vmem>>, vector<1x8x128xbf16>
    %61 = vector.shape_cast %60 : vector<1x8x128xbf16> to vector<8x128xbf16>
    %cst_62 = arith.constant dense<0.000000e+00> : vector<160x128xf32>
    %62 = tpu.matmul %59, %61, %cst_62 {dimension_numbers = #tpu.dot_dimension_numbers<[1], [0], [0], [1], [0, 0, 1, 1], [], []>} : vector<160x8xbf16>, vector<8x128xbf16>, vector<160x128xf32> -> vector<160x128xf32>
    %63 = arith.addf %54, %62 : vector<160x128xf32>
    %c0_63 = arith.constant 0 : index
    %c0_64 = arith.constant 0 : index
    %c2_65 = arith.constant 2 : index
    %c1_66 = arith.constant 1 : index
    %c0_67 = arith.constant 0 : index
    %64 = vector.load %arg2[%c0_63, %c0_64, %c2_65, %c1_66, %c0_67] : memref<1x1x12x18x8xbf16, #tpu.memory_space<vmem>>, vector<1x1x10x16x8xbf16>
    %65 = vector.shape_cast %64 : vector<1x1x10x16x8xbf16> to vector<10x16x8xbf16>
    %cst_68 = arith.constant 0.000000e+00 : bf16
    %66 = vector.broadcast %cst_68 : bf16 to vector<10x16x8xbf16>
    %67 = arith.maximumf %65, %66 : vector<10x16x8xbf16>
    %68 = vector.shape_cast %67 : vector<10x16x8xbf16> to vector<160x8xbf16>
    %c7 = arith.constant 7 : index
    %c0_69 = arith.constant 0 : index
    %c0_70 = arith.constant 0 : index
    %69 = vector.load %arg3[%c7, %c0_69, %c0_70] : memref<9x8x128xbf16, #tpu.memory_space<vmem>>, vector<1x8x128xbf16>
    %70 = vector.shape_cast %69 : vector<1x8x128xbf16> to vector<8x128xbf16>
    %cst_71 = arith.constant dense<0.000000e+00> : vector<160x128xf32>
    %71 = tpu.matmul %68, %70, %cst_71 {dimension_numbers = #tpu.dot_dimension_numbers<[1], [0], [0], [1], [0, 0, 1, 1], [], []>} : vector<160x8xbf16>, vector<8x128xbf16>, vector<160x128xf32> -> vector<160x128xf32>
    %72 = arith.addf %63, %71 : vector<160x128xf32>
    %c0_72 = arith.constant 0 : index
    %c0_73 = arith.constant 0 : index
    %c2_74 = arith.constant 2 : index
    %c2_75 = arith.constant 2 : index
    %c0_76 = arith.constant 0 : index
    %73 = vector.load %arg2[%c0_72, %c0_73, %c2_74, %c2_75, %c0_76] : memref<1x1x12x18x8xbf16, #tpu.memory_space<vmem>>, vector<1x1x10x16x8xbf16>
    %74 = vector.shape_cast %73 : vector<1x1x10x16x8xbf16> to vector<10x16x8xbf16>
    %cst_77 = arith.constant 0.000000e+00 : bf16
    %75 = vector.broadcast %cst_77 : bf16 to vector<10x16x8xbf16>
    %76 = arith.maximumf %74, %75 : vector<10x16x8xbf16>
    %77 = vector.shape_cast %76 : vector<10x16x8xbf16> to vector<160x8xbf16>
    %c8 = arith.constant 8 : index
    %c0_78 = arith.constant 0 : index
    %c0_79 = arith.constant 0 : index
    %78 = vector.load %arg3[%c8, %c0_78, %c0_79] : memref<9x8x128xbf16, #tpu.memory_space<vmem>>, vector<1x8x128xbf16>
    %79 = vector.shape_cast %78 : vector<1x8x128xbf16> to vector<8x128xbf16>
    %cst_80 = arith.constant dense<0.000000e+00> : vector<160x128xf32>
    %80 = tpu.matmul %77, %79, %cst_80 {dimension_numbers = #tpu.dot_dimension_numbers<[1], [0], [0], [1], [0, 0, 1, 1], [], []>} : vector<160x8xbf16>, vector<8x128xbf16>, vector<160x128xf32> -> vector<160x128xf32>
    %81 = arith.addf %72, %80 : vector<160x128xf32>
    %c0_81 = arith.constant 0 : index
    %c0_82 = arith.constant 0 : index
    %82 = vector.load %arg4[%c0_81, %c0_82] : memref<1x128xf32, #tpu.memory_space<vmem>>, vector<1x128xf32>
    %83 = vector.broadcast %82 : vector<1x128xf32> to vector<160x128xf32>
    %84 = arith.addf %81, %83 : vector<160x128xf32>
    %cst_83 = arith.constant 0.000000e+00 : f32
    %85 = vector.broadcast %cst_83 : f32 to vector<160x128xf32>
    %86 = arith.maximumf %84, %85 : vector<160x128xf32>
    %87 = vector.shape_cast %86 : vector<160x128xf32> to vector<10x16x128xf32>
    %88 = arith.truncf %87 : vector<10x16x128xf32> to vector<10x16x128xbf16>
    %cst_84 = arith.constant 0.000000e+00 : bf16
    %89 = vector.broadcast %cst_84 : bf16 to vector<10x1x128xbf16>
    %c0_85 = arith.constant 0 : index
    %c0_86 = arith.constant 0 : index
    %c0_87 = arith.constant 0 : index
    %90 = vector.load %arg8[%c0_85, %c0_86, %c0_87] : memref<10x18x128xbf16, #tpu.memory_space<vmem>>, vector<10x1x128xbf16>
    tpu.vector_store %arg8[%c0_85, %c0_86, %c0_87], %89 {strides = array<i32>} : memref<10x18x128xbf16, #tpu.memory_space<vmem>>, vector<10x1x128xbf16>,
    %cst_88 = arith.constant 0.000000e+00 : bf16
    %91 = vector.broadcast %cst_88 : bf16 to vector<10x1x128xbf16>
    %c0_89 = arith.constant 0 : index
    %c17 = arith.constant 17 : index
    %c0_90 = arith.constant 0 : index
    %92 = vector.load %arg8[%c0_89, %c17, %c0_90] : memref<10x18x128xbf16, #tpu.memory_space<vmem>>, vector<10x1x128xbf16>
    tpu.vector_store %arg8[%c0_89, %c17, %c0_90], %91 {strides = array<i32>} : memref<10x18x128xbf16, #tpu.memory_space<vmem>>, vector<10x1x128xbf16>,
    %c0_91 = arith.constant 0 : index
    %c1_92 = arith.constant 1 : index
    %c0_93 = arith.constant 0 : index
    %93 = vector.load %arg8[%c0_91, %c1_92, %c0_93] : memref<10x18x128xbf16, #tpu.memory_space<vmem>>, vector<10x16x128xbf16>
    tpu.vector_store %arg8[%c0_91, %c1_92, %c0_93], %88 {strides = array<i32>} : memref<10x18x128xbf16, #tpu.memory_space<vmem>>, vector<10x16x128xbf16>,
    %c0_i32 = arith.constant 0 : i32
    %94 = arith.cmpi eq, %arg1, %c0_i32 : i32
    %95 = arith.extui %94 : i1 to i32
    %c0_i32_94 = arith.constant 0 : i32
    %96 = arith.cmpi ne, %95, %c0_i32_94 : i32
    scf.if %96 {
      %cst_168 = arith.constant 0.000000e+00 : bf16
      %162 = vector.broadcast %cst_168 : bf16 to vector<1x16x128xbf16>
      %c0_169 = arith.constant 0 : index
      %c1_170 = arith.constant 1 : index
      %c0_171 = arith.constant 0 : index
      %163 = vector.load %arg8[%c0_169, %c1_170, %c0_171] : memref<10x18x128xbf16, #tpu.memory_space<vmem>>, vector<1x16x128xbf16>
      tpu.vector_store %arg8[%c0_169, %c1_170, %c0_171], %162 {strides = array<i32>} : memref<10x18x128xbf16, #tpu.memory_space<vmem>>, vector<1x16x128xbf16>,
    } else {
    }
    %c1_i32 = arith.constant 1 : i32
    %97 = arith.cmpi eq, %arg1, %c1_i32 : i32
    %98 = arith.extui %97 : i1 to i32
    %c0_i32_95 = arith.constant 0 : i32
    %99 = arith.cmpi ne, %98, %c0_i32_95 : i32
    scf.if %99 {
      %cst_168 = arith.constant 0.000000e+00 : bf16
      %162 = vector.broadcast %cst_168 : bf16 to vector<1x16x128xbf16>
      %c9 = arith.constant 9 : index
      %c1_169 = arith.constant 1 : index
      %c0_170 = arith.constant 0 : index
      %163 = vector.load %arg8[%c9, %c1_169, %c0_170] : memref<10x18x128xbf16, #tpu.memory_space<vmem>>, vector<1x16x128xbf16>
      tpu.vector_store %arg8[%c9, %c1_169, %c0_170], %162 {strides = array<i32>} : memref<10x18x128xbf16, #tpu.memory_space<vmem>>, vector<1x16x128xbf16>,
    } else {
    }
    %cst_96 = arith.constant 0.000000e+00 : f32
    %100 = vector.broadcast %cst_96 : f32 to vector<128x8xf32>
    %c0_97 = arith.constant 0 : index
    %c0_98 = arith.constant 0 : index
    %c0_99 = arith.constant 0 : index
    %101 = vector.load %arg8[%c0_97, %c0_98, %c0_99] : memref<10x18x128xbf16, #tpu.memory_space<vmem>>, vector<8x16x128xbf16>
    %102 = vector.shape_cast %101 : vector<8x16x128xbf16> to vector<128x128xbf16>
    %c0_100 = arith.constant 0 : index
    %c0_101 = arith.constant 0 : index
    %c0_102 = arith.constant 0 : index
    %103 = vector.load %arg5[%c0_100, %c0_101, %c0_102] : memref<9x128x8xbf16, #tpu.memory_space<vmem>>, vector<1x128x8xbf16>
    %104 = vector.shape_cast %103 : vector<1x128x8xbf16> to vector<128x8xbf16>
    %cst_103 = arith.constant dense<0.000000e+00> : vector<128x8xf32>
    %105 = tpu.matmul %102, %104, %cst_103 {dimension_numbers = #tpu.dot_dimension_numbers<[1], [0], [0], [1], [0, 0, 1, 1], [], []>} : vector<128x128xbf16>, vector<128x8xbf16>, vector<128x8xf32> -> vector<128x8xf32>
    %106 = arith.addf %100, %105 : vector<128x8xf32>
    %c0_104 = arith.constant 0 : index
    %c1_105 = arith.constant 1 : index
    %c0_106 = arith.constant 0 : index
    %107 = vector.load %arg8[%c0_104, %c1_105, %c0_106] : memref<10x18x128xbf16, #tpu.memory_space<vmem>>, vector<8x16x128xbf16>
    %108 = vector.shape_cast %107 : vector<8x16x128xbf16> to vector<128x128xbf16>
    %c1_107 = arith.constant 1 : index
    %c0_108 = arith.constant 0 : index
    %c0_109 = arith.constant 0 : index
    %109 = vector.load %arg5[%c1_107, %c0_108, %c0_109] : memref<9x128x8xbf16, #tpu.memory_space<vmem>>, vector<1x128x8xbf16>
    %110 = vector.shape_cast %109 : vector<1x128x8xbf16> to vector<128x8xbf16>
    %cst_110 = arith.constant dense<0.000000e+00> : vector<128x8xf32>
    %111 = tpu.matmul %108, %110, %cst_110 {dimension_numbers = #tpu.dot_dimension_numbers<[1], [0], [0], [1], [0, 0, 1, 1], [], []>} : vector<128x128xbf16>, vector<128x8xbf16>, vector<128x8xf32> -> vector<128x8xf32>
    %112 = arith.addf %106, %111 : vector<128x8xf32>
    %c0_111 = arith.constant 0 : index
    %c2_112 = arith.constant 2 : index
    %c0_113 = arith.constant 0 : index
    %113 = vector.load %arg8[%c0_111, %c2_112, %c0_113] : memref<10x18x128xbf16, #tpu.memory_space<vmem>>, vector<8x16x128xbf16>
    %114 = vector.shape_cast %113 : vector<8x16x128xbf16> to vector<128x128xbf16>
    %c2_114 = arith.constant 2 : index
    %c0_115 = arith.constant 0 : index
    %c0_116 = arith.constant 0 : index
    %115 = vector.load %arg5[%c2_114, %c0_115, %c0_116] : memref<9x128x8xbf16, #tpu.memory_space<vmem>>, vector<1x128x8xbf16>
    %116 = vector.shape_cast %115 : vector<1x128x8xbf16> to vector<128x8xbf16>
    %cst_117 = arith.constant dense<0.000000e+00> : vector<128x8xf32>
    %117 = tpu.matmul %114, %116, %cst_117 {dimension_numbers = #tpu.dot_dimension_numbers<[1], [0], [0], [1], [0, 0, 1, 1], [], []>} : vector<128x128xbf16>, vector<128x8xbf16>, vector<128x8xf32> -> vector<128x8xf32>
    %118 = arith.addf %112, %117 : vector<128x8xf32>
    %c1_118 = arith.constant 1 : index
    %c0_119 = arith.constant 0 : index
    %c0_120 = arith.constant 0 : index
    %119 = vector.load %arg8[%c1_118, %c0_119, %c0_120] : memref<10x18x128xbf16, #tpu.memory_space<vmem>>, vector<8x16x128xbf16>
    %120 = vector.shape_cast %119 : vector<8x16x128xbf16> to vector<128x128xbf16>
    %c3_121 = arith.constant 3 : index
    %c0_122 = arith.constant 0 : index
    %c0_123 = arith.constant 0 : index
    %121 = vector.load %arg5[%c3_121, %c0_122, %c0_123] : memref<9x128x8xbf16, #tpu.memory_space<vmem>>, vector<1x128x8xbf16>
    %122 = vector.shape_cast %121 : vector<1x128x8xbf16> to vector<128x8xbf16>
    %cst_124 = arith.constant dense<0.000000e+00> : vector<128x8xf32>
    %123 = tpu.matmul %120, %122, %cst_124 {dimension_numbers = #tpu.dot_dimension_numbers<[1], [0], [0], [1], [0, 0, 1, 1], [], []>} : vector<128x128xbf16>, vector<128x8xbf16>, vector<128x8xf32> -> vector<128x8xf32>
    %124 = arith.addf %118, %123 : vector<128x8xf32>
    %c1_125 = arith.constant 1 : index
    %c1_126 = arith.constant 1 : index
    %c0_127 = arith.constant 0 : index
    %125 = vector.load %arg8[%c1_125, %c1_126, %c0_127] : memref<10x18x128xbf16, #tpu.memory_space<vmem>>, vector<8x16x128xbf16>
    %126 = vector.shape_cast %125 : vector<8x16x128xbf16> to vector<128x128xbf16>
    %c4_128 = arith.constant 4 : index
    %c0_129 = arith.constant 0 : index
    %c0_130 = arith.constant 0 : index
    %127 = vector.load %arg5[%c4_128, %c0_129, %c0_130] : memref<9x128x8xbf16, #tpu.memory_space<vmem>>, vector<1x128x8xbf16>
    %128 = vector.shape_cast %127 : vector<1x128x8xbf16> to vector<128x8xbf16>
    %cst_131 = arith.constant dense<0.000000e+00> : vector<128x8xf32>
    %129 = tpu.matmul %126, %128, %cst_131 {dimension_numbers = #tpu.dot_dimension_numbers<[1], [0], [0], [1], [0, 0, 1, 1], [], []>} : vector<128x128xbf16>, vector<128x8xbf16>, vector<128x8xf32> -> vector<128x8xf32>
    %130 = arith.addf %124, %129 : vector<128x8xf32>
    %c1_132 = arith.constant 1 : index
    %c2_133 = arith.constant 2 : index
    %c0_134 = arith.constant 0 : index
    %131 = vector.load %arg8[%c1_132, %c2_133, %c0_134] : memref<10x18x128xbf16, #tpu.memory_space<vmem>>, vector<8x16x128xbf16>
    %132 = vector.shape_cast %131 : vector<8x16x128xbf16> to vector<128x128xbf16>
    %c5_135 = arith.constant 5 : index
    %c0_136 = arith.constant 0 : index
    %c0_137 = arith.constant 0 : index
    %133 = vector.load %arg5[%c5_135, %c0_136, %c0_137] : memref<9x128x8xbf16, #tpu.memory_space<vmem>>, vector<1x128x8xbf16>
    %134 = vector.shape_cast %133 : vector<1x128x8xbf16> to vector<128x8xbf16>
    %cst_138 = arith.constant dense<0.000000e+00> : vector<128x8xf32>
    %135 = tpu.matmul %132, %134, %cst_138 {dimension_numbers = #tpu.dot_dimension_numbers<[1], [0], [0], [1], [0, 0, 1, 1], [], []>} : vector<128x128xbf16>, vector<128x8xbf16>, vector<128x8xf32> -> vector<128x8xf32>
    %136 = arith.addf %130, %135 : vector<128x8xf32>
    %c2_139 = arith.constant 2 : index
    %c0_140 = arith.constant 0 : index
    %c0_141 = arith.constant 0 : index
    %137 = vector.load %arg8[%c2_139, %c0_140, %c0_141] : memref<10x18x128xbf16, #tpu.memory_space<vmem>>, vector<8x16x128xbf16>
    %138 = vector.shape_cast %137 : vector<8x16x128xbf16> to vector<128x128xbf16>
    %c6_142 = arith.constant 6 : index
    %c0_143 = arith.constant 0 : index
    %c0_144 = arith.constant 0 : index
    %139 = vector.load %arg5[%c6_142, %c0_143, %c0_144] : memref<9x128x8xbf16, #tpu.memory_space<vmem>>, vector<1x128x8xbf16>
    %140 = vector.shape_cast %139 : vector<1x128x8xbf16> to vector<128x8xbf16>
    %cst_145 = arith.constant dense<0.000000e+00> : vector<128x8xf32>
    %141 = tpu.matmul %138, %140, %cst_145 {dimension_numbers = #tpu.dot_dimension_numbers<[1], [0], [0], [1], [0, 0, 1, 1], [], []>} : vector<128x128xbf16>, vector<128x8xbf16>, vector<128x8xf32> -> vector<128x8xf32>
    %142 = arith.addf %136, %141 : vector<128x8xf32>
    %c2_146 = arith.constant 2 : index
    %c1_147 = arith.constant 1 : index
    %c0_148 = arith.constant 0 : index
    %143 = vector.load %arg8[%c2_146, %c1_147, %c0_148] : memref<10x18x128xbf16, #tpu.memory_space<vmem>>, vector<8x16x128xbf16>
    %144 = vector.shape_cast %143 : vector<8x16x128xbf16> to vector<128x128xbf16>
    %c7_149 = arith.constant 7 : index
    %c0_150 = arith.constant 0 : index
    %c0_151 = arith.constant 0 : index
    %145 = vector.load %arg5[%c7_149, %c0_150, %c0_151] : memref<9x128x8xbf16, #tpu.memory_space<vmem>>, vector<1x128x8xbf16>
    %146 = vector.shape_cast %145 : vector<1x128x8xbf16> to vector<128x8xbf16>
    %cst_152 = arith.constant dense<0.000000e+00> : vector<128x8xf32>
    %147 = tpu.matmul %144, %146, %cst_152 {dimension_numbers = #tpu.dot_dimension_numbers<[1], [0], [0], [1], [0, 0, 1, 1], [], []>} : vector<128x128xbf16>, vector<128x8xbf16>, vector<128x8xf32> -> vector<128x8xf32>
    %148 = arith.addf %142, %147 : vector<128x8xf32>
    %c2_153 = arith.constant 2 : index
    %c2_154 = arith.constant 2 : index
    %c0_155 = arith.constant 0 : index
    %149 = vector.load %arg8[%c2_153, %c2_154, %c0_155] : memref<10x18x128xbf16, #tpu.memory_space<vmem>>, vector<8x16x128xbf16>
    %150 = vector.shape_cast %149 : vector<8x16x128xbf16> to vector<128x128xbf16>
    %c8_156 = arith.constant 8 : index
    %c0_157 = arith.constant 0 : index
    %c0_158 = arith.constant 0 : index
    %151 = vector.load %arg5[%c8_156, %c0_157, %c0_158] : memref<9x128x8xbf16, #tpu.memory_space<vmem>>, vector<1x128x8xbf16>
    %152 = vector.shape_cast %151 : vector<1x128x8xbf16> to vector<128x8xbf16>
    %cst_159 = arith.constant dense<0.000000e+00> : vector<128x8xf32>
    %153 = tpu.matmul %150, %152, %cst_159 {dimension_numbers = #tpu.dot_dimension_numbers<[1], [0], [0], [1], [0, 0, 1, 1], [], []>} : vector<128x128xbf16>, vector<128x8xbf16>, vector<128x8xf32> -> vector<128x8xf32>
    %154 = arith.addf %148, %153 : vector<128x8xf32>
    %155 = vector.shape_cast %154 : vector<128x8xf32> to vector<8x16x8xf32>
    %c0_160 = arith.constant 0 : index
    %c0_161 = arith.constant 0 : index
    %c0_162 = arith.constant 0 : index
    %c0_163 = arith.constant 0 : index
    %156 = vector.load %arg6[%c0_160, %c0_161, %c0_162, %c0_163] : memref<1x8x16x8xf32, #tpu.memory_space<vmem>>, vector<1x8x16x8xf32>
    %157 = vector.shape_cast %156 : vector<1x8x16x8xf32> to vector<8x16x8xf32>
    %158 = arith.addf %155, %157 : vector<8x16x8xf32>
    %c0_164 = arith.constant 0 : index
    %c0_165 = arith.constant 0 : index
    %c0_166 = arith.constant 0 : index
    %c0_167 = arith.constant 0 : index
    %159 = vector.load %arg7[%c0_164, %c0_165, %c0_166, %c0_167] : memref<1x8x16x8xf32, #tpu.memory_space<vmem>>, vector<1x8x16x8xf32>
    %160 = vector.shape_cast %159 : vector<1x8x16x8xf32> to vector<8x16x8xf32>
    %161 = vector.shape_cast %158 : vector<8x16x8xf32> to vector<1x8x16x8xf32>
    tpu.vector_store %arg7[%c0_164, %c0_165, %c0_166, %c0_167], %161 {strides = array<i32>} : memref<1x8x16x8xf32, #tpu.memory_space<vmem>>, vector<1x8x16x8xf32>,
    return
  }
  func.func @transform_0(%arg0: i32, %arg1: i32) -> (i32, i32, i32, i32, i32) {
    %c0_i32 = arith.constant 0 : i32
    %c0_i32_0 = arith.constant 0 : i32
    %c0_i32_1 = arith.constant 0 : i32
    %c0_i32_2 = arith.constant 0 : i32
    return %arg0, %arg1, %c0_i32, %c0_i32_0, %c0_i32_1 : i32, i32, i32, i32, i32
  }
  func.func @transform_1(%arg0: i32, %arg1: i32) -> (i32, i32, i32) {
    %c0_i32 = arith.constant 0 : i32
    %c0_i32_0 = arith.constant 0 : i32
    %c0_i32_1 = arith.constant 0 : i32
    %c0_i32_2 = arith.constant 0 : i32
    return %c0_i32, %c0_i32_0, %c0_i32_1 : i32, i32, i32
  }
  func.func @transform_2(%arg0: i32, %arg1: i32) -> (i32, i32) {
    %c0_i32 = arith.constant 0 : i32
    %c0_i32_0 = arith.constant 0 : i32
    %c0_i32_1 = arith.constant 0 : i32
    return %c0_i32, %c0_i32_0 : i32, i32
  }
  func.func @transform_3(%arg0: i32, %arg1: i32) -> (i32, i32, i32) {
    %c0_i32 = arith.constant 0 : i32
    %c0_i32_0 = arith.constant 0 : i32
    %c0_i32_1 = arith.constant 0 : i32
    %c0_i32_2 = arith.constant 0 : i32
    return %c0_i32, %c0_i32_0, %c0_i32_1 : i32, i32, i32
  }
  func.func @transform_4(%arg0: i32, %arg1: i32) -> (i32, i32, i32, i32) {
    %c0_i32 = arith.constant 0 : i32
    %c0_i32_0 = arith.constant 0 : i32
    %c0_i32_1 = arith.constant 0 : i32
    return %arg0, %arg1, %c0_i32, %c0_i32_0 : i32, i32, i32, i32
  }
  func.func @transform_5(%arg0: i32, %arg1: i32) -> (i32, i32, i32, i32) {
    %c0_i32 = arith.constant 0 : i32
    %c0_i32_0 = arith.constant 0 : i32
    %c0_i32_1 = arith.constant 0 : i32
    return %arg0, %arg1, %c0_i32, %c0_i32_0 : i32, i32, i32, i32
  }
}

</mosaic_0001>

<llo_original>
// kernel: tpu_custom_call.1
$region0: #{tpu_custom_call.1}
  #allocation0 [shape = 'u32[]', space=smem, size = 0x4, offset = 0x4, fixed_abs, tag = 'smem constant byte address 0x4 - core index']
  #allocation1 [shape = 'u32[72,128]{1,0:T(1,128)}', space=vmem, size = 0x9000, scoped, tag = 'internal scratch']
  #allocation2 [shape = 'bf16[10,18,128]{2,1,0:T(8,128)(2,1)}', space=vmem, size = 0xf000, scoped, tag = 'scratch operand']
  %s0 = inlined_call_operand.vmem [shape: bf16[2,2,12,18,8], index: 0, kind: input, shape index: {}]
  %s1 = inlined_call_operand.vmem [shape: bf16[9,8,128], index: 1, kind: input, shape index: {}]
  %s2 = inlined_call_operand.vmem [shape: f32[1,128], index: 2, kind: input, shape index: {}]
  %s3 = inlined_call_operand.vmem [shape: bf16[9,128,8], index: 3, kind: input, shape index: {}]
  %s4 = inlined_call_operand.vmem [shape: f32[2,16,16,8], index: 4, kind: input, shape index: {}]
  %s5 = inlined_call_operand.vmem [shape: f32[2,16,16,8], index: 5, kind: output, shape index: {}]
  %s6 = sld [smem:[#allocation0]]
  $region61: #{tpu_custom_call.1} parent=0
    _
  %s8 = ssub.s32 1, %s6
  %s9 = scalar_select 0, %s8, %s6
  loop: start=0, step=1, limit=6
  $region2: #{tpu_custom_call.1} parent=0 // loop_pre_header
    _
  $region3: #{tpu_custom_call.1} parent=0 // loop_header
    %s11 = sphi 0, %s15
    %p12 = scmp.ge.s32.totalorder %s11, 6
    %s18 = sphi 0, %s30
    %s19 = sphi 0, %s26
    %s20 = sphi 0, %s18
    %s21 = sphi 0, %s19
    %s22 = sphi 0, %s20
    %s23 = sphi 0, %s21
    %s35 = sphi 0, %s37
    %s38 = sphi 0, %s35
    %s39 = sphi 0, %s38
    %s55 = sphi 0, %s39
    %s59 = sphi 0, %s59
    %s61 = sphi 0, %s59
    %s62 = sphi 0, %s61
    %s76 = sphi 0, %s62
    %s80 = sphi 0, %s80
    %s82 = sphi 0, %s80
    %s83 = sphi 0, %s82
    %s97 = sphi 0, %s83
    %s101 = sphi 0, %s101
    %s103 = sphi 0, %s101
    %s104 = sphi 0, %s103
    %s118 = sphi 0, %s104
    %s126 = sphi 0, %s128
    %s129 = sphi 0, %s126
    %s130 = sphi 0, %s129
    %s146 = sphi 0, %s130
    %s154 = sphi 0, %s156
    %s157 = sphi 0, %s154
    %s158 = sphi 0, %s157
    %s174 = sphi 0, %s158
  $region4: #{tpu_custom_call.1} parent=0 // loop_header_branch
    %14 = sbr.rel (%p12) target = $region8
  $region5: #{tpu_custom_call.1} parent=0 // loop_body
    %s16 = ssub.s32 %s11, 1
    %s17 = ssub.s32 %s11, 2
    %s24 = sadd.s32 1, %s19
    %p25 = scmp.ge.s32.totalorder %s24, 2
    %s26 = scalar_select %p25, 0, %s24
    %s27 = sadd.s32 1, %s18
    %s28 = scalar_select %p25, %s27, %s18
    %p29 = scmp.ge.s32.totalorder %s28, 2
    %s30 = scalar_select %p29, 0, %s28
    %s31 = ssub.s32 %s18, %s30
    %s32 = ssub.s32 %s19, %s26
    %s33 = sor.u32 %s31, %s32
    %p34 = scmp.eq.s32.totalorder %s33, 0
    %s36 = sadd.s32 %s35, 1
    %s37 = scalar_select %p34, %s35, %s36
    %p40 = pneg %p34
    %p41 = scmp.eq.s32.totalorder %s11, 3
    %p42 = por %p40, %p41
    %p43 = scmp.ne.s32.totalorder %s35, %s38
    %p44 = scmp.eq.s32.totalorder %s11, 0
    %p45 = por %p43, %p44
    %p46 = scmp.ne.s32.totalorder %s35, %s38
    %p47 = scmp.eq.s32.totalorder %s16, 3
    %p48 = por %p46, %p47
    %p49 = scmp.ne.s32.totalorder %s38, %s39
    %p50 = scmp.eq.s32.totalorder %s16, 0
    %p51 = por %p49, %p50
    %p52 = scmp.ne.s32.totalorder %s38, %s39
    %p53 = scmp.eq.s32.totalorder %s17, 3
    %p54 = por %p52, %p53
    %p56 = scmp.ne.s32.totalorder %s39, %s55
    %p57 = scmp.eq.s32.totalorder %s17, 0
    %p58 = por %p56, %p57
    %s60 = sadd.s32 %s59, 1
    %p63 = scmp.eq.s32.totalorder %s11, 3
    %p64 = scmp.ne.s32.totalorder %s59, %s61
    %p65 = scmp.eq.s32.totalorder %s11, 0
    %p66 = por %p64, %p65
    %p67 = scmp.ne.s32.totalorder %s59, %s61
    %p68 = scmp.eq.s32.totalorder %s16, 3
    %p69 = por %p67, %p68
    %p70 = scmp.ne.s32.totalorder %s61, %s62
    %p71 = scmp.eq.s32.totalorder %s16, 0
    %p72 = por %p70, %p71
    %p73 = scmp.ne.s32.totalorder %s61, %s62
    %p74 = scmp.eq.s32.totalorder %s17, 3
    %p75 = por %p73, %p74
    %p77 = scmp.ne.s32.totalorder %s62, %s76
    %p78 = scmp.eq.s32.totalorder %s17, 0
    %p79 = por %p77, %p78
    %s81 = sadd.s32 %s80, 1
    %p84 = scmp.eq.s32.totalorder %s11, 3
    %p85 = scmp.ne.s32.totalorder %s80, %s82
    %p86 = scmp.eq.s32.totalorder %s11, 0
    %p87 = por %p85, %p86
    %p88 = scmp.ne.s32.totalorder %s80, %s82
    %p89 = scmp.eq.s32.totalorder %s16, 3
    %p90 = por %p88, %p89
    %p91 = scmp.ne.s32.totalorder %s82, %s83
    %p92 = scmp.eq.s32.totalorder %s16, 0
    %p93 = por %p91, %p92
    %p94 = scmp.ne.s32.totalorder %s82, %s83
    %p95 = scmp.eq.s32.totalorder %s17, 3
    %p96 = por %p94, %p95
    %p98 = scmp.ne.s32.totalorder %s83, %s97
    %p99 = scmp.eq.s32.totalorder %s17, 0
    %p100 = por %p98, %p99
    %s102 = sadd.s32 %s101, 1
    %p105 = scmp.eq.s32.totalorder %s11, 3
    %p106 = scmp.ne.s32.totalorder %s101, %s103
    %p107 = scmp.eq.s32.totalorder %s11, 0
    %p108 = por %p106, %p107
    %p109 = scmp.ne.s32.totalorder %s101, %s103
    %p110 = scmp.eq.s32.totalorder %s16, 3
    %p111 = por %p109, %p110
    %p112 = scmp.ne.s32.totalorder %s103, %s104
    %p113 = scmp.eq.s32.totalorder %s16, 0
    %p114 = por %p112, %p113
    %p115 = scmp.ne.s32.totalorder %s103, %s104
    %p116 = scmp.eq.s32.totalorder %s17, 3
    %p117 = por %p115, %p116
    %p119 = scmp.ne.s32.totalorder %s104, %s118
    %p120 = scmp.eq.s32.totalorder %s17, 0
    %p121 = por %p119, %p120
    %s122 = ssub.s32 %s18, %s30
    %s123 = ssub.s32 %s19, %s26
    %s124 = sor.u32 %s122, %s123
    %p125 = scmp.eq.s32.totalorder %s124, 0
    %s127 = sadd.s32 %s126, 1
    %s128 = scalar_select %p125, %s126, %s127
    %p131 = pneg %p125
    %p132 = scmp.eq.s32.totalorder %s11, 3
    %p133 = por %p131, %p132
    %p134 = scmp.ne.s32.totalorder %s126, %s129
    %p135 = scmp.eq.s32.totalorder %s11, 0
    %p136 = por %p134, %p135
    %p137 = scmp.ne.s32.totalorder %s126, %s129
    %p138 = scmp.eq.s32.totalorder %s16, 3
    %p139 = por %p137, %p138
    %p140 = scmp.ne.s32.totalorder %s129, %s130
    %p141 = scmp.eq.s32.totalorder %s16, 0
    %p142 = por %p140, %p141
    %p143 = scmp.ne.s32.totalorder %s129, %s130
    %p144 = scmp.eq.s32.totalorder %s17, 3
    %p145 = por %p143, %p144
    %p147 = scmp.ne.s32.totalorder %s130, %s146
    %p148 = scmp.eq.s32.totalorder %s17, 0
    %p149 = por %p147, %p148
    %s150 = ssub.s32 %s18, %s30
    %s151 = ssub.s32 %s19, %s26
    %s152 = sor.u32 %s150, %s151
    %p153 = scmp.eq.s32.totalorder %s152, 0
    %s155 = sadd.s32 %s154, 1
    %s156 = scalar_select %p153, %s154, %s155
    %p159 = pneg %p153
    %p160 = scmp.eq.s32.totalorder %s11, 3
    %p161 = por %p159, %p160
    %p162 = scmp.ne.s32.totalorder %s154, %s157
    %p163 = scmp.eq.s32.totalorder %s11, 0
    %p164 = por %p162, %p163
    %p165 = scmp.ne.s32.totalorder %s154, %s157
    %p166 = scmp.eq.s32.totalorder %s16, 3
    %p167 = por %p165, %p166
    %p168 = scmp.ne.s32.totalorder %s157, %s158
    %p169 = scmp.eq.s32.totalorder %s16, 0
    %p170 = por %p168, %p169
    %p171 = scmp.ne.s32.totalorder %s157, %s158
    %p172 = scmp.eq.s32.totalorder %s17, 3
    %p173 = por %p171, %p172
    %p175 = scmp.ne.s32.totalorder %s158, %s174
    %p176 = scmp.eq.s32.totalorder %s17, 0
    %p177 = por %p175, %p176
    %p178 = scmp.le.s32.totalorder 1, %s11
    %p179 = scmp.lt.s32.totalorder %s11, 5
    %p180 = pnand %p178, %p179
    %p181 = pneg %p180
    // Predicated region
    $region9: #{tpu_custom_call.1} parent=5 // pred_check
      _
    $region10: #{tpu_custom_call.1} parent=5 // pred_check_branch
      %183 = sbr.rel (%p180) target = $region12
    $region11: #{tpu_custom_call.1} parent=5 // pred_region
      %s184 = ssub.s32 %s11, 1
      // Predicated region
      $region13: #{tpu_custom_call.1} parent=11 // pred_check
        %p185 = pneg %p72
      $region14: #{tpu_custom_call.1} parent=11 // pred_check_branch
        %187 = sbr.rel (%p185) target = $region16
      $region15: #{tpu_custom_call.1} parent=11 // pred_region
        _
      $region16: #{tpu_custom_call.1} parent=11 // pred_fallthru
        _
      // Predicated region
      $region17: #{tpu_custom_call.1} parent=11 // pred_check
        %p188 = pneg %p93
      $region18: #{tpu_custom_call.1} parent=11 // pred_check_branch
        %190 = sbr.rel (%p188) target = $region20
      $region19: #{tpu_custom_call.1} parent=11 // pred_region
        _
      $region20: #{tpu_custom_call.1} parent=11 // pred_fallthru
        _
      // Predicated region
      $region21: #{tpu_custom_call.1} parent=11 // pred_check
        %p191 = pneg %p114
      $region22: #{tpu_custom_call.1} parent=11 // pred_check_branch
        %193 = sbr.rel (%p191) target = $region24
      $region23: #{tpu_custom_call.1} parent=11 // pred_region
        _
      $region24: #{tpu_custom_call.1} parent=11 // pred_fallthru
        _
    $region12: #{tpu_custom_call.1} parent=5 // pred_fallthru
      _
    %p194 = scmp.lt.s32.totalorder %s11, 4
    // Predicated region
    $region25: #{tpu_custom_call.1} parent=5 // pred_check
      %p195 = pneg %p194
    $region26: #{tpu_custom_call.1} parent=5 // pred_check_branch
      %197 = sbr.rel (%p195) target = $region28
    $region27: #{tpu_custom_call.1} parent=5 // pred_region
      // Predicated region
      $region29: #{tpu_custom_call.1} parent=27 // pred_check
        %p198 = pneg %p45
      $region30: #{tpu_custom_call.1} parent=27 // pred_check_branch
        %200 = sbr.rel (%p198) target = $region32
      $region31: #{tpu_custom_call.1} parent=27 // pred_region
        %p201 = scmp.lt.s32.totalorder %s18, 1
        %s202 = scalar_select %p201, %s18, 1
        %p203 = scmp.lt.s32.totalorder %s19, 1
        %s204 = scalar_select %p203, %s19, 1
        %s205 = smul.addr %s204, 36
        %s206 = smul.addr %s202, 72
        %s207 = sadd.s32 %s205, %s206
        %s208 = smul.addr %s207, 4
        %s209 = scalar_lea.vmem %s0, %s208
      $region32: #{tpu_custom_call.1} parent=27 // pred_fallthru
        _
      // Predicated region
      $region33: #{tpu_custom_call.1} parent=27 // pred_check
        %p210 = pneg %p136
      $region34: #{tpu_custom_call.1} parent=27 // pred_check_branch
        %212 = sbr.rel (%p210) target = $region36
      $region35: #{tpu_custom_call.1} parent=27 // pred_region
        %s213 = smul.u32 8, %s19
        %p214 = scmp.lt.s32.totalorder %s18, 1
        %s215 = scalar_select %p214, %s18, 1
        %p216 = scmp.lt.s32.totalorder %s213, 15
        %s217 = scalar_select %p216, %s213, 15
        %s218 = smul.addr %s217, 2
        %s219 = smul.addr %s215, 32
        %s220 = sadd.s32 %s218, %s219
        %s221 = smul.addr %s220, 8
        %s222 = scalar_lea.vmem %s4, %s221
        %s223 = smul.u32 8, %s19
      $region36: #{tpu_custom_call.1} parent=27 // pred_fallthru
        _
    $region28: #{tpu_custom_call.1} parent=5 // pred_fallthru
      _
    %p224 = scmp.le.s32.totalorder 1, %s11
    %p225 = scmp.lt.s32.totalorder %s11, 5
    %p226 = pnand %p224, %p225
    %p227 = pneg %p226
    // Predicated region
    $region37: #{tpu_custom_call.1} parent=5 // pred_check
      _
    $region38: #{tpu_custom_call.1} parent=5 // pred_check_branch
      %229 = sbr.rel (%p226) target = $region40
    $region39: #{tpu_custom_call.1} parent=5 // pred_region
      %s230 = ssub.s32 %s11, 1
      %p231 = scmp.lt.s32.totalorder %s20, 1
      %s232 = scalar_select %p231, %s20, 1
      %p233 = scmp.lt.s32.totalorder %s21, 1
      %s234 = scalar_select %p233, %s21, 1
      %s235 = smul.addr %s234, 36
      %s236 = smul.addr %s232, 72
      %s237 = sadd.s32 %s235, %s236
      %s238 = smul.addr %s237, 4
      %s239 = scalar_lea.vmem %s0, %s238
      %p240 = pneg %p51
      %p241 = pneg %p48
      %p242 = pneg %p72
      %p243 = pneg %p69
      %p244 = pneg %p93
      %p245 = pneg %p90
      %p246 = pneg %p114
      %p247 = pneg %p111
      %s248 = smul.u32 8, %s21
      %p249 = scmp.lt.s32.totalorder %s20, 1
      %s250 = scalar_select %p249, %s20, 1
      %p251 = scmp.lt.s32.totalorder %s248, 15
      %s252 = scalar_select %p251, %s248, 15
      %s253 = smul.addr %s252, 2
      %s254 = smul.addr %s250, 32
      %s255 = sadd.s32 %s253, %s254
      %s256 = smul.addr %s255, 8
      %s257 = scalar_lea.vmem %s4, %s256
      %p258 = pneg %p142
      %p259 = pneg %p139
      %p260 = pneg %p170
      %p261 = pneg %p167
      %s262 = smul.u32 8, %s21
      %p263 = scmp.lt.s32.totalorder %s20, 1
      %s264 = scalar_select %p263, %s20, 1
      %p265 = scmp.lt.s32.totalorder %s262, 15
      %s266 = scalar_select %p265, %s262, 15
      %s267 = smul.addr %s266, 2
      %s268 = smul.addr %s264, 32
      %s269 = sadd.s32 %s267, %s268
      %s270 = smul.addr %s269, 8
      %s271 = scalar_lea.vmem %s5, %s270
      %p272 = scmp.lt.s32.totalorder %s20, 1
      %s273 = scalar_select %p272, %s20, 1
      %p274 = scmp.lt.s32.totalorder %s21, 1
      %s275 = scalar_select %p274, %s21, 1
      %s276 = smul.addr %s275, 36
      %s277 = smul.addr %s273, 72
      %s278 = sadd.s32 %s276, %s277
      %s279 = smul.addr %s278, 4
      %s280 = scalar_lea.vmem %s0, %s279
      %s281 = smul.u32 8, %s21
      %p282 = scmp.lt.s32.totalorder %s20, 1
      %s283 = scalar_select %p282, %s20, 1
      %p284 = scmp.lt.s32.totalorder %s281, 15
      %s285 = scalar_select %p284, %s281, 15
      %s286 = smul.addr %s285, 2
      %s287 = smul.addr %s283, 32
      %s288 = sadd.s32 %s286, %s287
      %s289 = smul.addr %s288, 8
      %s290 = scalar_lea.vmem %s4, %s289
      %s291 = smul.u32 8, %s21
      %s292 = smul.u32 8, %s21
      %p293 = scmp.lt.s32.totalorder %s20, 1
      %s294 = scalar_select %p293, %s20, 1
      %p295 = scmp.lt.s32.totalorder %s292, 15
      %s296 = scalar_select %p295, %s292, 15
      %s297 = smul.addr %s296, 2
      %s298 = smul.addr %s294, 32
      %s299 = sadd.s32 %s297, %s298
      %s300 = smul.addr %s299, 8
      %s301 = scalar_lea.vmem %s5, %s300
      %s302 = smul.u32 8, %s21
      %v304 = vld [vmem:[%s280] sm:$0xf]
      %v305 = vld [vmem:[%s280 + $0x4] sm:$0xf]
      %v306 = vld [vmem:[%s280 + $0xc] sm:$0xf]
      %v307 = vld [vmem:[%s280 + $0x10] sm:$0xf]
      %v308 = vld [vmem:[%s280 + $0x18] sm:$0xf]
      %v309 = vld [vmem:[%s280 + $0x1c] sm:$0xf]
      %v310 = vld [vmem:[%s280 + $0x24] sm:$0xf]
      %v311 = vld [vmem:[%s280 + $0x28] sm:$0xf]
      %v312 = vld [vmem:[%s280 + $0x30] sm:$0xf]
      %v313 = vld [vmem:[%s280 + $0x34] sm:$0xf]
      %v314 = vld [vmem:[%s280 + $0x3c] sm:$0xf]
      %v315 = vld [vmem:[%s280 + $0x40] sm:$0xf]
      %v316 = vld [vmem:[%s280 + $0x48] sm:$0xf]
      %v317 = vld [vmem:[%s280 + $0x4c] sm:$0xf]
      %v318 = vld [vmem:[%s280 + $0x54] sm:$0xf]
      %v319 = vld [vmem:[%s280 + $0x58] sm:$0xf]
      %v320 = vld [vmem:[%s280 + $0x60] sm:$0xf]
      %v321 = vld [vmem:[%s280 + $0x64] sm:$0xf]
      %v322 = vld [vmem:[%s280 + $0x6c] sm:$0xf]
      %v323 = vld [vmem:[%s280 + $0x70] sm:$0xf]
      %v324 = vunpack.c.l.bf16 %v304
      %v325 = vunpack.c.l.bf16 %v305
      %v326 = vunpack.c.l.bf16 %v306
      %v327 = vunpack.c.l.bf16 %v307
      %v328 = vunpack.c.l.bf16 %v308
      %v329 = vunpack.c.l.bf16 %v309
      %v330 = vunpack.c.l.bf16 %v310
      %v331 = vunpack.c.l.bf16 %v311
      %v332 = vunpack.c.l.bf16 %v312
      %v333 = vunpack.c.l.bf16 %v313
      %v334 = vunpack.c.l.bf16 %v314
      %v335 = vunpack.c.l.bf16 %v315
      %v336 = vunpack.c.l.bf16 %v316
      %v337 = vunpack.c.l.bf16 %v317
      %v338 = vunpack.c.l.bf16 %v318
      %v339 = vunpack.c.l.bf16 %v319
      %v340 = vunpack.c.l.bf16 %v320
      %v341 = vunpack.c.l.bf16 %v321
      %v342 = vunpack.c.l.bf16 %v322
      %v343 = vunpack.c.l.bf16 %v323
      %v344 = vmax.f32 %v324, 0.0
      %v345 = vmax.f32 %v325, 0.0
      %v346 = vmax.f32 %v326, 0.0
      %v347 = vmax.f32 %v327, 0.0
      %v348 = vmax.f32 %v328, 0.0
      %v349 = vmax.f32 %v329, 0.0
      %v350 = vmax.f32 %v330, 0.0
      %v351 = vmax.f32 %v331, 0.0
      %v352 = vmax.f32 %v332, 0.0
      %v353 = vmax.f32 %v333, 0.0
      %v354 = vmax.f32 %v334, 0.0
      %v355 = vmax.f32 %v335, 0.0
      %v356 = vmax.f32 %v336, 0.0
      %v357 = vmax.f32 %v337, 0.0
      %v358 = vmax.f32 %v338, 0.0
      %v359 = vmax.f32 %v339, 0.0
      %v360 = vmax.f32 %v340, 0.0
      %v361 = vmax.f32 %v341, 0.0
      %v362 = vmax.f32 %v342, 0.0
      %v363 = vmax.f32 %v343, 0.0
      %v364 = vpack.c.bf16 %v344, %v344
      %v365 = vpack.c.bf16 %v345, %v345
      %v366 = vpack.c.bf16 %v346, %v346
      %v367 = vpack.c.bf16 %v347, %v347
      %v368 = vpack.c.bf16 %v348, %v348
      %v369 = vpack.c.bf16 %v349, %v349
      %v370 = vpack.c.bf16 %v350, %v350
      %v371 = vpack.c.bf16 %v351, %v351
      %v372 = vpack.c.bf16 %v352, %v352
      %v373 = vpack.c.bf16 %v353, %v353
      %v374 = vpack.c.bf16 %v354, %v354
      %v375 = vpack.c.bf16 %v355, %v355
      %v376 = vpack.c.bf16 %v356, %v356
      %v377 = vpack.c.bf16 %v357, %v357
      %v378 = vpack.c.bf16 %v358, %v358
      %v379 = vpack.c.bf16 %v359, %v359
      %v380 = vpack.c.bf16 %v360, %v360
      %v381 = vpack.c.bf16 %v361, %v361
      %v382 = vpack.c.bf16 %v362, %v362
      %v383 = vpack.c.bf16 %v363, %v363
      %v384 = vld [vmem:[%s1] sm:$0xf]
      %v385 = vld [vmem:[%s280 + $0x8] sm:$0x1]
      %v386 = vld [vmem:[%s280 + $0x14] sm:$0x1]
      %v387 = vld [vmem:[%s280 + $0x20] sm:$0x1]
      %v388 = vld [vmem:[%s280 + $0x2c] sm:$0x1]
      %v389 = vld [vmem:[%s280 + $0x38] sm:$0x1]
      %v390 = vld [vmem:[%s280 + $0x44] sm:$0x1]
      %v391 = vld [vmem:[%s280 + $0x50] sm:$0x1]
      %v392 = vld [vmem:[%s280 + $0x5c] sm:$0x1]
      %v393 = vld [vmem:[%s280 + $0x68] sm:$0x1]
      %v394 = vld [vmem:[%s280 + $0x74] sm:$0x1]
      %v395 = vunpack.c.l.bf16 %v385
      %v396 = vunpack.c.l.bf16 %v386
      %v397 = vunpack.c.l.bf16 %v387
      %v398 = vunpack.c.l.bf16 %v388
      %v399 = vunpack.c.l.bf16 %v389
      %v400 = vunpack.c.l.bf16 %v390
      %v401 = vunpack.c.l.bf16 %v391
      %v402 = vunpack.c.l.bf16 %v392
      %v403 = vunpack.c.l.bf16 %v393
      %v404 = vunpack.c.l.bf16 %v394
      %v405 = vmax.f32 %v395, 0.0
      %v406 = vmax.f32 %v396, 0.0
      %v407 = vmax.f32 %v397, 0.0
      %v408 = vmax.f32 %v398, 0.0
      %v409 = vmax.f32 %v399, 0.0
      %v410 = vmax.f32 %v400, 0.0
      %v411 = vmax.f32 %v401, 0.0
      %v412 = vmax.f32 %v402, 0.0
      %v413 = vmax.f32 %v403, 0.0
      %v414 = vmax.f32 %v404, 0.0
      %v415 = vpack.c.bf16 %v405, %v405
      %v416 = vpack.c.bf16 %v406, %v406
      %v417 = vpack.c.bf16 %v407, %v407
      %v418 = vpack.c.bf16 %v408, %v408
      %v419 = vpack.c.bf16 %v409, %v409
      %v420 = vpack.c.bf16 %v410, %v410
      %v421 = vpack.c.bf16 %v411, %v411
      %v422 = vpack.c.bf16 %v412, %v412
      %v423 = vpack.c.bf16 %v413, %v413
      %v424 = vpack.c.bf16 %v414, %v414
      %vm425 = vsmask.f32 3328
      %vm426 = vsmask.f32 7440
      %vm427 = vmor %vm425, %vm426
      %v429 = vshrl.u32 %v364, 16
      %v431 = vrot.slane %v429, 4
      %v432 = vshll.u32 %v364, 16
      %v434 = vrot.slane %v432, 5
      %v435 = vor.u32 %v431, %v434
      %v436 = vrot.slane %v435, 4
      %v438 = vshll.u32 %v365, 16
      %v440 = vrot.slane %v438, 5
      %v441 = vsel %vm427, %v436, %v440
      %v442 = vshrl.u32 %v365, 16
      %v444 = vrot.slane %v442, 4
      %v445 = vor.u32 %v444, %v440
      %v446 = vrot.slane %v445, 4
      %v448 = vshll.u32 %v415, 16
      %v450 = vrot.slane %v448, 5
      %v451 = vsel %vm427, %v446, %v450
      %v453 = vshrl.u32 %v366, 16
      %v455 = vrot.slane %v453, 4
      %v456 = vshll.u32 %v366, 16
      %v458 = vrot.slane %v456, 5
      %v459 = vor.u32 %v455, %v458
      %v460 = vrot.slane %v459, 4
      %v462 = vshll.u32 %v367, 16
      %v464 = vrot.slane %v462, 5
      %v465 = vsel %vm427, %v460, %v464
      %v466 = vshrl.u32 %v367, 16
      %v468 = vrot.slane %v466, 4
      %v469 = vor.u32 %v468, %v464
      %v470 = vrot.slane %v469, 4
      %v472 = vshll.u32 %v416, 16
      %v474 = vrot.slane %v472, 5
      %v475 = vsel %vm427, %v470, %v474
      %v477 = vshrl.u32 %v368, 16
      %v479 = vrot.slane %v477, 4
      %v480 = vshll.u32 %v368, 16
      %v482 = vrot.slane %v480, 5
      %v483 = vor.u32 %v479, %v482
      %v484 = vrot.slane %v483, 4
      %v486 = vshll.u32 %v369, 16
      %v488 = vrot.slane %v486, 5
      %v489 = vsel %vm427, %v484, %v488
      %v490 = vshrl.u32 %v369, 16
      %v492 = vrot.slane %v490, 4
      %v493 = vor.u32 %v492, %v488
      %v494 = vrot.slane %v493, 4
      %v496 = vshll.u32 %v417, 16
      %v498 = vrot.slane %v496, 5
      %v499 = vsel %vm427, %v494, %v498
      %v501 = vshrl.u32 %v370, 16
      %v503 = vrot.slane %v501, 4
      %v504 = vshll.u32 %v370, 16
      %v506 = vrot.slane %v504, 5
      %v507 = vor.u32 %v503, %v506
      %v508 = vrot.slane %v507, 4
      %v510 = vshll.u32 %v371, 16
      %v512 = vrot.slane %v510, 5
      %v513 = vsel %vm427, %v508, %v512
      %v514 = vshrl.u32 %v371, 16
      %v516 = vrot.slane %v514, 4
      %v517 = vor.u32 %v516, %v512
      %v518 = vrot.slane %v517, 4
      %v520 = vshll.u32 %v418, 16
      %v522 = vrot.slane %v520, 5
      %v523 = vsel %vm427, %v518, %v522
      %v525 = vshrl.u32 %v372, 16
      %v527 = vrot.slane %v525, 4
      %v528 = vshll.u32 %v372, 16
      %v530 = vrot.slane %v528, 5
      %v531 = vor.u32 %v527, %v530
      %v532 = vrot.slane %v531, 4
      %v534 = vshll.u32 %v373, 16
      %v536 = vrot.slane %v534, 5
      %v537 = vsel %vm427, %v532, %v536
      %v538 = vshrl.u32 %v373, 16
      %v540 = vrot.slane %v538, 4
      %v541 = vor.u32 %v540, %v536
      %v542 = vrot.slane %v541, 4
      %v544 = vshll.u32 %v419, 16
      %v546 = vrot.slane %v544, 5
      %v547 = vsel %vm427, %v542, %v546
      %v549 = vshrl.u32 %v374, 16
      %v551 = vrot.slane %v549, 4
      %v552 = vshll.u32 %v374, 16
      %v554 = vrot.slane %v552, 5
      %v555 = vor.u32 %v551, %v554
      %v556 = vrot.slane %v555, 4
      %v558 = vshll.u32 %v375, 16
      %v560 = vrot.slane %v558, 5
      %v561 = vsel %vm427, %v556, %v560
      %v562 = vshrl.u32 %v375, 16
      %v564 = vrot.slane %v562, 4
      %v565 = vor.u32 %v564, %v560
      %v566 = vrot.slane %v565, 4
      %v568 = vshll.u32 %v420, 16
      %v570 = vrot.slane %v568, 5
      %v571 = vsel %vm427, %v566, %v570
      %v573 = vshrl.u32 %v376, 16
      %v575 = vrot.slane %v573, 4
      %v576 = vshll.u32 %v376, 16
      %v578 = vrot.slane %v576, 5
      %v579 = vor.u32 %v575, %v578
      %v580 = vrot.slane %v579, 4
      %v582 = vshll.u32 %v377, 16
      %v584 = vrot.slane %v582, 5
      %v585 = vsel %vm427, %v580, %v584
      %v586 = vshrl.u32 %v377, 16
      %v588 = vrot.slane %v586, 4
      %v589 = vor.u32 %v588, %v584
      %v590 = vrot.slane %v589, 4
      %v592 = vshll.u32 %v421, 16
      %v594 = vrot.slane %v592, 5
      %v595 = vsel %vm427, %v590, %v594
      %v597 = vshrl.u32 %v378, 16
      %v599 = vrot.slane %v597, 4
      %v600 = vshll.u32 %v378, 16
      %v602 = vrot.slane %v600, 5
      %v603 = vor.u32 %v599, %v602
      %v604 = vrot.slane %v603, 4
      %v606 = vshll.u32 %v379, 16
      %v608 = vrot.slane %v606, 5
      %v609 = vsel %vm427, %v604, %v608
      %v610 = vshrl.u32 %v379, 16
      %v612 = vrot.slane %v610, 4
      %v613 = vor.u32 %v612, %v608
      %v614 = vrot.slane %v613, 4
      %v616 = vshll.u32 %v422, 16
      %v618 = vrot.slane %v616, 5
      %v619 = vsel %vm427, %v614, %v618
      %v621 = vshrl.u32 %v380, 16
      %v623 = vrot.slane %v621, 4
      %v624 = vshll.u32 %v380, 16
      %v626 = vrot.slane %v624, 5
      %v627 = vor.u32 %v623, %v626
      %v628 = vrot.slane %v627, 4
      %v630 = vshll.u32 %v381, 16
      %v632 = vrot.slane %v630, 5
      %v633 = vsel %vm427, %v628, %v632
      %v634 = vshrl.u32 %v381, 16
      %v636 = vrot.slane %v634, 4
      %v637 = vor.u32 %v636, %v632
      %v638 = vrot.slane %v637, 4
      %v640 = vshll.u32 %v423, 16
      %v642 = vrot.slane %v640, 5
      %v643 = vsel %vm427, %v638, %v642
      %v645 = vshrl.u32 %v382, 16
      %v647 = vrot.slane %v645, 4
      %v648 = vshll.u32 %v382, 16
      %v650 = vrot.slane %v648, 5
      %v651 = vor.u32 %v647, %v650
      %v652 = vrot.slane %v651, 4
      %v654 = vshll.u32 %v383, 16
      %v656 = vrot.slane %v654, 5
      %v657 = vsel %vm427, %v652, %v656
      %v658 = vshrl.u32 %v383, 16
      %v660 = vrot.slane %v658, 4
      %v661 = vor.u32 %v660, %v656
      %v662 = vrot.slane %v661, 4
      %v664 = vshll.u32 %v424, 16
      %v666 = vrot.slane %v664, 5
      %v667 = vsel %vm427, %v662, %v666
      %s668 = scalar_lea.vmem %s1, 4
      %v669 = vld [vmem:[%s668] sm:$0xf]
      %v670 = vunpack.c.l.b16 %v441
      %v671 = vunpack.c.l.b16 %v451
      %v672 = vunpack.c.l.b16 %v465
      %v673 = vunpack.c.l.b16 %v475
      %v674 = vunpack.c.l.b16 %v489
      %v675 = vunpack.c.l.b16 %v499
      %v676 = vunpack.c.l.b16 %v513
      %v677 = vunpack.c.l.b16 %v523
      %v678 = vunpack.c.l.b16 %v537
      %v679 = vunpack.c.l.b16 %v547
      %v680 = vunpack.c.l.b16 %v561
      %v681 = vunpack.c.l.b16 %v571
      %v682 = vunpack.c.l.b16 %v585
      %v683 = vunpack.c.l.b16 %v595
      %v684 = vunpack.c.l.b16 %v609
      %v685 = vunpack.c.l.b16 %v619
      %v686 = vunpack.c.l.b16 %v633
      %v687 = vunpack.c.l.b16 %v643
      %v688 = vunpack.c.l.b16 %v657
      %v689 = vunpack.c.l.b16 %v667
      %v690 = vpack.c.b16 %v671, %v670
      %v691 = vpack.c.b16 %v673, %v672
      %v692 = vpack.c.b16 %v675, %v674
      %v693 = vpack.c.b16 %v677, %v676
      %v694 = vpack.c.b16 %v679, %v678
      %v695 = vpack.c.b16 %v681, %v680
      %v696 = vpack.c.b16 %v683, %v682
      %v697 = vpack.c.b16 %v685, %v684
      %v698 = vpack.c.b16 %v687, %v686
      %v699 = vpack.c.b16 %v689, %v688
      %vm700 = vcmask 64512
      %v702 = vsel %vm700, %v690, 0
      %v705 = vsel %vm700, %v691, 0
      %v708 = vsel %vm700, %v692, 0
      %v711 = vsel %vm700, %v693, 0
      %v714 = vsel %vm700, %v694, 0
      %v717 = vsel %vm700, %v695, 0
      %v720 = vsel %vm700, %v696, 0
      %v723 = vsel %vm700, %v697, 0
      %v726 = vsel %vm700, %v698, 0
      %v729 = vsel %vm700, %v699, 0
      %vm731 = vcmask 1043456
      %v733 = vsel %vm731, %v669, 0
      %735 = vmatpush.bf16.msra.mxu0 0
      %736 = vmatpush.bf16.msra.mxu0 0
      %737 = vmatpush.bf16.msra.mxu0 0
      %738 = vmatpush.bf16.msra.mxu0 0
      %739 = vmatpush.bf16.msra.mxu0 0
      %740 = vmatpush.bf16.msra.mxu0 0
      %741 = vmatpush.bf16.msra.mxu0 0
      %742 = vmatpush.bf16.msra.mxu0 %v733
      %743 = vmatmul.bf16.gmra.mxu0 %v702
      %v744 = vpop.f32.mrf.mxu0
      %v745 = vadd.f32 0.0, %v744
      %v746 = vpop.f32.mrf.mxu0
      %v747 = vadd.f32 0.0, %v746
      %748 = vmatmul.bf16.gmra.mxu0 %v705
      %v749 = vpop.f32.mrf.mxu0
      %v750 = vadd.f32 0.0, %v749
      %v751 = vpop.f32.mrf.mxu0
      %v752 = vadd.f32 0.0, %v751
      %753 = vmatmul.bf16.gmra.mxu0 %v708
      %v754 = vpop.f32.mrf.mxu0
      %v755 = vadd.f32 0.0, %v754
      %v756 = vpop.f32.mrf.mxu0
      %v757 = vadd.f32 0.0, %v756
      %758 = vmatmul.bf16.gmra.mxu0 %v711
      %v759 = vpop.f32.mrf.mxu0
      %v760 = vadd.f32 0.0, %v759
      %v761 = vpop.f32.mrf.mxu0
      %v762 = vadd.f32 0.0, %v761
      %763 = vmatmul.bf16.gmra.mxu0 %v714
      %v764 = vpop.f32.mrf.mxu0
      %v765 = vadd.f32 0.0, %v764
      %v766 = vpop.f32.mrf.mxu0
      %v767 = vadd.f32 0.0, %v766
      %768 = vmatmul.bf16.gmra.mxu0 %v717
      %v769 = vpop.f32.mrf.mxu0
      %v770 = vadd.f32 0.0, %v769
      %v771 = vpop.f32.mrf.mxu0
      %v772 = vadd.f32 0.0, %v771
      %773 = vmatmul.bf16.gmra.mxu0 %v720
      %v774 = vpop.f32.mrf.mxu0
      %v775 = vadd.f32 0.0, %v774
      %v776 = vpop.f32.mrf.mxu0
      %v777 = vadd.f32 0.0, %v776
      %778 = vmatmul.bf16.gmra.mxu0 %v723
      %v779 = vpop.f32.mrf.mxu0
      %v780 = vadd.f32 0.0, %v779
      %v781 = vpop.f32.mrf.mxu0
      %v782 = vadd.f32 0.0, %v781
      %783 = vmatmul.bf16.gmra.mxu0 %v726
      %v784 = vpop.f32.mrf.mxu0
      %v785 = vadd.f32 0.0, %v784
      %v786 = vpop.f32.mrf.mxu0
      %v787 = vadd.f32 0.0, %v786
      %788 = vmatmul.bf16.gmra.mxu0 %v729
      %v789 = vpop.f32.mrf.mxu0
      %v790 = vadd.f32 0.0, %v789
      %v791 = vpop.f32.mrf.mxu0
      %v792 = vadd.f32 0.0, %v791
      %793 = vdwg.mxu0
      %v814 = vunpack.c.l.b16 %v364
      %v815 = vunpack.c.l.b16 %v365
      %v816 = vunpack.c.l.b16 %v366
      %v817 = vunpack.c.l.b16 %v367
      %v818 = vunpack.c.l.b16 %v368
      %v819 = vunpack.c.l.b16 %v369
      %v820 = vunpack.c.l.b16 %v370
      %v821 = vunpack.c.l.b16 %v371
      %v822 = vunpack.c.l.b16 %v372
      %v823 = vunpack.c.l.b16 %v373
      %v824 = vunpack.c.l.b16 %v374
      %v825 = vunpack.c.l.b16 %v375
      %v826 = vunpack.c.l.b16 %v376
      %v827 = vunpack.c.l.b16 %v377
      %v828 = vunpack.c.l.b16 %v378
      %v829 = vunpack.c.l.b16 %v379
      %v830 = vunpack.c.l.b16 %v380
      %v831 = vunpack.c.l.b16 %v381
      %v832 = vunpack.c.l.b16 %v382
      %v833 = vunpack.c.l.b16 %v383
      %v834 = vpack.c.b16 %v815, %v814
      %v835 = vpack.c.b16 %v817, %v816
      %v836 = vpack.c.b16 %v819, %v818
      %v837 = vpack.c.b16 %v821, %v820
      %v838 = vpack.c.b16 %v823, %v822
      %v839 = vpack.c.b16 %v825, %v824
      %v840 = vpack.c.b16 %v827, %v826
      %v841 = vpack.c.b16 %v829, %v828
      %v842 = vpack.c.b16 %v831, %v830
      %v843 = vpack.c.b16 %v833, %v832
      %v845 = vsel %vm700, %v834, 0
      %v848 = vsel %vm700, %v835, 0
      %v851 = vsel %vm700, %v836, 0
      %v854 = vsel %vm700, %v837, 0
      %v857 = vsel %vm700, %v838, 0
      %v860 = vsel %vm700, %v839, 0
      %v863 = vsel %vm700, %v840, 0
      %v866 = vsel %vm700, %v841, 0
      %v869 = vsel %vm700, %v842, 0
      %v872 = vsel %vm700, %v843, 0
      %v875 = vsel %vm731, %v384, 0
      %877 = vmatpush.bf16.msra.mxu0 0
      %878 = vmatpush.bf16.msra.mxu0 0
      %879 = vmatpush.bf16.msra.mxu0 0
      %880 = vmatpush.bf16.msra.mxu0 0
      %881 = vmatpush.bf16.msra.mxu0 0
      %882 = vmatpush.bf16.msra.mxu0 0
      %883 = vmatpush.bf16.msra.mxu0 0
      %884 = vmatpush.bf16.msra.mxu0 %v875
      %885 = vmatmul.bf16.gmra.mxu0 %v845
      %v886 = vpop.f32.mrf.mxu0
      %v887 = vadd.f32 %v745, %v886
      %v888 = vpop.f32.mrf.mxu0
      %v889 = vadd.f32 %v747, %v888
      %890 = vmatmul.bf16.gmra.mxu0 %v848
      %v891 = vpop.f32.mrf.mxu0
      %v892 = vadd.f32 %v750, %v891
      %v893 = vpop.f32.mrf.mxu0
      %v894 = vadd.f32 %v752, %v893
      %895 = vmatmul.bf16.gmra.mxu0 %v851
      %v896 = vpop.f32.mrf.mxu0
      %v897 = vadd.f32 %v755, %v896
      %v898 = vpop.f32.mrf.mxu0
      %v899 = vadd.f32 %v757, %v898
      %900 = vmatmul.bf16.gmra.mxu0 %v854
      %v901 = vpop.f32.mrf.mxu0
      %v902 = vadd.f32 %v760, %v901
      %v903 = vpop.f32.mrf.mxu0
      %v904 = vadd.f32 %v762, %v903
      %905 = vmatmul.bf16.gmra.mxu0 %v857
      %v906 = vpop.f32.mrf.mxu0
      %v907 = vadd.f32 %v765, %v906
      %v908 = vpop.f32.mrf.mxu0
      %v909 = vadd.f32 %v767, %v908
      %910 = vmatmul.bf16.gmra.mxu0 %v860
      %v911 = vpop.f32.mrf.mxu0
      %v912 = vadd.f32 %v770, %v911
      %v913 = vpop.f32.mrf.mxu0
      %v914 = vadd.f32 %v772, %v913
      %915 = vmatmul.bf16.gmra.mxu0 %v863
      %v916 = vpop.f32.mrf.mxu0
      %v917 = vadd.f32 %v775, %v916
      %v918 = vpop.f32.mrf.mxu0
      %v919 = vadd.f32 %v777, %v918
      %920 = vmatmul.bf16.gmra.mxu0 %v866
      %v921 = vpop.f32.mrf.mxu0
      %v922 = vadd.f32 %v780, %v921
      %v923 = vpop.f32.mrf.mxu0
      %v924 = vadd.f32 %v782, %v923
      %925 = vmatmul.bf16.gmra.mxu0 %v869
      %v926 = vpop.f32.mrf.mxu0
      %v927 = vadd.f32 %v785, %v926
      %v928 = vpop.f32.mrf.mxu0
      %v929 = vadd.f32 %v787, %v928
      %930 = vmatmul.bf16.gmra.mxu0 %v872
      %v931 = vpop.f32.mrf.mxu0
      %v932 = vadd.f32 %v790, %v931
      %v933 = vpop.f32.mrf.mxu0
      %v934 = vadd.f32 %v792, %v933
      %935 = vdwg.mxu0
      %v936 = vld [vmem:[%s280] sm:$0xe]
      %v937 = vld [vmem:[%s280 + $0xc] sm:$0xe]
      %v938 = vld [vmem:[%s280 + $0x18] sm:$0xe]
      %v939 = vld [vmem:[%s280 + $0x24] sm:$0xe]
      %v940 = vld [vmem:[%s280 + $0x30] sm:$0xe]
      %v941 = vld [vmem:[%s280 + $0x3c] sm:$0xe]
      %v942 = vld [vmem:[%s280 + $0x48] sm:$0xe]
      %v943 = vld [vmem:[%s280 + $0x54] sm:$0xe]
      %v944 = vld [vmem:[%s280 + $0x60] sm:$0xe]
      %v945 = vld [vmem:[%s280 + $0x6c] sm:$0xe]
      %v946 = vunpack.c.l.bf16 %v936
      %v947 = vunpack.c.l.bf16 %v937
      %v948 = vunpack.c.l.bf16 %v938
      %v949 = vunpack.c.l.bf16 %v939
      %v950 = vunpack.c.l.bf16 %v940
      %v951 = vunpack.c.l.bf16 %v941
      %v952 = vunpack.c.l.bf16 %v942
      %v953 = vunpack.c.l.bf16 %v943
      %v954 = vunpack.c.l.bf16 %v944
      %v955 = vunpack.c.l.bf16 %v945
      %v956 = vmax.f32 %v946, 0.0
      %v957 = vmax.f32 %v947, 0.0
      %v958 = vmax.f32 %v948, 0.0
      %v959 = vmax.f32 %v949, 0.0
      %v960 = vmax.f32 %v950, 0.0
      %v961 = vmax.f32 %v951, 0.0
      %v962 = vmax.f32 %v952, 0.0
      %v963 = vmax.f32 %v953, 0.0
      %v964 = vmax.f32 %v954, 0.0
      %v965 = vmax.f32 %v955, 0.0
      %v966 = vpack.c.bf16 %v956, %v956
      %v967 = vpack.c.bf16 %v957, %v957
      %v968 = vpack.c.bf16 %v958, %v958
      %v969 = vpack.c.bf16 %v959, %v959
      %v970 = vpack.c.bf16 %v960, %v960
      %v971 = vpack.c.bf16 %v961, %v961
      %v972 = vpack.c.bf16 %v962, %v962
      %v973 = vpack.c.bf16 %v963, %v963
      %v974 = vpack.c.bf16 %v964, %v964
      %v975 = vpack.c.bf16 %v965, %v965
      %vm996 = vcmask 1042432
      %vm997 = vcmask 1046532
      %vm998 = vmor %vm996, %vm997
      %v999 = vrot.slane %v966, 5
      %v1000 = vrot.slane %v999, 4
      %v1001 = vrot.slane %v365, 5
      %v1002 = vsel %vm998, %v1000, %v1001
      %v1003 = vrot.slane %v1001, 4
      %v1004 = vrot.slane %v415, 5
      %v1005 = vsel %vm998, %v1003, %v1004
      %v1006 = vrot.slane %v967, 5
      %v1007 = vrot.slane %v1006, 4
      %v1008 = vrot.slane %v367, 5
      %v1009 = vsel %vm998, %v1007, %v1008
      %v1010 = vrot.slane %v1008, 4
      %v1011 = vrot.slane %v416, 5
      %v1012 = vsel %vm998, %v1010, %v1011
      %v1013 = vrot.slane %v968, 5
      %v1014 = vrot.slane %v1013, 4
      %v1015 = vrot.slane %v369, 5
      %v1016 = vsel %vm998, %v1014, %v1015
      %v1017 = vrot.slane %v1015, 4
      %v1018 = vrot.slane %v417, 5
      %v1019 = vsel %vm998, %v1017, %v1018
      %v1020 = vrot.slane %v969, 5
      %v1021 = vrot.slane %v1020, 4
      %v1022 = vrot.slane %v371, 5
      %v1023 = vsel %vm998, %v1021, %v1022
      %v1024 = vrot.slane %v1022, 4
      %v1025 = vrot.slane %v418, 5
      %v1026 = vsel %vm998, %v1024, %v1025
      %v1027 = vrot.slane %v970, 5
      %v1028 = vrot.slane %v1027, 4
      %v1029 = vrot.slane %v373, 5
      %v1030 = vsel %vm998, %v1028, %v1029
      %v1031 = vrot.slane %v1029, 4
      %v1032 = vrot.slane %v419, 5
      %v1033 = vsel %vm998, %v1031, %v1032
      %v1034 = vrot.slane %v971, 5
      %v1035 = vrot.slane %v1034, 4
      %v1036 = vrot.slane %v375, 5
      %v1037 = vsel %vm998, %v1035, %v1036
      %v1038 = vrot.slane %v1036, 4
      %v1039 = vrot.slane %v420, 5
      %v1040 = vsel %vm998, %v1038, %v1039
      %v1041 = vrot.slane %v972, 5
      %v1042 = vrot.slane %v1041, 4
      %v1043 = vrot.slane %v377, 5
      %v1044 = vsel %vm998, %v1042, %v1043
      %v1045 = vrot.slane %v1043, 4
      %v1046 = vrot.slane %v421, 5
      %v1047 = vsel %vm998, %v1045, %v1046
      %v1048 = vrot.slane %v973, 5
      %v1049 = vrot.slane %v1048, 4
      %v1050 = vrot.slane %v379, 5
      %v1051 = vsel %vm998, %v1049, %v1050
      %v1052 = vrot.slane %v1050, 4
      %v1053 = vrot.slane %v422, 5
      %v1054 = vsel %vm998, %v1052, %v1053
      %v1055 = vrot.slane %v974, 5
      %v1056 = vrot.slane %v1055, 4
      %v1057 = vrot.slane %v381, 5
      %v1058 = vsel %vm998, %v1056, %v1057
      %v1059 = vrot.slane %v1057, 4
      %v1060 = vrot.slane %v423, 5
      %v1061 = vsel %vm998, %v1059, %v1060
      %v1062 = vrot.slane %v975, 5
      %v1063 = vrot.slane %v1062, 4
      %v1064 = vrot.slane %v383, 5
      %v1065 = vsel %vm998, %v1063, %v1064
      %v1066 = vrot.slane %v1064, 4
      %v1067 = vrot.slane %v424, 5
      %v1068 = vsel %vm998, %v1066, %v1067
      %s1069 = scalar_lea.vmem %s1, 8
      %v1070 = vld [vmem:[%s1069] sm:$0xf]
      %v1071 = vunpack.c.l.b16 %v1002
      %v1072 = vunpack.c.l.b16 %v1005
      %v1073 = vunpack.c.l.b16 %v1009
      %v1074 = vunpack.c.l.b16 %v1012
      %v1075 = vunpack.c.l.b16 %v1016
      %v1076 = vunpack.c.l.b16 %v1019
      %v1077 = vunpack.c.l.b16 %v1023
      %v1078 = vunpack.c.l.b16 %v1026
      %v1079 = vunpack.c.l.b16 %v1030
      %v1080 = vunpack.c.l.b16 %v1033
      %v1081 = vunpack.c.l.b16 %v1037
      %v1082 = vunpack.c.l.b16 %v1040
      %v1083 = vunpack.c.l.b16 %v1044
      %v1084 = vunpack.c.l.b16 %v1047
      %v1085 = vunpack.c.l.b16 %v1051
      %v1086 = vunpack.c.l.b16 %v1054
      %v1087 = vunpack.c.l.b16 %v1058
      %v1088 = vunpack.c.l.b16 %v1061
      %v1089 = vunpack.c.l.b16 %v1065
      %v1090 = vunpack.c.l.b16 %v1068
      %v1091 = vpack.c.b16 %v1072, %v1071
      %v1092 = vpack.c.b16 %v1074, %v1073
      %v1093 = vpack.c.b16 %v1076, %v1075
      %v1094 = vpack.c.b16 %v1078, %v1077
      %v1095 = vpack.c.b16 %v1080, %v1079
      %v1096 = vpack.c.b16 %v1082, %v1081
      %v1097 = vpack.c.b16 %v1084, %v1083
      %v1098 = vpack.c.b16 %v1086, %v1085
      %v1099 = vpack.c.b16 %v1088, %v1087
      %v1100 = vpack.c.b16 %v1090, %v1089
      %v1102 = vsel %vm700, %v1091, 0
      %v1105 = vsel %vm700, %v1092, 0
      %v1108 = vsel %vm700, %v1093, 0
      %v1111 = vsel %vm700, %v1094, 0
      %v1114 = vsel %vm700, %v1095, 0
      %v1117 = vsel %vm700, %v1096, 0
      %v1120 = vsel %vm700, %v1097, 0
      %v1123 = vsel %vm700, %v1098, 0
      %v1126 = vsel %vm700, %v1099, 0
      %v1129 = vsel %vm700, %v1100, 0
      %v1132 = vsel %vm731, %v1070, 0
      %1134 = vmatpush.bf16.msra.mxu0 0
      %1135 = vmatpush.bf16.msra.mxu0 0
      %1136 = vmatpush.bf16.msra.mxu0 0
      %1137 = vmatpush.bf16.msra.mxu0 0
      %1138 = vmatpush.bf16.msra.mxu0 0
      %1139 = vmatpush.bf16.msra.mxu0 0
      %1140 = vmatpush.bf16.msra.mxu0 0
      %1141 = vmatpush.bf16.msra.mxu0 %v1132
      %1142 = vmatmul.bf16.gmra.mxu0 %v1102
      %v1143 = vpop.f32.mrf.mxu0
      %v1144 = vadd.f32 0.0, %v1143
      %v1145 = vpop.f32.mrf.mxu0
      %v1146 = vadd.f32 0.0, %v1145
      %1147 = vmatmul.bf16.gmra.mxu0 %v1105
      %v1148 = vpop.f32.mrf.mxu0
      %v1149 = vadd.f32 0.0, %v1148
      %v1150 = vpop.f32.mrf.mxu0
      %v1151 = vadd.f32 0.0, %v1150
      %1152 = vmatmul.bf16.gmra.mxu0 %v1108
      %v1153 = vpop.f32.mrf.mxu0
      %v1154 = vadd.f32 0.0, %v1153
      %v1155 = vpop.f32.mrf.mxu0
      %v1156 = vadd.f32 0.0, %v1155
      %1157 = vmatmul.bf16.gmra.mxu0 %v1111
      %v1158 = vpop.f32.mrf.mxu0
      %v1159 = vadd.f32 0.0, %v1158
      %v1160 = vpop.f32.mrf.mxu0
      %v1161 = vadd.f32 0.0, %v1160
      %1162 = vmatmul.bf16.gmra.mxu0 %v1114
      %v1163 = vpop.f32.mrf.mxu0
      %v1164 = vadd.f32 0.0, %v1163
      %v1165 = vpop.f32.mrf.mxu0
      %v1166 = vadd.f32 0.0, %v1165
      %1167 = vmatmul.bf16.gmra.mxu0 %v1117
      %v1168 = vpop.f32.mrf.mxu0
      %v1169 = vadd.f32 0.0, %v1168
      %v1170 = vpop.f32.mrf.mxu0
      %v1171 = vadd.f32 0.0, %v1170
      %1172 = vmatmul.bf16.gmra.mxu0 %v1120
      %v1173 = vpop.f32.mrf.mxu0
      %v1174 = vadd.f32 0.0, %v1173
      %v1175 = vpop.f32.mrf.mxu0
      %v1176 = vadd.f32 0.0, %v1175
      %1177 = vmatmul.bf16.gmra.mxu0 %v1123
      %v1178 = vpop.f32.mrf.mxu0
      %v1179 = vadd.f32 0.0, %v1178
      %v1180 = vpop.f32.mrf.mxu0
      %v1181 = vadd.f32 0.0, %v1180
      %1182 = vmatmul.bf16.gmra.mxu0 %v1126
      %v1183 = vpop.f32.mrf.mxu0
      %v1184 = vadd.f32 0.0, %v1183
      %v1185 = vpop.f32.mrf.mxu0
      %v1186 = vadd.f32 0.0, %v1185
      %1187 = vmatmul.bf16.gmra.mxu0 %v1129
      %v1188 = vpop.f32.mrf.mxu0
      %v1189 = vadd.f32 0.0, %v1188
      %v1190 = vpop.f32.mrf.mxu0
      %v1191 = vadd.f32 0.0, %v1190
      %1192 = vdwg.mxu0
      %v1193 = vadd.f32 %v887, %v1144
      %v1194 = vadd.f32 %v889, %v1146
      %v1195 = vadd.f32 %v892, %v1149
      %v1196 = vadd.f32 %v894, %v1151
      %v1197 = vadd.f32 %v897, %v1154
      %v1198 = vadd.f32 %v899, %v1156
      %v1199 = vadd.f32 %v902, %v1159
      %v1200 = vadd.f32 %v904, %v1161
      %v1201 = vadd.f32 %v907, %v1164
      %v1202 = vadd.f32 %v909, %v1166
      %v1203 = vadd.f32 %v912, %v1169
      %v1204 = vadd.f32 %v914, %v1171
      %v1205 = vadd.f32 %v917, %v1174
      %v1206 = vadd.f32 %v919, %v1176
      %v1207 = vadd.f32 %v922, %v1179
      %v1208 = vadd.f32 %v924, %v1181
      %v1209 = vadd.f32 %v927, %v1184
      %v1210 = vadd.f32 %v929, %v1186
      %v1211 = vadd.f32 %v932, %v1189
      %v1212 = vadd.f32 %v934, %v1191
      %s1213 = scalar_lea.vmem %s280, 12
      %v1214 = vld [vmem:[%s1213] sm:$0xf]
      %v1215 = vld [vmem:[%s1213 + $0x4] sm:$0xf]
      %v1216 = vld [vmem:[%s1213 + $0xc] sm:$0xf]
      %v1217 = vld [vmem:[%s1213 + $0x10] sm:$0xf]
      %v1218 = vld [vmem:[%s1213 + $0x18] sm:$0xf]
      %v1219 = vld [vmem:[%s1213 + $0x1c] sm:$0xf]
      %v1220 = vld [vmem:[%s1213 + $0x24] sm:$0xf]
      %v1221 = vld [vmem:[%s1213 + $0x28] sm:$0xf]
      %v1222 = vld [vmem:[%s1213 + $0x30] sm:$0xf]
      %v1223 = vld [vmem:[%s1213 + $0x34] sm:$0xf]
      %v1224 = vld [vmem:[%s1213 + $0x3c] sm:$0xf]
      %v1225 = vld [vmem:[%s1213 + $0x40] sm:$0xf]
      %v1226 = vld [vmem:[%s1213 + $0x48] sm:$0xf]
      %v1227 = vld [vmem:[%s1213 + $0x4c] sm:$0xf]
      %v1228 = vld [vmem:[%s1213 + $0x54] sm:$0xf]
      %v1229 = vld [vmem:[%s1213 + $0x58] sm:$0xf]
      %v1230 = vld [vmem:[%s1213 + $0x60] sm:$0xf]
      %v1231 = vld [vmem:[%s1213 + $0x64] sm:$0xf]
      %v1232 = vld [vmem:[%s1213 + $0x6c] sm:$0xf]
      %v1233 = vld [vmem:[%s1213 + $0x70] sm:$0xf]
      %v1234 = vunpack.c.l.bf16 %v1214
      %v1235 = vunpack.c.l.bf16 %v1215
      %v1236 = vunpack.c.l.bf16 %v1216
      %v1237 = vunpack.c.l.bf16 %v1217
      %v1238 = vunpack.c.l.bf16 %v1218
      %v1239 = vunpack.c.l.bf16 %v1219
      %v1240 = vunpack.c.l.bf16 %v1220
      %v1241 = vunpack.c.l.bf16 %v1221
      %v1242 = vunpack.c.l.bf16 %v1222
      %v1243 = vunpack.c.l.bf16 %v1223
      %v1244 = vunpack.c.l.bf16 %v1224
      %v1245 = vunpack.c.l.bf16 %v1225
      %v1246 = vunpack.c.l.bf16 %v1226
      %v1247 = vunpack.c.l.bf16 %v1227
      %v1248 = vunpack.c.l.bf16 %v1228
      %v1249 = vunpack.c.l.bf16 %v1229
      %v1250 = vunpack.c.l.bf16 %v1230
      %v1251 = vunpack.c.l.bf16 %v1231
      %v1252 = vunpack.c.l.bf16 %v1232
      %v1253 = vunpack.c.l.bf16 %v1233
      %v1254 = vmax.f32 %v1234, 0.0
      %v1255 = vmax.f32 %v1235, 0.0
      %v1256 = vmax.f32 %v1236, 0.0
      %v1257 = vmax.f32 %v1237, 0.0
      %v1258 = vmax.f32 %v1238, 0.0
      %v1259 = vmax.f32 %v1239, 0.0
      %v1260 = vmax.f32 %v1240, 0.0
      %v1261 = vmax.f32 %v1241, 0.0
      %v1262 = vmax.f32 %v1242, 0.0
      %v1263 = vmax.f32 %v1243, 0.0
      %v1264 = vmax.f32 %v1244, 0.0
      %v1265 = vmax.f32 %v1245, 0.0
      %v1266 = vmax.f32 %v1246, 0.0
      %v1267 = vmax.f32 %v1247, 0.0
      %v1268 = vmax.f32 %v1248, 0.0
      %v1269 = vmax.f32 %v1249, 0.0
      %v1270 = vmax.f32 %v1250, 0.0
      %v1271 = vmax.f32 %v1251, 0.0
      %v1272 = vmax.f32 %v1252, 0.0
      %v1273 = vmax.f32 %v1253, 0.0
      %v1274 = vpack.c.bf16 %v1254, %v1254
      %v1275 = vpack.c.bf16 %v1255, %v1255
      %v1276 = vpack.c.bf16 %v1256, %v1256
      %v1277 = vpack.c.bf16 %v1257, %v1257
      %v1278 = vpack.c.bf16 %v1258, %v1258
      %v1279 = vpack.c.bf16 %v1259, %v1259
      %v1280 = vpack.c.bf16 %v1260, %v1260
      %v1281 = vpack.c.bf16 %v1261, %v1261
      %v1282 = vpack.c.bf16 %v1262, %v1262
      %v1283 = vpack.c.bf16 %v1263, %v1263
      %v1284 = vpack.c.bf16 %v1264, %v1264
      %v1285 = vpack.c.bf16 %v1265, %v1265
      %v1286 = vpack.c.bf16 %v1266, %v1266
      %v1287 = vpack.c.bf16 %v1267, %v1267
      %v1288 = vpack.c.bf16 %v1268, %v1268
      %v1289 = vpack.c.bf16 %v1269, %v1269
      %v1290 = vpack.c.bf16 %v1270, %v1270
      %v1291 = vpack.c.bf16 %v1271, %v1271
      %v1292 = vpack.c.bf16 %v1272, %v1272
      %v1293 = vpack.c.bf16 %v1273, %v1273
      %s1294 = scalar_lea.vmem %s1, 12
      %v1295 = vld [vmem:[%s1294] sm:$0xf]
      %v1316 = vunpack.c.l.b16 %v1274
      %v1317 = vunpack.c.l.b16 %v1275
      %v1318 = vunpack.c.l.b16 %v1276
      %v1319 = vunpack.c.l.b16 %v1277
      %v1320 = vunpack.c.l.b16 %v1278
      %v1321 = vunpack.c.l.b16 %v1279
      %v1322 = vunpack.c.l.b16 %v1280
      %v1323 = vunpack.c.l.b16 %v1281
      %v1324 = vunpack.c.l.b16 %v1282
      %v1325 = vunpack.c.l.b16 %v1283
      %v1326 = vunpack.c.l.b16 %v1284
      %v1327 = vunpack.c.l.b16 %v1285
      %v1328 = vunpack.c.l.b16 %v1286
      %v1329 = vunpack.c.l.b16 %v1287
      %v1330 = vunpack.c.l.b16 %v1288
      %v1331 = vunpack.c.l.b16 %v1289
      %v1332 = vunpack.c.l.b16 %v1290
      %v1333 = vunpack.c.l.b16 %v1291
      %v1334 = vunpack.c.l.b16 %v1292
      %v1335 = vunpack.c.l.b16 %v1293
      %v1336 = vpack.c.b16 %v1317, %v1316
      %v1337 = vpack.c.b16 %v1319, %v1318
      %v1338 = vpack.c.b16 %v1321, %v1320
      %v1339 = vpack.c.b16 %v1323, %v1322
      %v1340 = vpack.c.b16 %v1325, %v1324
      %v1341 = vpack.c.b16 %v1327, %v1326
      %v1342 = vpack.c.b16 %v1329, %v1328
      %v1343 = vpack.c.b16 %v1331, %v1330
      %v1344 = vpack.c.b16 %v1333, %v1332
      %v1345 = vpack.c.b16 %v1335, %v1334
      %v1347 = vsel %vm700, %v1336, 0
      %v1350 = vsel %vm700, %v1337, 0
      %v1353 = vsel %vm700, %v1338, 0
      %v1356 = vsel %vm700, %v1339, 0
      %v1359 = vsel %vm700, %v1340, 0
      %v1362 = vsel %vm700, %v1341, 0
      %v1365 = vsel %vm700, %v1342, 0
      %v1368 = vsel %vm700, %v1343, 0
      %v1371 = vsel %vm700, %v1344, 0
      %v1374 = vsel %vm700, %v1345, 0
      %v1377 = vsel %vm731, %v1295, 0
      %1379 = vmatpush.bf16.msra.mxu0 0
      %1380 = vmatpush.bf16.msra.mxu0 0
      %1381 = vmatpush.bf16.msra.mxu0 0
      %1382 = vmatpush.bf16.msra.mxu0 0
      %1383 = vmatpush.bf16.msra.mxu0 0
      %1384 = vmatpush.bf16.msra.mxu0 0
      %1385 = vmatpush.bf16.msra.mxu0 0
      %1386 = vmatpush.bf16.msra.mxu0 %v1377
      %1387 = vmatmul.bf16.gmra.mxu0 %v1347
      %v1388 = vpop.f32.mrf.mxu0
      %v1389 = vadd.f32 0.0, %v1388
      %v1390 = vpop.f32.mrf.mxu0
      %v1391 = vadd.f32 0.0, %v1390
      %1392 = vmatmul.bf16.gmra.mxu0 %v1350
      %v1393 = vpop.f32.mrf.mxu0
      %v1394 = vadd.f32 0.0, %v1393
      %v1395 = vpop.f32.mrf.mxu0
      %v1396 = vadd.f32 0.0, %v1395
      %1397 = vmatmul.bf16.gmra.mxu0 %v1353
      %v1398 = vpop.f32.mrf.mxu0
      %v1399 = vadd.f32 0.0, %v1398
      %v1400 = vpop.f32.mrf.mxu0
      %v1401 = vadd.f32 0.0, %v1400
      %1402 = vmatmul.bf16.gmra.mxu0 %v1356
      %v1403 = vpop.f32.mrf.mxu0
      %v1404 = vadd.f32 0.0, %v1403
      %v1405 = vpop.f32.mrf.mxu0
      %v1406 = vadd.f32 0.0, %v1405
      %1407 = vmatmul.bf16.gmra.mxu0 %v1359
      %v1408 = vpop.f32.mrf.mxu0
      %v1409 = vadd.f32 0.0, %v1408
      %v1410 = vpop.f32.mrf.mxu0
      %v1411 = vadd.f32 0.0, %v1410
      %1412 = vmatmul.bf16.gmra.mxu0 %v1362
      %v1413 = vpop.f32.mrf.mxu0
      %v1414 = vadd.f32 0.0, %v1413
      %v1415 = vpop.f32.mrf.mxu0
      %v1416 = vadd.f32 0.0, %v1415
      %1417 = vmatmul.bf16.gmra.mxu0 %v1365
      %v1418 = vpop.f32.mrf.mxu0
      %v1419 = vadd.f32 0.0, %v1418
      %v1420 = vpop.f32.mrf.mxu0
      %v1421 = vadd.f32 0.0, %v1420
      %1422 = vmatmul.bf16.gmra.mxu0 %v1368
      %v1423 = vpop.f32.mrf.mxu0
      %v1424 = vadd.f32 0.0, %v1423
      %v1425 = vpop.f32.mrf.mxu0
      %v1426 = vadd.f32 0.0, %v1425
      %1427 = vmatmul.bf16.gmra.mxu0 %v1371
      %v1428 = vpop.f32.mrf.mxu0
      %v1429 = vadd.f32 0.0, %v1428
      %v1430 = vpop.f32.mrf.mxu0
      %v1431 = vadd.f32 0.0, %v1430
      %1432 = vmatmul.bf16.gmra.mxu0 %v1374
      %v1433 = vpop.f32.mrf.mxu0
      %v1434 = vadd.f32 0.0, %v1433
      %v1435 = vpop.f32.mrf.mxu0
      %v1436 = vadd.f32 0.0, %v1435
      %1437 = vdwg.mxu0
      %v1438 = vadd.f32 %v1193, %v1389
      %v1439 = vadd.f32 %v1194, %v1391
      %v1440 = vadd.f32 %v1195, %v1394
      %v1441 = vadd.f32 %v1196, %v1396
      %v1442 = vadd.f32 %v1197, %v1399
      %v1443 = vadd.f32 %v1198, %v1401
      %v1444 = vadd.f32 %v1199, %v1404
      %v1445 = vadd.f32 %v1200, %v1406
      %v1446 = vadd.f32 %v1201, %v1409
      %v1447 = vadd.f32 %v1202, %v1411
      %v1448 = vadd.f32 %v1203, %v1414
      %v1449 = vadd.f32 %v1204, %v1416
      %v1450 = vadd.f32 %v1205, %v1419
      %v1451 = vadd.f32 %v1206, %v1421
      %v1452 = vadd.f32 %v1207, %v1424
      %v1453 = vadd.f32 %v1208, %v1426
      %v1454 = vadd.f32 %v1209, %v1429
      %v1455 = vadd.f32 %v1210, %v1431
      %v1456 = vadd.f32 %v1211, %v1434
      %v1457 = vadd.f32 %v1212, %v1436
      %v1458 = vld [vmem:[%s1213] sm:$0xf]
      %v1459 = vld [vmem:[%s1213 + $0x4] sm:$0xf]
      %v1460 = vld [vmem:[%s1213 + $0x8] sm:$0x1]
      %v1461 = vld [vmem:[%s1213 + $0xc] sm:$0xf]
      %v1462 = vld [vmem:[%s1213 + $0x10] sm:$0xf]
      %v1463 = vld [vmem:[%s1213 + $0x14] sm:$0x1]
      %v1464 = vld [vmem:[%s1213 + $0x18] sm:$0xf]
      %v1465 = vld [vmem:[%s1213 + $0x1c] sm:$0xf]
      %v1466 = vld [vmem:[%s1213 + $0x20] sm:$0x1]
      %v1467 = vld [vmem:[%s1213 + $0x24] sm:$0xf]
      %v1468 = vld [vmem:[%s1213 + $0x28] sm:$0xf]
      %v1469 = vld [vmem:[%s1213 + $0x2c] sm:$0x1]
      %v1470 = vld [vmem:[%s1213 + $0x30] sm:$0xf]
      %v1471 = vld [vmem:[%s1213 + $0x34] sm:$0xf]
      %v1472 = vld [vmem:[%s1213 + $0x38] sm:$0x1]
      %v1473 = vld [vmem:[%s1213 + $0x3c] sm:$0xf]
      %v1474 = vld [vmem:[%s1213 + $0x40] sm:$0xf]
      %v1475 = vld [vmem:[%s1213 + $0x44] sm:$0x1]
      %v1476 = vld [vmem:[%s1213 + $0x48] sm:$0xf]
      %v1477 = vld [vmem:[%s1213 + $0x4c] sm:$0xf]
      %v1478 = vld [vmem:[%s1213 + $0x50] sm:$0x1]
      %v1479 = vld [vmem:[%s1213 + $0x54] sm:$0xf]
      %v1480 = vld [vmem:[%s1213 + $0x58] sm:$0xf]
      %v1481 = vld [vmem:[%s1213 + $0x5c] sm:$0x1]
      %v1482 = vld [vmem:[%s1213 + $0x60] sm:$0xf]
      %v1483 = vld [vmem:[%s1213 + $0x64] sm:$0xf]
      %v1484 = vld [vmem:[%s1213 + $0x68] sm:$0x1]
      %v1485 = vld [vmem:[%s1213 + $0x6c] sm:$0xf]
      %v1486 = vld [vmem:[%s1213 + $0x70] sm:$0xf]
      %v1487 = vld [vmem:[%s1213 + $0x74] sm:$0x1]
      %v1488 = vunpack.c.l.bf16 %v1458
      %v1489 = vunpack.c.l.bf16 %v1459
      %v1490 = vunpack.c.l.bf16 %v1460
      %v1491 = vunpack.c.l.bf16 %v1461
      %v1492 = vunpack.c.l.bf16 %v1462
      %v1493 = vunpack.c.l.bf16 %v1463
      %v1494 = vunpack.c.l.bf16 %v1464
      %v1495 = vunpack.c.l.bf16 %v1465
      %v1496 = vunpack.c.l.bf16 %v1466
      %v1497 = vunpack.c.l.bf16 %v1467
      %v1498 = vunpack.c.l.bf16 %v1468
      %v1499 = vunpack.c.l.bf16 %v1469
      %v1500 = vunpack.c.l.bf16 %v1470
      %v1501 = vunpack.c.l.bf16 %v1471
      %v1502 = vunpack.c.l.bf16 %v1472
      %v1503 = vunpack.c.l.bf16 %v1473
      %v1504 = vunpack.c.l.bf16 %v1474
      %v1505 = vunpack.c.l.bf16 %v1475
      %v1506 = vunpack.c.l.bf16 %v1476
      %v1507 = vunpack.c.l.bf16 %v1477
      %v1508 = vunpack.c.l.bf16 %v1478
      %v1509 = vunpack.c.l.bf16 %v1479
      %v1510 = vunpack.c.l.bf16 %v1480
      %v1511 = vunpack.c.l.bf16 %v1481
      %v1512 = vunpack.c.l.bf16 %v1482
      %v1513 = vunpack.c.l.bf16 %v1483
      %v1514 = vunpack.c.l.bf16 %v1484
      %v1515 = vunpack.c.l.bf16 %v1485
      %v1516 = vunpack.c.l.bf16 %v1486
      %v1517 = vunpack.c.l.bf16 %v1487
      %v1518 = vmax.f32 %v1488, 0.0
      %v1519 = vmax.f32 %v1489, 0.0
      %v1520 = vmax.f32 %v1490, 0.0
      %v1521 = vmax.f32 %v1491, 0.0
      %v1522 = vmax.f32 %v1492, 0.0
      %v1523 = vmax.f32 %v1493, 0.0
      %v1524 = vmax.f32 %v1494, 0.0
      %v1525 = vmax.f32 %v1495, 0.0
      %v1526 = vmax.f32 %v1496, 0.0
      %v1527 = vmax.f32 %v1497, 0.0
      %v1528 = vmax.f32 %v1498, 0.0
      %v1529 = vmax.f32 %v1499, 0.0
      %v1530 = vmax.f32 %v1500, 0.0
      %v1531 = vmax.f32 %v1501, 0.0
      %v1532 = vmax.f32 %v1502, 0.0
      %v1533 = vmax.f32 %v1503, 0.0
      %v1534 = vmax.f32 %v1504, 0.0
      %v1535 = vmax.f32 %v1505, 0.0
      %v1536 = vmax.f32 %v1506, 0.0
      %v1537 = vmax.f32 %v1507, 0.0
      %v1538 = vmax.f32 %v1508, 0.0
      %v1539 = vmax.f32 %v1509, 0.0
      %v1540 = vmax.f32 %v1510, 0.0
      %v1541 = vmax.f32 %v1511, 0.0
      %v1542 = vmax.f32 %v1512, 0.0
      %v1543 = vmax.f32 %v1513, 0.0
      %v1544 = vmax.f32 %v1514, 0.0
      %v1545 = vmax.f32 %v1515, 0.0
      %v1546 = vmax.f32 %v1516, 0.0
      %v1547 = vmax.f32 %v1517, 0.0
      %v1548 = vpack.c.bf16 %v1518, %v1518
      %v1549 = vpack.c.bf16 %v1519, %v1519
      %v1550 = vpack.c.bf16 %v1520, %v1520
      %v1551 = vpack.c.bf16 %v1521, %v1521
      %v1552 = vpack.c.bf16 %v1522, %v1522
      %v1553 = vpack.c.bf16 %v1523, %v1523
      %v1554 = vpack.c.bf16 %v1524, %v1524
      %v1555 = vpack.c.bf16 %v1525, %v1525
      %v1556 = vpack.c.bf16 %v1526, %v1526
      %v1557 = vpack.c.bf16 %v1527, %v1527
      %v1558 = vpack.c.bf16 %v1528, %v1528
      %v1559 = vpack.c.bf16 %v1529, %v1529
      %v1560 = vpack.c.bf16 %v1530, %v1530
      %v1561 = vpack.c.bf16 %v1531, %v1531
      %v1562 = vpack.c.bf16 %v1532, %v1532
      %v1563 = vpack.c.bf16 %v1533, %v1533
      %v1564 = vpack.c.bf16 %v1534, %v1534
      %v1565 = vpack.c.bf16 %v1535, %v1535
      %v1566 = vpack.c.bf16 %v1536, %v1536
      %v1567 = vpack.c.bf16 %v1537, %v1537
      %v1568 = vpack.c.bf16 %v1538, %v1538
      %v1569 = vpack.c.bf16 %v1539, %v1539
      %v1570 = vpack.c.bf16 %v1540, %v1540
      %v1571 = vpack.c.bf16 %v1541, %v1541
      %v1572 = vpack.c.bf16 %v1542, %v1542
      %v1573 = vpack.c.bf16 %v1543, %v1543
      %v1574 = vpack.c.bf16 %v1544, %v1544
      %v1575 = vpack.c.bf16 %v1545, %v1545
      %v1576 = vpack.c.bf16 %v1546, %v1546
      %v1577 = vpack.c.bf16 %v1547, %v1547
      %v1579 = vshrl.u32 %v1548, 16
      %v1581 = vrot.slane %v1579, 4
      %v1582 = vshll.u32 %v1548, 16
      %v1584 = vrot.slane %v1582, 5
      %v1585 = vor.u32 %v1581, %v1584
      %v1586 = vrot.slane %v1585, 4
      %v1588 = vshll.u32 %v1549, 16
      %v1590 = vrot.slane %v1588, 5
      %v1591 = vsel %vm427, %v1586, %v1590
      %v1592 = vshrl.u32 %v1549, 16
      %v1594 = vrot.slane %v1592, 4
      %v1595 = vor.u32 %v1594, %v1590
      %v1596 = vrot.slane %v1595, 4
      %v1598 = vshll.u32 %v1550, 16
      %v1600 = vrot.slane %v1598, 5
      %v1601 = vsel %vm427, %v1596, %v1600
      %v1603 = vshrl.u32 %v1551, 16
      %v1605 = vrot.slane %v1603, 4
      %v1606 = vshll.u32 %v1551, 16
      %v1608 = vrot.slane %v1606, 5
      %v1609 = vor.u32 %v1605, %v1608
      %v1610 = vrot.slane %v1609, 4
      %v1612 = vshll.u32 %v1552, 16
      %v1614 = vrot.slane %v1612, 5
      %v1615 = vsel %vm427, %v1610, %v1614
      %v1616 = vshrl.u32 %v1552, 16
      %v1618 = vrot.slane %v1616, 4
      %v1619 = vor.u32 %v1618, %v1614
      %v1620 = vrot.slane %v1619, 4
      %v1622 = vshll.u32 %v1553, 16
      %v1624 = vrot.slane %v1622, 5
      %v1625 = vsel %vm427, %v1620, %v1624
      %v1627 = vshrl.u32 %v1554, 16
      %v1629 = vrot.slane %v1627, 4
      %v1630 = vshll.u32 %v1554, 16
      %v1632 = vrot.slane %v1630, 5
      %v1633 = vor.u32 %v1629, %v1632
      %v1634 = vrot.slane %v1633, 4
      %v1636 = vshll.u32 %v1555, 16
      %v1638 = vrot.slane %v1636, 5
      %v1639 = vsel %vm427, %v1634, %v1638
      %v1640 = vshrl.u32 %v1555, 16
      %v1642 = vrot.slane %v1640, 4
      %v1643 = vor.u32 %v1642, %v1638
      %v1644 = vrot.slane %v1643, 4
      %v1646 = vshll.u32 %v1556, 16
      %v1648 = vrot.slane %v1646, 5
      %v1649 = vsel %vm427, %v1644, %v1648
      %v1651 = vshrl.u32 %v1557, 16
      %v1653 = vrot.slane %v1651, 4
      %v1654 = vshll.u32 %v1557, 16
      %v1656 = vrot.slane %v1654, 5
      %v1657 = vor.u32 %v1653, %v1656
      %v1658 = vrot.slane %v1657, 4
      %v1660 = vshll.u32 %v1558, 16
      %v1662 = vrot.slane %v1660, 5
      %v1663 = vsel %vm427, %v1658, %v1662
      %v1664 = vshrl.u32 %v1558, 16
      %v1666 = vrot.slane %v1664, 4
      %v1667 = vor.u32 %v1666, %v1662
      %v1668 = vrot.slane %v1667, 4
      %v1670 = vshll.u32 %v1559, 16
      %v1672 = vrot.slane %v1670, 5
      %v1673 = vsel %vm427, %v1668, %v1672
      %v1675 = vshrl.u32 %v1560, 16
      %v1677 = vrot.slane %v1675, 4
      %v1678 = vshll.u32 %v1560, 16
      %v1680 = vrot.slane %v1678, 5
      %v1681 = vor.u32 %v1677, %v1680
      %v1682 = vrot.slane %v1681, 4
      %v1684 = vshll.u32 %v1561, 16
      %v1686 = vrot.slane %v1684, 5
      %v1687 = vsel %vm427, %v1682, %v1686
      %v1688 = vshrl.u32 %v1561, 16
      %v1690 = vrot.slane %v1688, 4
      %v1691 = vor.u32 %v1690, %v1686
      %v1692 = vrot.slane %v1691, 4
      %v1694 = vshll.u32 %v1562, 16
      %v1696 = vrot.slane %v1694, 5
      %v1697 = vsel %vm427, %v1692, %v1696
      %v1699 = vshrl.u32 %v1563, 16
      %v1701 = vrot.slane %v1699, 4
      %v1702 = vshll.u32 %v1563, 16
      %v1704 = vrot.slane %v1702, 5
      %v1705 = vor.u32 %v1701, %v1704
      %v1706 = vrot.slane %v1705, 4
      %v1708 = vshll.u32 %v1564, 16
      %v1710 = vrot.slane %v1708, 5
      %v1711 = vsel %vm427, %v1706, %v1710
      %v1712 = vshrl.u32 %v1564, 16
      %v1714 = vrot.slane %v1712, 4
      %v1715 = vor.u32 %v1714, %v1710
      %v1716 = vrot.slane %v1715, 4
      %v1718 = vshll.u32 %v1565, 16
      %v1720 = vrot.slane %v1718, 5
      %v1721 = vsel %vm427, %v1716, %v1720
      %v1723 = vshrl.u32 %v1566, 16
      %v1725 = vrot.slane %v1723, 4
      %v1726 = vshll.u32 %v1566, 16
      %v1728 = vrot.slane %v1726, 5
      %v1729 = vor.u32 %v1725, %v1728
      %v1730 = vrot.slane %v1729, 4
      %v1732 = vshll.u32 %v1567, 16
      %v1734 = vrot.slane %v1732, 5
      %v1735 = vsel %vm427, %v1730, %v1734
      %v1736 = vshrl.u32 %v1567, 16
      %v1738 = vrot.slane %v1736, 4
      %v1739 = vor.u32 %v1738, %v1734
      %v1740 = vrot.slane %v1739, 4
      %v1742 = vshll.u32 %v1568, 16
      %v1744 = vrot.slane %v1742, 5
      %v1745 = vsel %vm427, %v1740, %v1744
      %v1747 = vshrl.u32 %v1569, 16
      %v1749 = vrot.slane %v1747, 4
      %v1750 = vshll.u32 %v1569, 16
      %v1752 = vrot.slane %v1750, 5
      %v1753 = vor.u32 %v1749, %v1752
      %v1754 = vrot.slane %v1753, 4
      %v1756 = vshll.u32 %v1570, 16
      %v1758 = vrot.slane %v1756, 5
      %v1759 = vsel %vm427, %v1754, %v1758
      %v1760 = vshrl.u32 %v1570, 16
      %v1762 = vrot.slane %v1760, 4
      %v1763 = vor.u32 %v1762, %v1758
      %v1764 = vrot.slane %v1763, 4
      %v1766 = vshll.u32 %v1571, 16
      %v1768 = vrot.slane %v1766, 5
      %v1769 = vsel %vm427, %v1764, %v1768
      %v1771 = vshrl.u32 %v1572, 16
      %v1773 = vrot.slane %v1771, 4
      %v1774 = vshll.u32 %v1572, 16
      %v1776 = vrot.slane %v1774, 5
      %v1777 = vor.u32 %v1773, %v1776
      %v1778 = vrot.slane %v1777, 4
      %v1780 = vshll.u32 %v1573, 16
      %v1782 = vrot.slane %v1780, 5
      %v1783 = vsel %vm427, %v1778, %v1782
      %v1784 = vshrl.u32 %v1573, 16
      %v1786 = vrot.slane %v1784, 4
      %v1787 = vor.u32 %v1786, %v1782
      %v1788 = vrot.slane %v1787, 4
      %v1790 = vshll.u32 %v1574, 16
      %v1792 = vrot.slane %v1790, 5
      %v1793 = vsel %vm427, %v1788, %v1792
      %v1795 = vshrl.u32 %v1575, 16
      %v1797 = vrot.slane %v1795, 4
      %v1798 = vshll.u32 %v1575, 16
      %v1800 = vrot.slane %v1798, 5
      %v1801 = vor.u32 %v1797, %v1800
      %v1802 = vrot.slane %v1801, 4
      %v1804 = vshll.u32 %v1576, 16
      %v1806 = vrot.slane %v1804, 5
      %v1807 = vsel %vm427, %v1802, %v1806
      %v1808 = vshrl.u32 %v1576, 16
      %v1810 = vrot.slane %v1808, 4
      %v1811 = vor.u32 %v1810, %v1806
      %v1812 = vrot.slane %v1811, 4
      %v1814 = vshll.u32 %v1577, 16
      %v1816 = vrot.slane %v1814, 5
      %v1817 = vsel %vm427, %v1812, %v1816
      %s1818 = scalar_lea.vmem %s1, 16
      %v1819 = vld [vmem:[%s1818] sm:$0xf]
      %v1820 = vunpack.c.l.b16 %v1591
      %v1821 = vunpack.c.l.b16 %v1601
      %v1822 = vunpack.c.l.b16 %v1615
      %v1823 = vunpack.c.l.b16 %v1625
      %v1824 = vunpack.c.l.b16 %v1639
      %v1825 = vunpack.c.l.b16 %v1649
      %v1826 = vunpack.c.l.b16 %v1663
      %v1827 = vunpack.c.l.b16 %v1673
      %v1828 = vunpack.c.l.b16 %v1687
      %v1829 = vunpack.c.l.b16 %v1697
      %v1830 = vunpack.c.l.b16 %v1711
      %v1831 = vunpack.c.l.b16 %v1721
      %v1832 = vunpack.c.l.b16 %v1735
      %v1833 = vunpack.c.l.b16 %v1745
      %v1834 = vunpack.c.l.b16 %v1759
      %v1835 = vunpack.c.l.b16 %v1769
      %v1836 = vunpack.c.l.b16 %v1783
      %v1837 = vunpack.c.l.b16 %v1793
      %v1838 = vunpack.c.l.b16 %v1807
      %v1839 = vunpack.c.l.b16 %v1817
      %v1840 = vpack.c.b16 %v1821, %v1820
      %v1841 = vpack.c.b16 %v1823, %v1822
      %v1842 = vpack.c.b16 %v1825, %v1824
      %v1843 = vpack.c.b16 %v1827, %v1826
      %v1844 = vpack.c.b16 %v1829, %v1828
      %v1845 = vpack.c.b16 %v1831, %v1830
      %v1846 = vpack.c.b16 %v1833, %v1832
      %v1847 = vpack.c.b16 %v1835, %v1834
      %v1848 = vpack.c.b16 %v1837, %v1836
      %v1849 = vpack.c.b16 %v1839, %v1838
      %v1851 = vsel %vm700, %v1840, 0
      %v1854 = vsel %vm700, %v1841, 0
      %v1857 = vsel %vm700, %v1842, 0
      %v1860 = vsel %vm700, %v1843, 0
      %v1863 = vsel %vm700, %v1844, 0
      %v1866 = vsel %vm700, %v1845, 0
      %v1869 = vsel %vm700, %v1846, 0
      %v1872 = vsel %vm700, %v1847, 0
      %v1875 = vsel %vm700, %v1848, 0
      %v1878 = vsel %vm700, %v1849, 0
      %v1881 = vsel %vm731, %v1819, 0
      %1883 = vmatpush.bf16.msra.mxu0 0
      %1884 = vmatpush.bf16.msra.mxu0 0
      %1885 = vmatpush.bf16.msra.mxu0 0
      %1886 = vmatpush.bf16.msra.mxu0 0
      %1887 = vmatpush.bf16.msra.mxu0 0
      %1888 = vmatpush.bf16.msra.mxu0 0
      %1889 = vmatpush.bf16.msra.mxu0 0
      %1890 = vmatpush.bf16.msra.mxu0 %v1881
      %1891 = vmatmul.bf16.gmra.mxu0 %v1851
      %v1892 = vpop.f32.mrf.mxu0
      %v1893 = vadd.f32 0.0, %v1892
      %v1894 = vpop.f32.mrf.mxu0
      %v1895 = vadd.f32 0.0, %v1894
      %1896 = vmatmul.bf16.gmra.mxu0 %v1854
      %v1897 = vpop.f32.mrf.mxu0
      %v1898 = vadd.f32 0.0, %v1897
      %v1899 = vpop.f32.mrf.mxu0
      %v1900 = vadd.f32 0.0, %v1899
      %1901 = vmatmul.bf16.gmra.mxu0 %v1857
      %v1902 = vpop.f32.mrf.mxu0
      %v1903 = vadd.f32 0.0, %v1902
      %v1904 = vpop.f32.mrf.mxu0
      %v1905 = vadd.f32 0.0, %v1904
      %1906 = vmatmul.bf16.gmra.mxu0 %v1860
      %v1907 = vpop.f32.mrf.mxu0
      %v1908 = vadd.f32 0.0, %v1907
      %v1909 = vpop.f32.mrf.mxu0
      %v1910 = vadd.f32 0.0, %v1909
      %1911 = vmatmul.bf16.gmra.mxu0 %v1863
      %v1912 = vpop.f32.mrf.mxu0
      %v1913 = vadd.f32 0.0, %v1912
      %v1914 = vpop.f32.mrf.mxu0
      %v1915 = vadd.f32 0.0, %v1914
      %1916 = vmatmul.bf16.gmra.mxu0 %v1866
      %v1917 = vpop.f32.mrf.mxu0
      %v1918 = vadd.f32 0.0, %v1917
      %v1919 = vpop.f32.mrf.mxu0
      %v1920 = vadd.f32 0.0, %v1919
      %1921 = vmatmul.bf16.gmra.mxu0 %v1869
      %v1922 = vpop.f32.mrf.mxu0
      %v1923 = vadd.f32 0.0, %v1922
      %v1924 = vpop.f32.mrf.mxu0
      %v1925 = vadd.f32 0.0, %v1924
      %1926 = vmatmul.bf16.gmra.mxu0 %v1872
      %v1927 = vpop.f32.mrf.mxu0
      %v1928 = vadd.f32 0.0, %v1927
      %v1929 = vpop.f32.mrf.mxu0
      %v1930 = vadd.f32 0.0, %v1929
      %1931 = vmatmul.bf16.gmra.mxu0 %v1875
      %v1932 = vpop.f32.mrf.mxu0
      %v1933 = vadd.f32 0.0, %v1932
      %v1934 = vpop.f32.mrf.mxu0
      %v1935 = vadd.f32 0.0, %v1934
      %1936 = vmatmul.bf16.gmra.mxu0 %v1878
      %v1937 = vpop.f32.mrf.mxu0
      %v1938 = vadd.f32 0.0, %v1937
      %v1939 = vpop.f32.mrf.mxu0
      %v1940 = vadd.f32 0.0, %v1939
      %1941 = vdwg.mxu0
      %v1942 = vadd.f32 %v1438, %v1893
      %v1943 = vadd.f32 %v1439, %v1895
      %v1944 = vadd.f32 %v1440, %v1898
      %v1945 = vadd.f32 %v1441, %v1900
      %v1946 = vadd.f32 %v1442, %v1903
      %v1947 = vadd.f32 %v1443, %v1905
      %v1948 = vadd.f32 %v1444, %v1908
      %v1949 = vadd.f32 %v1445, %v1910
      %v1950 = vadd.f32 %v1446, %v1913
      %v1951 = vadd.f32 %v1447, %v1915
      %v1952 = vadd.f32 %v1448, %v1918
      %v1953 = vadd.f32 %v1449, %v1920
      %v1954 = vadd.f32 %v1450, %v1923
      %v1955 = vadd.f32 %v1451, %v1925
      %v1956 = vadd.f32 %v1452, %v1928
      %v1957 = vadd.f32 %v1453, %v1930
      %v1958 = vadd.f32 %v1454, %v1933
      %v1959 = vadd.f32 %v1455, %v1935
      %v1960 = vadd.f32 %v1456, %v1938
      %v1961 = vadd.f32 %v1457, %v1940
      %v1962 = vld [vmem:[%s1213] sm:$0xe]
      %v1963 = vld [vmem:[%s1213 + $0xc] sm:$0xe]
      %v1964 = vld [vmem:[%s1213 + $0x18] sm:$0xe]
      %v1965 = vld [vmem:[%s1213 + $0x24] sm:$0xe]
      %v1966 = vld [vmem:[%s1213 + $0x30] sm:$0xe]
      %v1967 = vld [vmem:[%s1213 + $0x3c] sm:$0xe]
      %v1968 = vld [vmem:[%s1213 + $0x48] sm:$0xe]
      %v1969 = vld [vmem:[%s1213 + $0x54] sm:$0xe]
      %v1970 = vld [vmem:[%s1213 + $0x60] sm:$0xe]
      %v1971 = vld [vmem:[%s1213 + $0x6c] sm:$0xe]
      %v1972 = vunpack.c.l.bf16 %v1962
      %v1973 = vunpack.c.l.bf16 %v1963
      %v1974 = vunpack.c.l.bf16 %v1964
      %v1975 = vunpack.c.l.bf16 %v1965
      %v1976 = vunpack.c.l.bf16 %v1966
      %v1977 = vunpack.c.l.bf16 %v1967
      %v1978 = vunpack.c.l.bf16 %v1968
      %v1979 = vunpack.c.l.bf16 %v1969
      %v1980 = vunpack.c.l.bf16 %v1970
      %v1981 = vunpack.c.l.bf16 %v1971
      %v1982 = vmax.f32 %v1972, 0.0
      %v1983 = vmax.f32 %v1973, 0.0
      %v1984 = vmax.f32 %v1974, 0.0
      %v1985 = vmax.f32 %v1975, 0.0
      %v1986 = vmax.f32 %v1976, 0.0
      %v1987 = vmax.f32 %v1977, 0.0
      %v1988 = vmax.f32 %v1978, 0.0
      %v1989 = vmax.f32 %v1979, 0.0
      %v1990 = vmax.f32 %v1980, 0.0
      %v1991 = vmax.f32 %v1981, 0.0
      %v1992 = vpack.c.bf16 %v1982, %v1982
      %v1993 = vpack.c.bf16 %v1983, %v1983
      %v1994 = vpack.c.bf16 %v1984, %v1984
      %v1995 = vpack.c.bf16 %v1985, %v1985
      %v1996 = vpack.c.bf16 %v1986, %v1986
      %v1997 = vpack.c.bf16 %v1987, %v1987
      %v1998 = vpack.c.bf16 %v1988, %v1988
      %v1999 = vpack.c.bf16 %v1989, %v1989
      %v2000 = vpack.c.bf16 %v1990, %v1990
      %v2001 = vpack.c.bf16 %v1991, %v1991
      %v2032 = vrot.slane %v1992, 5
      %v2033 = vrot.slane %v2032, 4
      %v2034 = vrot.slane %v1549, 5
      %v2035 = vsel %vm998, %v2033, %v2034
      %v2036 = vrot.slane %v2034, 4
      %v2037 = vrot.slane %v1550, 5
      %v2038 = vsel %vm998, %v2036, %v2037
      %v2039 = vrot.slane %v1993, 5
      %v2040 = vrot.slane %v2039, 4
      %v2041 = vrot.slane %v1552, 5
      %v2042 = vsel %vm998, %v2040, %v2041
      %v2043 = vrot.slane %v2041, 4
      %v2044 = vrot.slane %v1553, 5
      %v2045 = vsel %vm998, %v2043, %v2044
      %v2046 = vrot.slane %v1994, 5
      %v2047 = vrot.slane %v2046, 4
      %v2048 = vrot.slane %v1555, 5
      %v2049 = vsel %vm998, %v2047, %v2048
      %v2050 = vrot.slane %v2048, 4
      %v2051 = vrot.slane %v1556, 5
      %v2052 = vsel %vm998, %v2050, %v2051
      %v2053 = vrot.slane %v1995, 5
      %v2054 = vrot.slane %v2053, 4
      %v2055 = vrot.slane %v1558, 5
      %v2056 = vsel %vm998, %v2054, %v2055
      %v2057 = vrot.slane %v2055, 4
      %v2058 = vrot.slane %v1559, 5
      %v2059 = vsel %vm998, %v2057, %v2058
      %v2060 = vrot.slane %v1996, 5
      %v2061 = vrot.slane %v2060, 4
      %v2062 = vrot.slane %v1561, 5
      %v2063 = vsel %vm998, %v2061, %v2062
      %v2064 = vrot.slane %v2062, 4
      %v2065 = vrot.slane %v1562, 5
      %v2066 = vsel %vm998, %v2064, %v2065
      %v2067 = vrot.slane %v1997, 5
      %v2068 = vrot.slane %v2067, 4
      %v2069 = vrot.slane %v1564, 5
      %v2070 = vsel %vm998, %v2068, %v2069
      %v2071 = vrot.slane %v2069, 4
      %v2072 = vrot.slane %v1565, 5
      %v2073 = vsel %vm998, %v2071, %v2072
      %v2074 = vrot.slane %v1998, 5
      %v2075 = vrot.slane %v2074, 4
      %v2076 = vrot.slane %v1567, 5
      %v2077 = vsel %vm998, %v2075, %v2076
      %v2078 = vrot.slane %v2076, 4
      %v2079 = vrot.slane %v1568, 5
      %v2080 = vsel %vm998, %v2078, %v2079
      %v2081 = vrot.slane %v1999, 5
      %v2082 = vrot.slane %v2081, 4
      %v2083 = vrot.slane %v1570, 5
      %v2084 = vsel %vm998, %v2082, %v2083
      %v2085 = vrot.slane %v2083, 4
      %v2086 = vrot.slane %v1571, 5
      %v2087 = vsel %vm998, %v2085, %v2086
      %v2088 = vrot.slane %v2000, 5
      %v2089 = vrot.slane %v2088, 4
      %v2090 = vrot.slane %v1573, 5
      %v2091 = vsel %vm998, %v2089, %v2090
      %v2092 = vrot.slane %v2090, 4
      %v2093 = vrot.slane %v1574, 5
      %v2094 = vsel %vm998, %v2092, %v2093
      %v2095 = vrot.slane %v2001, 5
      %v2096 = vrot.slane %v2095, 4
      %v2097 = vrot.slane %v1576, 5
      %v2098 = vsel %vm998, %v2096, %v2097
      %v2099 = vrot.slane %v2097, 4
      %v2100 = vrot.slane %v1577, 5
      %v2101 = vsel %vm998, %v2099, %v2100
      %s2102 = scalar_lea.vmem %s1, 20
      %v2103 = vld [vmem:[%s2102] sm:$0xf]
      %v2104 = vunpack.c.l.b16 %v2035
      %v2105 = vunpack.c.l.b16 %v2038
      %v2106 = vunpack.c.l.b16 %v2042
      %v2107 = vunpack.c.l.b16 %v2045
      %v2108 = vunpack.c.l.b16 %v2049
      %v2109 = vunpack.c.l.b16 %v2052
      %v2110 = vunpack.c.l.b16 %v2056
      %v2111 = vunpack.c.l.b16 %v2059
      %v2112 = vunpack.c.l.b16 %v2063
      %v2113 = vunpack.c.l.b16 %v2066
      %v2114 = vunpack.c.l.b16 %v2070
      %v2115 = vunpack.c.l.b16 %v2073
      %v2116 = vunpack.c.l.b16 %v2077
      %v2117 = vunpack.c.l.b16 %v2080
      %v2118 = vunpack.c.l.b16 %v2084
      %v2119 = vunpack.c.l.b16 %v2087
      %v2120 = vunpack.c.l.b16 %v2091
      %v2121 = vunpack.c.l.b16 %v2094
      %v2122 = vunpack.c.l.b16 %v2098
      %v2123 = vunpack.c.l.b16 %v2101
      %v2124 = vpack.c.b16 %v2105, %v2104
      %v2125 = vpack.c.b16 %v2107, %v2106
      %v2126 = vpack.c.b16 %v2109, %v2108
      %v2127 = vpack.c.b16 %v2111, %v2110
      %v2128 = vpack.c.b16 %v2113, %v2112
      %v2129 = vpack.c.b16 %v2115, %v2114
      %v2130 = vpack.c.b16 %v2117, %v2116
      %v2131 = vpack.c.b16 %v2119, %v2118
      %v2132 = vpack.c.b16 %v2121, %v2120
      %v2133 = vpack.c.b16 %v2123, %v2122
      %v2135 = vsel %vm700, %v2124, 0
      %v2138 = vsel %vm700, %v2125, 0
      %v2141 = vsel %vm700, %v2126, 0
      %v2144 = vsel %vm700, %v2127, 0
      %v2147 = vsel %vm700, %v2128, 0
      %v2150 = vsel %vm700, %v2129, 0
      %v2153 = vsel %vm700, %v2130, 0
      %v2156 = vsel %vm700, %v2131, 0
      %v2159 = vsel %vm700, %v2132, 0
      %v2162 = vsel %vm700, %v2133, 0
      %v2165 = vsel %vm731, %v2103, 0
      %2167 = vmatpush.bf16.msra.mxu0 0
      %2168 = vmatpush.bf16.msra.mxu0 0
      %2169 = vmatpush.bf16.msra.mxu0 0
      %2170 = vmatpush.bf16.msra.mxu0 0
      %2171 = vmatpush.bf16.msra.mxu0 0
      %2172 = vmatpush.bf16.msra.mxu0 0
      %2173 = vmatpush.bf16.msra.mxu0 0
      %2174 = vmatpush.bf16.msra.mxu0 %v2165
      %2175 = vmatmul.bf16.gmra.mxu0 %v2135
      %v2176 = vpop.f32.mrf.mxu0
      %v2177 = vadd.f32 0.0, %v2176
      %v2178 = vpop.f32.mrf.mxu0
      %v2179 = vadd.f32 0.0, %v2178
      %2180 = vmatmul.bf16.gmra.mxu0 %v2138
      %v2181 = vpop.f32.mrf.mxu0
      %v2182 = vadd.f32 0.0, %v2181
      %v2183 = vpop.f32.mrf.mxu0
      %v2184 = vadd.f32 0.0, %v2183
      %2185 = vmatmul.bf16.gmra.mxu0 %v2141
      %v2186 = vpop.f32.mrf.mxu0
      %v2187 = vadd.f32 0.0, %v2186
      %v2188 = vpop.f32.mrf.mxu0
      %v2189 = vadd.f32 0.0, %v2188
      %2190 = vmatmul.bf16.gmra.mxu0 %v2144
      %v2191 = vpop.f32.mrf.mxu0
      %v2192 = vadd.f32 0.0, %v2191
      %v2193 = vpop.f32.mrf.mxu0
      %v2194 = vadd.f32 0.0, %v2193
      %2195 = vmatmul.bf16.gmra.mxu0 %v2147
      %v2196 = vpop.f32.mrf.mxu0
      %v2197 = vadd.f32 0.0, %v2196
      %v2198 = vpop.f32.mrf.mxu0
      %v2199 = vadd.f32 0.0, %v2198
      %2200 = vmatmul.bf16.gmra.mxu0 %v2150
      %v2201 = vpop.f32.mrf.mxu0
      %v2202 = vadd.f32 0.0, %v2201
      %v2203 = vpop.f32.mrf.mxu0
      %v2204 = vadd.f32 0.0, %v2203
      %2205 = vmatmul.bf16.gmra.mxu0 %v2153
      %v2206 = vpop.f32.mrf.mxu0
      %v2207 = vadd.f32 0.0, %v2206
      %v2208 = vpop.f32.mrf.mxu0
      %v2209 = vadd.f32 0.0, %v2208
      %2210 = vmatmul.bf16.gmra.mxu0 %v2156
      %v2211 = vpop.f32.mrf.mxu0
      %v2212 = vadd.f32 0.0, %v2211
      %v2213 = vpop.f32.mrf.mxu0
      %v2214 = vadd.f32 0.0, %v2213
      %2215 = vmatmul.bf16.gmra.mxu0 %v2159
      %v2216 = vpop.f32.mrf.mxu0
      %v2217 = vadd.f32 0.0, %v2216
      %v2218 = vpop.f32.mrf.mxu0
      %v2219 = vadd.f32 0.0, %v2218
      %2220 = vmatmul.bf16.gmra.mxu0 %v2162
      %v2221 = vpop.f32.mrf.mxu0
      %v2222 = vadd.f32 0.0, %v2221
      %v2223 = vpop.f32.mrf.mxu0
      %v2224 = vadd.f32 0.0, %v2223
      %2225 = vdwg.mxu0
      %v2226 = vadd.f32 %v1942, %v2177
      %v2227 = vadd.f32 %v1943, %v2179
      %v2228 = vadd.f32 %v1944, %v2182
      %v2229 = vadd.f32 %v1945, %v2184
      %v2230 = vadd.f32 %v1946, %v2187
      %v2231 = vadd.f32 %v1947, %v2189
      %v2232 = vadd.f32 %v1948, %v2192
      %v2233 = vadd.f32 %v1949, %v2194
      %v2234 = vadd.f32 %v1950, %v2197
      %v2235 = vadd.f32 %v1951, %v2199
      %v2236 = vadd.f32 %v1952, %v2202
      %v2237 = vadd.f32 %v1953, %v2204
      %v2238 = vadd.f32 %v1954, %v2207
      %v2239 = vadd.f32 %v1955, %v2209
      %v2240 = vadd.f32 %v1956, %v2212
      %v2241 = vadd.f32 %v1957, %v2214
      %v2242 = vadd.f32 %v1958, %v2217
      %v2243 = vadd.f32 %v1959, %v2219
      %v2244 = vadd.f32 %v1960, %v2222
      %v2245 = vadd.f32 %v1961, %v2224
      %s2246 = scalar_lea.vmem %s280, 24
      %v2247 = vld [vmem:[%s2246] sm:$0xf]
      %v2248 = vld [vmem:[%s2246 + $0x4] sm:$0xf]
      %v2249 = vld [vmem:[%s2246 + $0xc] sm:$0xf]
      %v2250 = vld [vmem:[%s2246 + $0x10] sm:$0xf]
      %v2251 = vld [vmem:[%s2246 + $0x18] sm:$0xf]
      %v2252 = vld [vmem:[%s2246 + $0x1c] sm:$0xf]
      %v2253 = vld [vmem:[%s2246 + $0x24] sm:$0xf]
      %v2254 = vld [vmem:[%s2246 + $0x28] sm:$0xf]
      %v2255 = vld [vmem:[%s2246 + $0x30] sm:$0xf]
      %v2256 = vld [vmem:[%s2246 + $0x34] sm:$0xf]
      %v2257 = vld [vmem:[%s2246 + $0x3c] sm:$0xf]
      %v2258 = vld [vmem:[%s2246 + $0x40] sm:$0xf]
      %v2259 = vld [vmem:[%s2246 + $0x48] sm:$0xf]
      %v2260 = vld [vmem:[%s2246 + $0x4c] sm:$0xf]
      %v2261 = vld [vmem:[%s2246 + $0x54] sm:$0xf]
      %v2262 = vld [vmem:[%s2246 + $0x58] sm:$0xf]
      %v2263 = vld [vmem:[%s2246 + $0x60] sm:$0xf]
      %v2264 = vld [vmem:[%s2246 + $0x64] sm:$0xf]
      %v2265 = vld [vmem:[%s2246 + $0x6c] sm:$0xf]
      %v2266 = vld [vmem:[%s2246 + $0x70] sm:$0xf]
      %v2267 = vunpack.c.l.bf16 %v2247
      %v2268 = vunpack.c.l.bf16 %v2248
      %v2269 = vunpack.c.l.bf16 %v2249
      %v2270 = vunpack.c.l.bf16 %v2250
      %v2271 = vunpack.c.l.bf16 %v2251
      %v2272 = vunpack.c.l.bf16 %v2252
      %v2273 = vunpack.c.l.bf16 %v2253
      %v2274 = vunpack.c.l.bf16 %v2254
      %v2275 = vunpack.c.l.bf16 %v2255
      %v2276 = vunpack.c.l.bf16 %v2256
      %v2277 = vunpack.c.l.bf16 %v2257
      %v2278 = vunpack.c.l.bf16 %v2258
      %v2279 = vunpack.c.l.bf16 %v2259
      %v2280 = vunpack.c.l.bf16 %v2260
      %v2281 = vunpack.c.l.bf16 %v2261
      %v2282 = vunpack.c.l.bf16 %v2262
      %v2283 = vunpack.c.l.bf16 %v2263
      %v2284 = vunpack.c.l.bf16 %v2264
      %v2285 = vunpack.c.l.bf16 %v2265
      %v2286 = vunpack.c.l.bf16 %v2266
      %v2287 = vmax.f32 %v2267, 0.0
      %v2288 = vmax.f32 %v2268, 0.0
      %v2289 = vmax.f32 %v2269, 0.0
      %v2290 = vmax.f32 %v2270, 0.0
      %v2291 = vmax.f32 %v2271, 0.0
      %v2292 = vmax.f32 %v2272, 0.0
      %v2293 = vmax.f32 %v2273, 0.0
      %v2294 = vmax.f32 %v2274, 0.0
      %v2295 = vmax.f32 %v2275, 0.0
      %v2296 = vmax.f32 %v2276, 0.0
      %v2297 = vmax.f32 %v2277, 0.0
      %v2298 = vmax.f32 %v2278, 0.0
      %v2299 = vmax.f32 %v2279, 0.0
      %v2300 = vmax.f32 %v2280, 0.0
      %v2301 = vmax.f32 %v2281, 0.0
      %v2302 = vmax.f32 %v2282, 0.0
      %v2303 = vmax.f32 %v2283, 0.0
      %v2304 = vmax.f32 %v2284, 0.0
      %v2305 = vmax.f32 %v2285, 0.0
      %v2306 = vmax.f32 %v2286, 0.0
      %v2307 = vpack.c.bf16 %v2287, %v2287
      %v2308 = vpack.c.bf16 %v2288, %v2288
      %v2309 = vpack.c.bf16 %v2289, %v2289
      %v2310 = vpack.c.bf16 %v2290, %v2290
      %v2311 = vpack.c.bf16 %v2291, %v2291
      %v2312 = vpack.c.bf16 %v2292, %v2292
      %v2313 = vpack.c.bf16 %v2293, %v2293
      %v2314 = vpack.c.bf16 %v2294, %v2294
      %v2315 = vpack.c.bf16 %v2295, %v2295
      %v2316 = vpack.c.bf16 %v2296, %v2296
      %v2317 = vpack.c.bf16 %v2297, %v2297
      %v2318 = vpack.c.bf16 %v2298, %v2298
      %v2319 = vpack.c.bf16 %v2299, %v2299
      %v2320 = vpack.c.bf16 %v2300, %v2300
      %v2321 = vpack.c.bf16 %v2301, %v2301
      %v2322 = vpack.c.bf16 %v2302, %v2302
      %v2323 = vpack.c.bf16 %v2303, %v2303
      %v2324 = vpack.c.bf16 %v2304, %v2304
      %v2325 = vpack.c.bf16 %v2305, %v2305
      %v2326 = vpack.c.bf16 %v2306, %v2306
      %s2327 = scalar_lea.vmem %s1, 24
      %v2328 = vld [vmem:[%s2327] sm:$0xf]
      %v2349 = vunpack.c.l.b16 %v2307
      %v2350 = vunpack.c.l.b16 %v2308
      %v2351 = vunpack.c.l.b16 %v2309
      %v2352 = vunpack.c.l.b16 %v2310
      %v2353 = vunpack.c.l.b16 %v2311
      %v2354 = vunpack.c.l.b16 %v2312
      %v2355 = vunpack.c.l.b16 %v2313
      %v2356 = vunpack.c.l.b16 %v2314
      %v2357 = vunpack.c.l.b16 %v2315
      %v2358 = vunpack.c.l.b16 %v2316
      %v2359 = vunpack.c.l.b16 %v2317
      %v2360 = vunpack.c.l.b16 %v2318
      %v2361 = vunpack.c.l.b16 %v2319
      %v2362 = vunpack.c.l.b16 %v2320
      %v2363 = vunpack.c.l.b16 %v2321
      %v2364 = vunpack.c.l.b16 %v2322
      %v2365 = vunpack.c.l.b16 %v2323
      %v2366 = vunpack.c.l.b16 %v2324
      %v2367 = vunpack.c.l.b16 %v2325
      %v2368 = vunpack.c.l.b16 %v2326
      %v2369 = vpack.c.b16 %v2350, %v2349
      %v2370 = vpack.c.b16 %v2352, %v2351
      %v2371 = vpack.c.b16 %v2354, %v2353
      %v2372 = vpack.c.b16 %v2356, %v2355
      %v2373 = vpack.c.b16 %v2358, %v2357
      %v2374 = vpack.c.b16 %v2360, %v2359
      %v2375 = vpack.c.b16 %v2362, %v2361
      %v2376 = vpack.c.b16 %v2364, %v2363
      %v2377 = vpack.c.b16 %v2366, %v2365
      %v2378 = vpack.c.b16 %v2368, %v2367
      %v2380 = vsel %vm700, %v2369, 0
      %v2383 = vsel %vm700, %v2370, 0
      %v2386 = vsel %vm700, %v2371, 0
      %v2389 = vsel %vm700, %v2372, 0
      %v2392 = vsel %vm700, %v2373, 0
      %v2395 = vsel %vm700, %v2374, 0
      %v2398 = vsel %vm700, %v2375, 0
      %v2401 = vsel %vm700, %v2376, 0
      %v2404 = vsel %vm700, %v2377, 0
      %v2407 = vsel %vm700, %v2378, 0
      %v2410 = vsel %vm731, %v2328, 0
      %2412 = vmatpush.bf16.msra.mxu0 0
      %2413 = vmatpush.bf16.msra.mxu0 0
      %2414 = vmatpush.bf16.msra.mxu0 0
      %2415 = vmatpush.bf16.msra.mxu0 0
      %2416 = vmatpush.bf16.msra.mxu0 0
      %2417 = vmatpush.bf16.msra.mxu0 0
      %2418 = vmatpush.bf16.msra.mxu0 0
      %2419 = vmatpush.bf16.msra.mxu0 %v2410
      %2420 = vmatmul.bf16.gmra.mxu0 %v2380
      %v2421 = vpop.f32.mrf.mxu0
      %v2422 = vadd.f32 0.0, %v2421
      %v2423 = vpop.f32.mrf.mxu0
      %v2424 = vadd.f32 0.0, %v2423
      %2425 = vmatmul.bf16.gmra.mxu0 %v2383
      %v2426 = vpop.f32.mrf.mxu0
      %v2427 = vadd.f32 0.0, %v2426
      %v2428 = vpop.f32.mrf.mxu0
      %v2429 = vadd.f32 0.0, %v2428
      %2430 = vmatmul.bf16.gmra.mxu0 %v2386
      %v2431 = vpop.f32.mrf.mxu0
      %v2432 = vadd.f32 0.0, %v2431
      %v2433 = vpop.f32.mrf.mxu0
      %v2434 = vadd.f32 0.0, %v2433
      %2435 = vmatmul.bf16.gmra.mxu0 %v2389
      %v2436 = vpop.f32.mrf.mxu0
      %v2437 = vadd.f32 0.0, %v2436
      %v2438 = vpop.f32.mrf.mxu0
      %v2439 = vadd.f32 0.0, %v2438
      %2440 = vmatmul.bf16.gmra.mxu0 %v2392
      %v2441 = vpop.f32.mrf.mxu0
      %v2442 = vadd.f32 0.0, %v2441
      %v2443 = vpop.f32.mrf.mxu0
      %v2444 = vadd.f32 0.0, %v2443
      %2445 = vmatmul.bf16.gmra.mxu0 %v2395
      %v2446 = vpop.f32.mrf.mxu0
      %v2447 = vadd.f32 0.0, %v2446
      %v2448 = vpop.f32.mrf.mxu0
      %v2449 = vadd.f32 0.0, %v2448
      %2450 = vmatmul.bf16.gmra.mxu0 %v2398
      %v2451 = vpop.f32.mrf.mxu0
      %v2452 = vadd.f32 0.0, %v2451
      %v2453 = vpop.f32.mrf.mxu0
      %v2454 = vadd.f32 0.0, %v2453
      %2455 = vmatmul.bf16.gmra.mxu0 %v2401
      %v2456 = vpop.f32.mrf.mxu0
      %v2457 = vadd.f32 0.0, %v2456
      %v2458 = vpop.f32.mrf.mxu0
      %v2459 = vadd.f32 0.0, %v2458
      %2460 = vmatmul.bf16.gmra.mxu0 %v2404
      %v2461 = vpop.f32.mrf.mxu0
      %v2462 = vadd.f32 0.0, %v2461
      %v2463 = vpop.f32.mrf.mxu0
      %v2464 = vadd.f32 0.0, %v2463
      %2465 = vmatmul.bf16.gmra.mxu0 %v2407
      %v2466 = vpop.f32.mrf.mxu0
      %v2467 = vadd.f32 0.0, %v2466
      %v2468 = vpop.f32.mrf.mxu0
      %v2469 = vadd.f32 0.0, %v2468
      %2470 = vdwg.mxu0
      %v2471 = vadd.f32 %v2226, %v2422
      %v2472 = vadd.f32 %v2227, %v2424
      %v2473 = vadd.f32 %v2228, %v2427
      %v2474 = vadd.f32 %v2229, %v2429
      %v2475 = vadd.f32 %v2230, %v2432
      %v2476 = vadd.f32 %v2231, %v2434
      %v2477 = vadd.f32 %v2232, %v2437
      %v2478 = vadd.f32 %v2233, %v2439
      %v2479 = vadd.f32 %v2234, %v2442
      %v2480 = vadd.f32 %v2235, %v2444
      %v2481 = vadd.f32 %v2236, %v2447
      %v2482 = vadd.f32 %v2237, %v2449
      %v2483 = vadd.f32 %v2238, %v2452
      %v2484 = vadd.f32 %v2239, %v2454
      %v2485 = vadd.f32 %v2240, %v2457
      %v2486 = vadd.f32 %v2241, %v2459
      %v2487 = vadd.f32 %v2242, %v2462
      %v2488 = vadd.f32 %v2243, %v2464
      %v2489 = vadd.f32 %v2244, %v2467
      %v2490 = vadd.f32 %v2245, %v2469
      %v2491 = vld [vmem:[%s2246] sm:$0xf]
      %v2492 = vld [vmem:[%s2246 + $0x4] sm:$0xf]
      %v2493 = vld [vmem:[%s2246 + $0x8] sm:$0x1]
      %v2494 = vld [vmem:[%s2246 + $0xc] sm:$0xf]
      %v2495 = vld [vmem:[%s2246 + $0x10] sm:$0xf]
      %v2496 = vld [vmem:[%s2246 + $0x14] sm:$0x1]
      %v2497 = vld [vmem:[%s2246 + $0x18] sm:$0xf]
      %v2498 = vld [vmem:[%s2246 + $0x1c] sm:$0xf]
      %v2499 = vld [vmem:[%s2246 + $0x20] sm:$0x1]
      %v2500 = vld [vmem:[%s2246 + $0x24] sm:$0xf]
      %v2501 = vld [vmem:[%s2246 + $0x28] sm:$0xf]
      %v2502 = vld [vmem:[%s2246 + $0x2c] sm:$0x1]
      %v2503 = vld [vmem:[%s2246 + $0x30] sm:$0xf]
      %v2504 = vld [vmem:[%s2246 + $0x34] sm:$0xf]
      %v2505 = vld [vmem:[%s2246 + $0x38] sm:$0x1]
      %v2506 = vld [vmem:[%s2246 + $0x3c] sm:$0xf]
      %v2507 = vld [vmem:[%s2246 + $0x40] sm:$0xf]
      %v2508 = vld [vmem:[%s2246 + $0x44] sm:$0x1]
      %v2509 = vld [vmem:[%s2246 + $0x48] sm:$0xf]
      %v2510 = vld [vmem:[%s2246 + $0x4c] sm:$0xf]
      %v2511 = vld [vmem:[%s2246 + $0x50] sm:$0x1]
      %v2512 = vld [vmem:[%s2246 + $0x54] sm:$0xf]
      %v2513 = vld [vmem:[%s2246 + $0x58] sm:$0xf]
      %v2514 = vld [vmem:[%s2246 + $0x5c] sm:$0x1]
      %v2515 = vld [vmem:[%s2246 + $0x60] sm:$0xf]
      %v2516 = vld [vmem:[%s2246 + $0x64] sm:$0xf]
      %v2517 = vld [vmem:[%s2246 + $0x68] sm:$0x1]
      %v2518 = vld [vmem:[%s2246 + $0x6c] sm:$0xf]
      %v2519 = vld [vmem:[%s2246 + $0x70] sm:$0xf]
      %v2520 = vld [vmem:[%s2246 + $0x74] sm:$0x1]
      %v2521 = vunpack.c.l.bf16 %v2491
      %v2522 = vunpack.c.l.bf16 %v2492
      %v2523 = vunpack.c.l.bf16 %v2493
      %v2524 = vunpack.c.l.bf16 %v2494
      %v2525 = vunpack.c.l.bf16 %v2495
      %v2526 = vunpack.c.l.bf16 %v2496
      %v2527 = vunpack.c.l.bf16 %v2497
      %v2528 = vunpack.c.l.bf16 %v2498
      %v2529 = vunpack.c.l.bf16 %v2499
      %v2530 = vunpack.c.l.bf16 %v2500
      %v2531 = vunpack.c.l.bf16 %v2501
      %v2532 = vunpack.c.l.bf16 %v2502
      %v2533 = vunpack.c.l.bf16 %v2503
      %v2534 = vunpack.c.l.bf16 %v2504
      %v2535 = vunpack.c.l.bf16 %v2505
      %v2536 = vunpack.c.l.bf16 %v2506
      %v2537 = vunpack.c.l.bf16 %v2507
      %v2538 = vunpack.c.l.bf16 %v2508
      %v2539 = vunpack.c.l.bf16 %v2509
      %v2540 = vunpack.c.l.bf16 %v2510
      %v2541 = vunpack.c.l.bf16 %v2511
      %v2542 = vunpack.c.l.bf16 %v2512
      %v2543 = vunpack.c.l.bf16 %v2513
      %v2544 = vunpack.c.l.bf16 %v2514
      %v2545 = vunpack.c.l.bf16 %v2515
      %v2546 = vunpack.c.l.bf16 %v2516
      %v2547 = vunpack.c.l.bf16 %v2517
      %v2548 = vunpack.c.l.bf16 %v2518
      %v2549 = vunpack.c.l.bf16 %v2519
      %v2550 = vunpack.c.l.bf16 %v2520
      %v2551 = vmax.f32 %v2521, 0.0
      %v2552 = vmax.f32 %v2522, 0.0
      %v2553 = vmax.f32 %v2523, 0.0
      %v2554 = vmax.f32 %v2524, 0.0
      %v2555 = vmax.f32 %v2525, 0.0
      %v2556 = vmax.f32 %v2526, 0.0
      %v2557 = vmax.f32 %v2527, 0.0
      %v2558 = vmax.f32 %v2528, 0.0
      %v2559 = vmax.f32 %v2529, 0.0
      %v2560 = vmax.f32 %v2530, 0.0
      %v2561 = vmax.f32 %v2531, 0.0
      %v2562 = vmax.f32 %v2532, 0.0
      %v2563 = vmax.f32 %v2533, 0.0
      %v2564 = vmax.f32 %v2534, 0.0
      %v2565 = vmax.f32 %v2535, 0.0
      %v2566 = vmax.f32 %v2536, 0.0
      %v2567 = vmax.f32 %v2537, 0.0
      %v2568 = vmax.f32 %v2538, 0.0
      %v2569 = vmax.f32 %v2539, 0.0
      %v2570 = vmax.f32 %v2540, 0.0
      %v2571 = vmax.f32 %v2541, 0.0
      %v2572 = vmax.f32 %v2542, 0.0
      %v2573 = vmax.f32 %v2543, 0.0
      %v2574 = vmax.f32 %v2544, 0.0
      %v2575 = vmax.f32 %v2545, 0.0
      %v2576 = vmax.f32 %v2546, 0.0
      %v2577 = vmax.f32 %v2547, 0.0
      %v2578 = vmax.f32 %v2548, 0.0
      %v2579 = vmax.f32 %v2549, 0.0
      %v2580 = vmax.f32 %v2550, 0.0
      %v2581 = vpack.c.bf16 %v2551, %v2551
      %v2582 = vpack.c.bf16 %v2552, %v2552
      %v2583 = vpack.c.bf16 %v2553, %v2553
      %v2584 = vpack.c.bf16 %v2554, %v2554
      %v2585 = vpack.c.bf16 %v2555, %v2555
      %v2586 = vpack.c.bf16 %v2556, %v2556
      %v2587 = vpack.c.bf16 %v2557, %v2557
      %v2588 = vpack.c.bf16 %v2558, %v2558
      %v2589 = vpack.c.bf16 %v2559, %v2559
      %v2590 = vpack.c.bf16 %v2560, %v2560
      %v2591 = vpack.c.bf16 %v2561, %v2561
      %v2592 = vpack.c.bf16 %v2562, %v2562
      %v2593 = vpack.c.bf16 %v2563, %v2563
      %v2594 = vpack.c.bf16 %v2564, %v2564
      %v2595 = vpack.c.bf16 %v2565, %v2565
      %v2596 = vpack.c.bf16 %v2566, %v2566
      %v2597 = vpack.c.bf16 %v2567, %v2567
      %v2598 = vpack.c.bf16 %v2568, %v2568
      %v2599 = vpack.c.bf16 %v2569, %v2569
      %v2600 = vpack.c.bf16 %v2570, %v2570
      %v2601 = vpack.c.bf16 %v2571, %v2571
      %v2602 = vpack.c.bf16 %v2572, %v2572
      %v2603 = vpack.c.bf16 %v2573, %v2573
      %v2604 = vpack.c.bf16 %v2574, %v2574
      %v2605 = vpack.c.bf16 %v2575, %v2575
      %v2606 = vpack.c.bf16 %v2576, %v2576
      %v2607 = vpack.c.bf16 %v2577, %v2577
      %v2608 = vpack.c.bf16 %v2578, %v2578
      %v2609 = vpack.c.bf16 %v2579, %v2579
      %v2610 = vpack.c.bf16 %v2580, %v2580
      %v2612 = vshrl.u32 %v2581, 16
      %v2614 = vrot.slane %v2612, 4
      %v2615 = vshll.u32 %v2581, 16
      %v2617 = vrot.slane %v2615, 5
      %v2618 = vor.u32 %v2614, %v2617
      %v2619 = vrot.slane %v2618, 4
      %v2621 = vshll.u32 %v2582, 16
      %v2623 = vrot.slane %v2621, 5
      %v2624 = vsel %vm427, %v2619, %v2623
      %v2625 = vshrl.u32 %v2582, 16
      %v2627 = vrot.slane %v2625, 4
      %v2628 = vor.u32 %v2627, %v2623
      %v2629 = vrot.slane %v2628, 4
      %v2631 = vshll.u32 %v2583, 16
      %v2633 = vrot.slane %v2631, 5
      %v2634 = vsel %vm427, %v2629, %v2633
      %v2636 = vshrl.u32 %v2584, 16
      %v2638 = vrot.slane %v2636, 4
      %v2639 = vshll.u32 %v2584, 16
      %v2641 = vrot.slane %v2639, 5
      %v2642 = vor.u32 %v2638, %v2641
      %v2643 = vrot.slane %v2642, 4
      %v2645 = vshll.u32 %v2585, 16
      %v2647 = vrot.slane %v2645, 5
      %v2648 = vsel %vm427, %v2643, %v2647
      %v2649 = vshrl.u32 %v2585, 16
      %v2651 = vrot.slane %v2649, 4
      %v2652 = vor.u32 %v2651, %v2647
      %v2653 = vrot.slane %v2652, 4
      %v2655 = vshll.u32 %v2586, 16
      %v2657 = vrot.slane %v2655, 5
      %v2658 = vsel %vm427, %v2653, %v2657
      %v2660 = vshrl.u32 %v2587, 16
      %v2662 = vrot.slane %v2660, 4
      %v2663 = vshll.u32 %v2587, 16
      %v2665 = vrot.slane %v2663, 5
      %v2666 = vor.u32 %v2662, %v2665
      %v2667 = vrot.slane %v2666, 4
      %v2669 = vshll.u32 %v2588, 16
      %v2671 = vrot.slane %v2669, 5
      %v2672 = vsel %vm427, %v2667, %v2671
      %v2673 = vshrl.u32 %v2588, 16
      %v2675 = vrot.slane %v2673, 4
      %v2676 = vor.u32 %v2675, %v2671
      %v2677 = vrot.slane %v2676, 4
      %v2679 = vshll.u32 %v2589, 16
      %v2681 = vrot.slane %v2679, 5
      %v2682 = vsel %vm427, %v2677, %v2681
      %v2684 = vshrl.u32 %v2590, 16
      %v2686 = vrot.slane %v2684, 4
      %v2687 = vshll.u32 %v2590, 16
      %v2689 = vrot.slane %v2687, 5
      %v2690 = vor.u32 %v2686, %v2689
      %v2691 = vrot.slane %v2690, 4
      %v2693 = vshll.u32 %v2591, 16
      %v2695 = vrot.slane %v2693, 5
      %v2696 = vsel %vm427, %v2691, %v2695
      %v2697 = vshrl.u32 %v2591, 16
      %v2699 = vrot.slane %v2697, 4
      %v2700 = vor.u32 %v2699, %v2695
      %v2701 = vrot.slane %v2700, 4
      %v2703 = vshll.u32 %v2592, 16
      %v2705 = vrot.slane %v2703, 5
      %v2706 = vsel %vm427, %v2701, %v2705
      %v2708 = vshrl.u32 %v2593, 16
      %v2710 = vrot.slane %v2708, 4
      %v2711 = vshll.u32 %v2593, 16
      %v2713 = vrot.slane %v2711, 5
      %v2714 = vor.u32 %v2710, %v2713
      %v2715 = vrot.slane %v2714, 4
      %v2717 = vshll.u32 %v2594, 16
      %v2719 = vrot.slane %v2717, 5
      %v2720 = vsel %vm427, %v2715, %v2719
      %v2721 = vshrl.u32 %v2594, 16
      %v2723 = vrot.slane %v2721, 4
      %v2724 = vor.u32 %v2723, %v2719
      %v2725 = vrot.slane %v2724, 4
      %v2727 = vshll.u32 %v2595, 16
      %v2729 = vrot.slane %v2727, 5
      %v2730 = vsel %vm427, %v2725, %v2729
      %v2732 = vshrl.u32 %v2596, 16
      %v2734 = vrot.slane %v2732, 4
      %v2735 = vshll.u32 %v2596, 16
      %v2737 = vrot.slane %v2735, 5
      %v2738 = vor.u32 %v2734, %v2737
      %v2739 = vrot.slane %v2738, 4
      %v2741 = vshll.u32 %v2597, 16
      %v2743 = vrot.slane %v2741, 5
      %v2744 = vsel %vm427, %v2739, %v2743
      %v2745 = vshrl.u32 %v2597, 16
      %v2747 = vrot.slane %v2745, 4
      %v2748 = vor.u32 %v2747, %v2743
      %v2749 = vrot.slane %v2748, 4
      %v2751 = vshll.u32 %v2598, 16
      %v2753 = vrot.slane %v2751, 5
      %v2754 = vsel %vm427, %v2749, %v2753
      %v2756 = vshrl.u32 %v2599, 16
      %v2758 = vrot.slane %v2756, 4
      %v2759 = vshll.u32 %v2599, 16
      %v2761 = vrot.slane %v2759, 5
      %v2762 = vor.u32 %v2758, %v2761
      %v2763 = vrot.slane %v2762, 4
      %v2765 = vshll.u32 %v2600, 16
      %v2767 = vrot.slane %v2765, 5
      %v2768 = vsel %vm427, %v2763, %v2767
      %v2769 = vshrl.u32 %v2600, 16
      %v2771 = vrot.slane %v2769, 4
      %v2772 = vor.u32 %v2771, %v2767
      %v2773 = vrot.slane %v2772, 4
      %v2775 = vshll.u32 %v2601, 16
      %v2777 = vrot.slane %v2775, 5
      %v2778 = vsel %vm427, %v2773, %v2777
      %v2780 = vshrl.u32 %v2602, 16
      %v2782 = vrot.slane %v2780, 4
      %v2783 = vshll.u32 %v2602, 16
      %v2785 = vrot.slane %v2783, 5
      %v2786 = vor.u32 %v2782, %v2785
      %v2787 = vrot.slane %v2786, 4
      %v2789 = vshll.u32 %v2603, 16
      %v2791 = vrot.slane %v2789, 5
      %v2792 = vsel %vm427, %v2787, %v2791
      %v2793 = vshrl.u32 %v2603, 16
      %v2795 = vrot.slane %v2793, 4
      %v2796 = vor.u32 %v2795, %v2791
      %v2797 = vrot.slane %v2796, 4
      %v2799 = vshll.u32 %v2604, 16
      %v2801 = vrot.slane %v2799, 5
      %v2802 = vsel %vm427, %v2797, %v2801
      %v2804 = vshrl.u32 %v2605, 16
      %v2806 = vrot.slane %v2804, 4
      %v2807 = vshll.u32 %v2605, 16
      %v2809 = vrot.slane %v2807, 5
      %v2810 = vor.u32 %v2806, %v2809
      %v2811 = vrot.slane %v2810, 4
      %v2813 = vshll.u32 %v2606, 16
      %v2815 = vrot.slane %v2813, 5
      %v2816 = vsel %vm427, %v2811, %v2815
      %v2817 = vshrl.u32 %v2606, 16
      %v2819 = vrot.slane %v2817, 4
      %v2820 = vor.u32 %v2819, %v2815
      %v2821 = vrot.slane %v2820, 4
      %v2823 = vshll.u32 %v2607, 16
      %v2825 = vrot.slane %v2823, 5
      %v2826 = vsel %vm427, %v2821, %v2825
      %v2828 = vshrl.u32 %v2608, 16
      %v2830 = vrot.slane %v2828, 4
      %v2831 = vshll.u32 %v2608, 16
      %v2833 = vrot.slane %v2831, 5
      %v2834 = vor.u32 %v2830, %v2833
      %v2835 = vrot.slane %v2834, 4
      %v2837 = vshll.u32 %v2609, 16
      %v2839 = vrot.slane %v2837, 5
      %v2840 = vsel %vm427, %v2835, %v2839
      %v2841 = vshrl.u32 %v2609, 16
      %v2843 = vrot.slane %v2841, 4
      %v2844 = vor.u32 %v2843, %v2839
      %v2845 = vrot.slane %v2844, 4
      %v2847 = vshll.u32 %v2610, 16
      %v2849 = vrot.slane %v2847, 5
      %v2850 = vsel %vm427, %v2845, %v2849
      %s2851 = scalar_lea.vmem %s1, 28
      %v2852 = vld [vmem:[%s2851] sm:$0xf]
      %v2853 = vunpack.c.l.b16 %v2624
      %v2854 = vunpack.c.l.b16 %v2634
      %v2855 = vunpack.c.l.b16 %v2648
      %v2856 = vunpack.c.l.b16 %v2658
      %v2857 = vunpack.c.l.b16 %v2672
      %v2858 = vunpack.c.l.b16 %v2682
      %v2859 = vunpack.c.l.b16 %v2696
      %v2860 = vunpack.c.l.b16 %v2706
      %v2861 = vunpack.c.l.b16 %v2720
      %v2862 = vunpack.c.l.b16 %v2730
      %v2863 = vunpack.c.l.b16 %v2744
      %v2864 = vunpack.c.l.b16 %v2754
      %v2865 = vunpack.c.l.b16 %v2768
      %v2866 = vunpack.c.l.b16 %v2778
      %v2867 = vunpack.c.l.b16 %v2792
      %v2868 = vunpack.c.l.b16 %v2802
      %v2869 = vunpack.c.l.b16 %v2816
      %v2870 = vunpack.c.l.b16 %v2826
      %v2871 = vunpack.c.l.b16 %v2840
      %v2872 = vunpack.c.l.b16 %v2850
      %v2873 = vpack.c.b16 %v2854, %v2853
      %v2874 = vpack.c.b16 %v2856, %v2855
      %v2875 = vpack.c.b16 %v2858, %v2857
      %v2876 = vpack.c.b16 %v2860, %v2859
      %v2877 = vpack.c.b16 %v2862, %v2861
      %v2878 = vpack.c.b16 %v2864, %v2863
      %v2879 = vpack.c.b16 %v2866, %v2865
      %v2880 = vpack.c.b16 %v2868, %v2867
      %v2881 = vpack.c.b16 %v2870, %v2869
      %v2882 = vpack.c.b16 %v2872, %v2871
      %v2884 = vsel %vm700, %v2873, 0
      %v2887 = vsel %vm700, %v2874, 0
      %v2890 = vsel %vm700, %v2875, 0
      %v2893 = vsel %vm700, %v2876, 0
      %v2896 = vsel %vm700, %v2877, 0
      %v2899 = vsel %vm700, %v2878, 0
      %v2902 = vsel %vm700, %v2879, 0
      %v2905 = vsel %vm700, %v2880, 0
      %v2908 = vsel %vm700, %v2881, 0
      %v2911 = vsel %vm700, %v2882, 0
      %v2914 = vsel %vm731, %v2852, 0
      %2916 = vmatpush.bf16.msra.mxu0 0
      %2917 = vmatpush.bf16.msra.mxu0 0
      %2918 = vmatpush.bf16.msra.mxu0 0
      %2919 = vmatpush.bf16.msra.mxu0 0
      %2920 = vmatpush.bf16.msra.mxu0 0
      %2921 = vmatpush.bf16.msra.mxu0 0
      %2922 = vmatpush.bf16.msra.mxu0 0
      %2923 = vmatpush.bf16.msra.mxu0 %v2914
      %2924 = vmatmul.bf16.gmra.mxu0 %v2884
      %v2925 = vpop.f32.mrf.mxu0
      %v2926 = vadd.f32 0.0, %v2925
      %v2927 = vpop.f32.mrf.mxu0
      %v2928 = vadd.f32 0.0, %v2927
      %2929 = vmatmul.bf16.gmra.mxu0 %v2887
      %v2930 = vpop.f32.mrf.mxu0
      %v2931 = vadd.f32 0.0, %v2930
      %v2932 = vpop.f32.mrf.mxu0
      %v2933 = vadd.f32 0.0, %v2932
      %2934 = vmatmul.bf16.gmra.mxu0 %v2890
      %v2935 = vpop.f32.mrf.mxu0
      %v2936 = vadd.f32 0.0, %v2935
      %v2937 = vpop.f32.mrf.mxu0
      %v2938 = vadd.f32 0.0, %v2937
      %2939 = vmatmul.bf16.gmra.mxu0 %v2893
      %v2940 = vpop.f32.mrf.mxu0
      %v2941 = vadd.f32 0.0, %v2940
      %v2942 = vpop.f32.mrf.mxu0
      %v2943 = vadd.f32 0.0, %v2942
      %2944 = vmatmul.bf16.gmra.mxu0 %v2896
      %v2945 = vpop.f32.mrf.mxu0
      %v2946 = vadd.f32 0.0, %v2945
      %v2947 = vpop.f32.mrf.mxu0
      %v2948 = vadd.f32 0.0, %v2947
      %2949 = vmatmul.bf16.gmra.mxu0 %v2899
      %v2950 = vpop.f32.mrf.mxu0
      %v2951 = vadd.f32 0.0, %v2950
      %v2952 = vpop.f32.mrf.mxu0
      %v2953 = vadd.f32 0.0, %v2952
      %2954 = vmatmul.bf16.gmra.mxu0 %v2902
      %v2955 = vpop.f32.mrf.mxu0
      %v2956 = vadd.f32 0.0, %v2955
      %v2957 = vpop.f32.mrf.mxu0
      %v2958 = vadd.f32 0.0, %v2957
      %2959 = vmatmul.bf16.gmra.mxu0 %v2905
      %v2960 = vpop.f32.mrf.mxu0
      %v2961 = vadd.f32 0.0, %v2960
      %v2962 = vpop.f32.mrf.mxu0
      %v2963 = vadd.f32 0.0, %v2962
      %2964 = vmatmul.bf16.gmra.mxu0 %v2908
      %v2965 = vpop.f32.mrf.mxu0
      %v2966 = vadd.f32 0.0, %v2965
      %v2967 = vpop.f32.mrf.mxu0
      %v2968 = vadd.f32 0.0, %v2967
      %2969 = vmatmul.bf16.gmra.mxu0 %v2911
      %v2970 = vpop.f32.mrf.mxu0
      %v2971 = vadd.f32 0.0, %v2970
      %v2972 = vpop.f32.mrf.mxu0
      %v2973 = vadd.f32 0.0, %v2972
      %2974 = vdwg.mxu0
      %v2975 = vadd.f32 %v2471, %v2926
      %v2976 = vadd.f32 %v2472, %v2928
      %v2977 = vadd.f32 %v2473, %v2931
      %v2978 = vadd.f32 %v2474, %v2933
      %v2979 = vadd.f32 %v2475, %v2936
      %v2980 = vadd.f32 %v2476, %v2938
      %v2981 = vadd.f32 %v2477, %v2941
      %v2982 = vadd.f32 %v2478, %v2943
      %v2983 = vadd.f32 %v2479, %v2946
      %v2984 = vadd.f32 %v2480, %v2948
      %v2985 = vadd.f32 %v2481, %v2951
      %v2986 = vadd.f32 %v2482, %v2953
      %v2987 = vadd.f32 %v2483, %v2956
      %v2988 = vadd.f32 %v2484, %v2958
      %v2989 = vadd.f32 %v2485, %v2961
      %v2990 = vadd.f32 %v2486, %v2963
      %v2991 = vadd.f32 %v2487, %v2966
      %v2992 = vadd.f32 %v2488, %v2968
      %v2993 = vadd.f32 %v2489, %v2971
      %v2994 = vadd.f32 %v2490, %v2973
      %v2995 = vld [vmem:[%s2246] sm:$0xe]
      %v2996 = vld [vmem:[%s2246 + $0xc] sm:$0xe]
      %v2997 = vld [vmem:[%s2246 + $0x18] sm:$0xe]
      %v2998 = vld [vmem:[%s2246 + $0x24] sm:$0xe]
      %v2999 = vld [vmem:[%s2246 + $0x30] sm:$0xe]
      %v3000 = vld [vmem:[%s2246 + $0x3c] sm:$0xe]
      %v3001 = vld [vmem:[%s2246 + $0x48] sm:$0xe]
      %v3002 = vld [vmem:[%s2246 + $0x54] sm:$0xe]
      %v3003 = vld [vmem:[%s2246 + $0x60] sm:$0xe]
      %v3004 = vld [vmem:[%s2246 + $0x6c] sm:$0xe]
      %v3005 = vunpack.c.l.bf16 %v2995
      %v3006 = vunpack.c.l.bf16 %v2996
      %v3007 = vunpack.c.l.bf16 %v2997
      %v3008 = vunpack.c.l.bf16 %v2998
      %v3009 = vunpack.c.l.bf16 %v2999
      %v3010 = vunpack.c.l.bf16 %v3000
      %v3011 = vunpack.c.l.bf16 %v3001
      %v3012 = vunpack.c.l.bf16 %v3002
      %v3013 = vunpack.c.l.bf16 %v3003
      %v3014 = vunpack.c.l.bf16 %v3004
      %v3015 = vmax.f32 %v3005, 0.0
      %v3016 = vmax.f32 %v3006, 0.0
      %v3017 = vmax.f32 %v3007, 0.0
      %v3018 = vmax.f32 %v3008, 0.0
      %v3019 = vmax.f32 %v3009, 0.0
      %v3020 = vmax.f32 %v3010, 0.0
      %v3021 = vmax.f32 %v3011, 0.0
      %v3022 = vmax.f32 %v3012, 0.0
      %v3023 = vmax.f32 %v3013, 0.0
      %v3024 = vmax.f32 %v3014, 0.0
      %v3025 = vpack.c.bf16 %v3015, %v3015
      %v3026 = vpack.c.bf16 %v3016, %v3016
      %v3027 = vpack.c.bf16 %v3017, %v3017
      %v3028 = vpack.c.bf16 %v3018, %v3018
      %v3029 = vpack.c.bf16 %v3019, %v3019
      %v3030 = vpack.c.bf16 %v3020, %v3020
      %v3031 = vpack.c.bf16 %v3021, %v3021
      %v3032 = vpack.c.bf16 %v3022, %v3022
      %v3033 = vpack.c.bf16 %v3023, %v3023
      %v3034 = vpack.c.bf16 %v3024, %v3024
      %v3065 = vrot.slane %v3025, 5
      %v3066 = vrot.slane %v3065, 4
      %v3067 = vrot.slane %v2582, 5
      %v3068 = vsel %vm998, %v3066, %v3067
      %v3069 = vrot.slane %v3067, 4
      %v3070 = vrot.slane %v2583, 5
      %v3071 = vsel %vm998, %v3069, %v3070
      %v3072 = vrot.slane %v3026, 5
      %v3073 = vrot.slane %v3072, 4
      %v3074 = vrot.slane %v2585, 5
      %v3075 = vsel %vm998, %v3073, %v3074
      %v3076 = vrot.slane %v3074, 4
      %v3077 = vrot.slane %v2586, 5
      %v3078 = vsel %vm998, %v3076, %v3077
      %v3079 = vrot.slane %v3027, 5
      %v3080 = vrot.slane %v3079, 4
      %v3081 = vrot.slane %v2588, 5
      %v3082 = vsel %vm998, %v3080, %v3081
      %v3083 = vrot.slane %v3081, 4
      %v3084 = vrot.slane %v2589, 5
      %v3085 = vsel %vm998, %v3083, %v3084
      %v3086 = vrot.slane %v3028, 5
      %v3087 = vrot.slane %v3086, 4
      %v3088 = vrot.slane %v2591, 5
      %v3089 = vsel %vm998, %v3087, %v3088
      %v3090 = vrot.slane %v3088, 4
      %v3091 = vrot.slane %v2592, 5
      %v3092 = vsel %vm998, %v3090, %v3091
      %v3093 = vrot.slane %v3029, 5
      %v3094 = vrot.slane %v3093, 4
      %v3095 = vrot.slane %v2594, 5
      %v3096 = vsel %vm998, %v3094, %v3095
      %v3097 = vrot.slane %v3095, 4
      %v3098 = vrot.slane %v2595, 5
      %v3099 = vsel %vm998, %v3097, %v3098
      %v3100 = vrot.slane %v3030, 5
      %v3101 = vrot.slane %v3100, 4
      %v3102 = vrot.slane %v2597, 5
      %v3103 = vsel %vm998, %v3101, %v3102
      %v3104 = vrot.slane %v3102, 4
      %v3105 = vrot.slane %v2598, 5
      %v3106 = vsel %vm998, %v3104, %v3105
      %v3107 = vrot.slane %v3031, 5
      %v3108 = vrot.slane %v3107, 4
      %v3109 = vrot.slane %v2600, 5
      %v3110 = vsel %vm998, %v3108, %v3109
      %v3111 = vrot.slane %v3109, 4
      %v3112 = vrot.slane %v2601, 5
      %v3113 = vsel %vm998, %v3111, %v3112
      %v3114 = vrot.slane %v3032, 5
      %v3115 = vrot.slane %v3114, 4
      %v3116 = vrot.slane %v2603, 5
      %v3117 = vsel %vm998, %v3115, %v3116
      %v3118 = vrot.slane %v3116, 4
      %v3119 = vrot.slane %v2604, 5
      %v3120 = vsel %vm998, %v3118, %v3119
      %v3121 = vrot.slane %v3033, 5
      %v3122 = vrot.slane %v3121, 4
      %v3123 = vrot.slane %v2606, 5
      %v3124 = vsel %vm998, %v3122, %v3123
      %v3125 = vrot.slane %v3123, 4
      %v3126 = vrot.slane %v2607, 5
      %v3127 = vsel %vm998, %v3125, %v3126
      %v3128 = vrot.slane %v3034, 5
      %v3129 = vrot.slane %v3128, 4
      %v3130 = vrot.slane %v2609, 5
      %v3131 = vsel %vm998, %v3129, %v3130
      %v3132 = vrot.slane %v3130, 4
      %v3133 = vrot.slane %v2610, 5
      %v3134 = vsel %vm998, %v3132, %v3133
      %s3135 = scalar_lea.vmem %s1, 32
      %v3136 = vld [vmem:[%s3135] sm:$0xf]
      %v3137 = vunpack.c.l.b16 %v3068
      %v3138 = vunpack.c.l.b16 %v3071
      %v3139 = vunpack.c.l.b16 %v3075
      %v3140 = vunpack.c.l.b16 %v3078
      %v3141 = vunpack.c.l.b16 %v3082
      %v3142 = vunpack.c.l.b16 %v3085
      %v3143 = vunpack.c.l.b16 %v3089
      %v3144 = vunpack.c.l.b16 %v3092
      %v3145 = vunpack.c.l.b16 %v3096
      %v3146 = vunpack.c.l.b16 %v3099
      %v3147 = vunpack.c.l.b16 %v3103
      %v3148 = vunpack.c.l.b16 %v3106
      %v3149 = vunpack.c.l.b16 %v3110
      %v3150 = vunpack.c.l.b16 %v3113
      %v3151 = vunpack.c.l.b16 %v3117
      %v3152 = vunpack.c.l.b16 %v3120
      %v3153 = vunpack.c.l.b16 %v3124
      %v3154 = vunpack.c.l.b16 %v3127
      %v3155 = vunpack.c.l.b16 %v3131
      %v3156 = vunpack.c.l.b16 %v3134
      %v3157 = vpack.c.b16 %v3138, %v3137
      %v3158 = vpack.c.b16 %v3140, %v3139
      %v3159 = vpack.c.b16 %v3142, %v3141
      %v3160 = vpack.c.b16 %v3144, %v3143
      %v3161 = vpack.c.b16 %v3146, %v3145
      %v3162 = vpack.c.b16 %v3148, %v3147
      %v3163 = vpack.c.b16 %v3150, %v3149
      %v3164 = vpack.c.b16 %v3152, %v3151
      %v3165 = vpack.c.b16 %v3154, %v3153
      %v3166 = vpack.c.b16 %v3156, %v3155
      %v3168 = vsel %vm700, %v3157, 0
      %v3171 = vsel %vm700, %v3158, 0
      %v3174 = vsel %vm700, %v3159, 0
      %v3177 = vsel %vm700, %v3160, 0
      %v3180 = vsel %vm700, %v3161, 0
      %v3183 = vsel %vm700, %v3162, 0
      %v3186 = vsel %vm700, %v3163, 0
      %v3189 = vsel %vm700, %v3164, 0
      %v3192 = vsel %vm700, %v3165, 0
      %v3195 = vsel %vm700, %v3166, 0
      %v3198 = vsel %vm731, %v3136, 0
      %3200 = vmatpush.bf16.msra.mxu0 0
      %3201 = vmatpush.bf16.msra.mxu0 0
      %3202 = vmatpush.bf16.msra.mxu0 0
      %3203 = vmatpush.bf16.msra.mxu0 0
      %3204 = vmatpush.bf16.msra.mxu0 0
      %3205 = vmatpush.bf16.msra.mxu0 0
      %3206 = vmatpush.bf16.msra.mxu0 0
      %3207 = vmatpush.bf16.msra.mxu0 %v3198
      %3208 = vmatmul.bf16.gmra.mxu0 %v3168
      %v3209 = vpop.f32.mrf.mxu0
      %v3210 = vadd.f32 0.0, %v3209
      %v3211 = vpop.f32.mrf.mxu0
      %v3212 = vadd.f32 0.0, %v3211
      %3213 = vmatmul.bf16.gmra.mxu0 %v3171
      %v3214 = vpop.f32.mrf.mxu0
      %v3215 = vadd.f32 0.0, %v3214
      %v3216 = vpop.f32.mrf.mxu0
      %v3217 = vadd.f32 0.0, %v3216
      %3218 = vmatmul.bf16.gmra.mxu0 %v3174
      %v3219 = vpop.f32.mrf.mxu0
      %v3220 = vadd.f32 0.0, %v3219
      %v3221 = vpop.f32.mrf.mxu0
      %v3222 = vadd.f32 0.0, %v3221
      %3223 = vmatmul.bf16.gmra.mxu0 %v3177
      %v3224 = vpop.f32.mrf.mxu0
      %v3225 = vadd.f32 0.0, %v3224
      %v3226 = vpop.f32.mrf.mxu0
      %v3227 = vadd.f32 0.0, %v3226
      %3228 = vmatmul.bf16.gmra.mxu0 %v3180
      %v3229 = vpop.f32.mrf.mxu0
      %v3230 = vadd.f32 0.0, %v3229
      %v3231 = vpop.f32.mrf.mxu0
      %v3232 = vadd.f32 0.0, %v3231
      %3233 = vmatmul.bf16.gmra.mxu0 %v3183
      %v3234 = vpop.f32.mrf.mxu0
      %v3235 = vadd.f32 0.0, %v3234
      %v3236 = vpop.f32.mrf.mxu0
      %v3237 = vadd.f32 0.0, %v3236
      %3238 = vmatmul.bf16.gmra.mxu0 %v3186
      %v3239 = vpop.f32.mrf.mxu0
      %v3240 = vadd.f32 0.0, %v3239
      %v3241 = vpop.f32.mrf.mxu0
      %v3242 = vadd.f32 0.0, %v3241
      %3243 = vmatmul.bf16.gmra.mxu0 %v3189
      %v3244 = vpop.f32.mrf.mxu0
      %v3245 = vadd.f32 0.0, %v3244
      %v3246 = vpop.f32.mrf.mxu0
      %v3247 = vadd.f32 0.0, %v3246
      %3248 = vmatmul.bf16.gmra.mxu0 %v3192
      %v3249 = vpop.f32.mrf.mxu0
      %v3250 = vadd.f32 0.0, %v3249
      %v3251 = vpop.f32.mrf.mxu0
      %v3252 = vadd.f32 0.0, %v3251
      %3253 = vmatmul.bf16.gmra.mxu0 %v3195
      %v3254 = vpop.f32.mrf.mxu0
      %v3255 = vadd.f32 0.0, %v3254
      %v3256 = vpop.f32.mrf.mxu0
      %v3257 = vadd.f32 0.0, %v3256
      %3258 = vdwg.mxu0
      %v3259 = vadd.f32 %v2975, %v3210
      %v3260 = vadd.f32 %v2976, %v3212
      %v3261 = vadd.f32 %v2977, %v3215
      %v3262 = vadd.f32 %v2978, %v3217
      %v3263 = vadd.f32 %v2979, %v3220
      %v3264 = vadd.f32 %v2980, %v3222
      %v3265 = vadd.f32 %v2981, %v3225
      %v3266 = vadd.f32 %v2982, %v3227
      %v3267 = vadd.f32 %v2983, %v3230
      %v3268 = vadd.f32 %v2984, %v3232
      %v3269 = vadd.f32 %v2985, %v3235
      %v3270 = vadd.f32 %v2986, %v3237
      %v3271 = vadd.f32 %v2987, %v3240
      %v3272 = vadd.f32 %v2988, %v3242
      %v3273 = vadd.f32 %v2989, %v3245
      %v3274 = vadd.f32 %v2990, %v3247
      %v3275 = vadd.f32 %v2991, %v3250
      %v3276 = vadd.f32 %v2992, %v3252
      %v3277 = vadd.f32 %v2993, %v3255
      %v3278 = vadd.f32 %v2994, %v3257
      %v3279 = vld [vmem:[%s2] sm:$0x1]
      %v3281 = vperm.slane %v3279, 0
      %v3283 = vadd.f32 %v3259, %v3281
      %v3284 = vadd.f32 %v3260, %v3281
      %v3285 = vadd.f32 %v3261, %v3281
      %v3286 = vadd.f32 %v3262, %v3281
      %v3287 = vadd.f32 %v3263, %v3281
      %v3288 = vadd.f32 %v3264, %v3281
      %v3289 = vadd.f32 %v3265, %v3281
      %v3290 = vadd.f32 %v3266, %v3281
      %v3291 = vadd.f32 %v3267, %v3281
      %v3292 = vadd.f32 %v3268, %v3281
      %v3293 = vadd.f32 %v3269, %v3281
      %v3294 = vadd.f32 %v3270, %v3281
      %v3295 = vadd.f32 %v3271, %v3281
      %v3296 = vadd.f32 %v3272, %v3281
      %v3297 = vadd.f32 %v3273, %v3281
      %v3298 = vadd.f32 %v3274, %v3281
      %v3299 = vadd.f32 %v3275, %v3281
      %v3300 = vadd.f32 %v3276, %v3281
      %v3301 = vadd.f32 %v3277, %v3281
      %v3302 = vadd.f32 %v3278, %v3281
      %v3303 = vmax.f32 %v3283, 0.0
      %v3304 = vmax.f32 %v3284, 0.0
      %v3305 = vmax.f32 %v3285, 0.0
      %v3306 = vmax.f32 %v3286, 0.0
      %v3307 = vmax.f32 %v3287, 0.0
      %v3308 = vmax.f32 %v3288, 0.0
      %v3309 = vmax.f32 %v3289, 0.0
      %v3310 = vmax.f32 %v3290, 0.0
      %v3311 = vmax.f32 %v3291, 0.0
      %v3312 = vmax.f32 %v3292, 0.0
      %v3313 = vmax.f32 %v3293, 0.0
      %v3314 = vmax.f32 %v3294, 0.0
      %v3315 = vmax.f32 %v3295, 0.0
      %v3316 = vmax.f32 %v3296, 0.0
      %v3317 = vmax.f32 %v3297, 0.0
      %v3318 = vmax.f32 %v3298, 0.0
      %v3319 = vmax.f32 %v3299, 0.0
      %v3320 = vmax.f32 %v3300, 0.0
      %v3321 = vmax.f32 %v3301, 0.0
      %v3322 = vmax.f32 %v3302, 0.0
      %v3323 = vpack.c.bf16 %v3303, %v3303
      %v3324 = vpack.c.bf16 %v3304, %v3304
      %v3325 = vpack.c.bf16 %v3305, %v3305
      %v3326 = vpack.c.bf16 %v3306, %v3306
      %v3327 = vpack.c.bf16 %v3307, %v3307
      %v3328 = vpack.c.bf16 %v3308, %v3308
      %v3329 = vpack.c.bf16 %v3309, %v3309
      %v3330 = vpack.c.bf16 %v3310, %v3310
      %v3331 = vpack.c.bf16 %v3311, %v3311
      %v3332 = vpack.c.bf16 %v3312, %v3312
      %v3333 = vpack.c.bf16 %v3313, %v3313
      %v3334 = vpack.c.bf16 %v3314, %v3314
      %v3335 = vpack.c.bf16 %v3315, %v3315
      %v3336 = vpack.c.bf16 %v3316, %v3316
      %v3337 = vpack.c.bf16 %v3317, %v3317
      %v3338 = vpack.c.bf16 %v3318, %v3318
      %v3339 = vpack.c.bf16 %v3319, %v3319
      %v3340 = vpack.c.bf16 %v3320, %v3320
      %v3341 = vpack.c.bf16 %v3321, %v3321
      %v3342 = vpack.c.bf16 %v3322, %v3322
      %vm3343 = vcmask 1040384
      %vm3344 = vsmask.f32 256
      %vm3345 = vmand %vm3343, %vm3344
      %v3346 = vld [vmem:[#allocation2] sm:$0x1]
      %v3347 = vsel %vm3345, 0, %v3346
      %3348 = vst [vmem:[#allocation2] sm:$0x1] %v3347
      %v3349 = vld [vmem:[#allocation2 + $0xc] sm:$0x1]
      %v3350 = vsel %vm3345, 0, %v3349
      %3351 = vst [vmem:[#allocation2 + $0xc] sm:$0x1] %v3350
      %v3352 = vld [vmem:[#allocation2 + $0x18] sm:$0x1]
      %v3353 = vsel %vm3345, 0, %v3352
      %3354 = vst [vmem:[#allocation2 + $0x18] sm:$0x1] %v3353
      %v3355 = vld [vmem:[#allocation2 + $0x24] sm:$0x1]
      %v3356 = vsel %vm3345, 0, %v3355
      %3357 = vst [vmem:[#allocation2 + $0x24] sm:$0x1] %v3356
      %v3358 = vld [vmem:[#allocation2 + $0x30] sm:$0x1]
      %v3359 = vsel %vm3345, 0, %v3358
      %3360 = vst [vmem:[#allocation2 + $0x30] sm:$0x1] %v3359
      %v3361 = vld [vmem:[#allocation2 + $0x3c] sm:$0x1]
      %v3362 = vsel %vm3345, 0, %v3361
      %3363 = vst [vmem:[#allocation2 + $0x3c] sm:$0x1] %v3362
      %v3364 = vld [vmem:[#allocation2 + $0x48] sm:$0x1]
      %v3365 = vsel %vm3345, 0, %v3364
      %3366 = vst [vmem:[#allocation2 + $0x48] sm:$0x1] %v3365
      %v3367 = vld [vmem:[#allocation2 + $0x54] sm:$0x1]
      %v3368 = vsel %vm3345, 0, %v3367
      %3369 = vst [vmem:[#allocation2 + $0x54] sm:$0x1] %v3368
      %v3370 = vld [vmem:[#allocation2 + $0x60] sm:$0x1]
      %v3371 = vsel %vm3345, 0, %v3370
      %3372 = vst [vmem:[#allocation2 + $0x60] sm:$0x1] %v3371
      %v3373 = vld [vmem:[#allocation2 + $0x6c] sm:$0x1]
      %v3374 = vsel %vm3345, 0, %v3373
      %3375 = vst [vmem:[#allocation2 + $0x6c] sm:$0x1] %v3374
      %vm3376 = vsmask.f32 7938
      %vm3377 = vmand %vm3343, %vm3376
      %v3378 = vld [vmem:[#allocation2 + $0x8] sm:$0x1]
      %v3379 = vsel %vm3377, 0, %v3378
      %3380 = vst [vmem:[#allocation2 + $0x8] sm:$0x1] %v3379
      %v3381 = vld [vmem:[#allocation2 + $0x14] sm:$0x1]
      %v3382 = vsel %vm3377, 0, %v3381
      %3383 = vst [vmem:[#allocation2 + $0x14] sm:$0x1] %v3382
      %v3384 = vld [vmem:[#allocation2 + $0x20] sm:$0x1]
      %v3385 = vsel %vm3377, 0, %v3384
      %3386 = vst [vmem:[#allocation2 + $0x20] sm:$0x1] %v3385
      %v3387 = vld [vmem:[#allocation2 + $0x2c] sm:$0x1]
      %v3388 = vsel %vm3377, 0, %v3387
      %3389 = vst [vmem:[#allocation2 + $0x2c] sm:$0x1] %v3388
      %v3390 = vld [vmem:[#allocation2 + $0x38] sm:$0x1]
      %v3391 = vsel %vm3377, 0, %v3390
      %3392 = vst [vmem:[#allocation2 + $0x38] sm:$0x1] %v3391
      %v3393 = vld [vmem:[#allocation2 + $0x44] sm:$0x1]
      %v3394 = vsel %vm3377, 0, %v3393
      %3395 = vst [vmem:[#allocation2 + $0x44] sm:$0x1] %v3394
      %v3396 = vld [vmem:[#allocation2 + $0x50] sm:$0x1]
      %v3397 = vsel %vm3377, 0, %v3396
      %3398 = vst [vmem:[#allocation2 + $0x50] sm:$0x1] %v3397
      %v3399 = vld [vmem:[#allocation2 + $0x5c] sm:$0x1]
      %v3400 = vsel %vm3377, 0, %v3399
      %3401 = vst [vmem:[#allocation2 + $0x5c] sm:$0x1] %v3400
      %v3402 = vld [vmem:[#allocation2 + $0x68] sm:$0x1]
      %v3403 = vsel %vm3377, 0, %v3402
      %3404 = vst [vmem:[#allocation2 + $0x68] sm:$0x1] %v3403
      %v3405 = vld [vmem:[#allocation2 + $0x74] sm:$0x1]
      %v3406 = vsel %vm3377, 0, %v3405
      %3407 = vst [vmem:[#allocation2 + $0x74] sm:$0x1] %v3406
      %vm3408 = vsmask.f32 4368
      %vm3409 = vmor %vm3344, %vm3408
      %v3411 = vshrl.u32 %v3323, 16
      %v3413 = vrot.slane %v3411, 7
      %v3414 = vshll.u32 %v3323, 16
      %v3416 = vor.u32 %v3413, %v3414
      %v3417 = vrot.slane %v3413, 4
      %v3419 = vshrl.u32 %v3324, 16
      %v3421 = vrot.slane %v3419, 7
      %v3422 = vshll.u32 %v3324, 16
      %v3424 = vor.u32 %v3421, %v3422
      %v3425 = vsel %vm3409, %v3417, %v3424
      %v3426 = vrot.slane %v3421, 4
      %v3428 = vshrl.u32 %v3325, 16
      %v3430 = vrot.slane %v3428, 7
      %v3431 = vshll.u32 %v3325, 16
      %v3433 = vor.u32 %v3430, %v3431
      %v3434 = vrot.slane %v3430, 4
      %v3436 = vshrl.u32 %v3326, 16
      %v3438 = vrot.slane %v3436, 7
      %v3439 = vshll.u32 %v3326, 16
      %v3441 = vor.u32 %v3438, %v3439
      %v3442 = vsel %vm3409, %v3434, %v3441
      %v3443 = vrot.slane %v3438, 4
      %v3445 = vshrl.u32 %v3327, 16
      %v3447 = vrot.slane %v3445, 7
      %v3448 = vshll.u32 %v3327, 16
      %v3450 = vor.u32 %v3447, %v3448
      %v3451 = vrot.slane %v3447, 4
      %v3453 = vshrl.u32 %v3328, 16
      %v3455 = vrot.slane %v3453, 7
      %v3456 = vshll.u32 %v3328, 16
      %v3458 = vor.u32 %v3455, %v3456
      %v3459 = vsel %vm3409, %v3451, %v3458
      %v3460 = vrot.slane %v3455, 4
      %v3462 = vshrl.u32 %v3329, 16
      %v3464 = vrot.slane %v3462, 7
      %v3465 = vshll.u32 %v3329, 16
      %v3467 = vor.u32 %v3464, %v3465
      %v3468 = vrot.slane %v3464, 4
      %v3470 = vshrl.u32 %v3330, 16
      %v3472 = vrot.slane %v3470, 7
      %v3473 = vshll.u32 %v3330, 16
      %v3475 = vor.u32 %v3472, %v3473
      %v3476 = vsel %vm3409, %v3468, %v3475
      %v3477 = vrot.slane %v3472, 4
      %v3479 = vshrl.u32 %v3331, 16
      %v3481 = vrot.slane %v3479, 7
      %v3482 = vshll.u32 %v3331, 16
      %v3484 = vor.u32 %v3481, %v3482
      %v3485 = vrot.slane %v3481, 4
      %v3487 = vshrl.u32 %v3332, 16
      %v3489 = vrot.slane %v3487, 7
      %v3490 = vshll.u32 %v3332, 16
      %v3492 = vor.u32 %v3489, %v3490
      %v3493 = vsel %vm3409, %v3485, %v3492
      %v3494 = vrot.slane %v3489, 4
      %v3496 = vshrl.u32 %v3333, 16
      %v3498 = vrot.slane %v3496, 7
      %v3499 = vshll.u32 %v3333, 16
      %v3501 = vor.u32 %v3498, %v3499
      %v3502 = vrot.slane %v3498, 4
      %v3504 = vshrl.u32 %v3334, 16
      %v3506 = vrot.slane %v3504, 7
      %v3507 = vshll.u32 %v3334, 16
      %v3509 = vor.u32 %v3506, %v3507
      %v3510 = vsel %vm3409, %v3502, %v3509
      %v3511 = vrot.slane %v3506, 4
      %v3513 = vshrl.u32 %v3335, 16
      %v3515 = vrot.slane %v3513, 7
      %v3516 = vshll.u32 %v3335, 16
      %v3518 = vor.u32 %v3515, %v3516
      %v3519 = vrot.slane %v3515, 4
      %v3521 = vshrl.u32 %v3336, 16
      %v3523 = vrot.slane %v3521, 7
      %v3524 = vshll.u32 %v3336, 16
      %v3526 = vor.u32 %v3523, %v3524
      %v3527 = vsel %vm3409, %v3519, %v3526
      %v3528 = vrot.slane %v3523, 4
      %v3530 = vshrl.u32 %v3337, 16
      %v3532 = vrot.slane %v3530, 7
      %v3533 = vshll.u32 %v3337, 16
      %v3535 = vor.u32 %v3532, %v3533
      %v3536 = vrot.slane %v3532, 4
      %v3538 = vshrl.u32 %v3338, 16
      %v3540 = vrot.slane %v3538, 7
      %v3541 = vshll.u32 %v3338, 16
      %v3543 = vor.u32 %v3540, %v3541
      %v3544 = vsel %vm3409, %v3536, %v3543
      %v3545 = vrot.slane %v3540, 4
      %v3547 = vshrl.u32 %v3339, 16
      %v3549 = vrot.slane %v3547, 7
      %v3550 = vshll.u32 %v3339, 16
      %v3552 = vor.u32 %v3549, %v3550
      %v3553 = vrot.slane %v3549, 4
      %v3555 = vshrl.u32 %v3340, 16
      %v3557 = vrot.slane %v3555, 7
      %v3558 = vshll.u32 %v3340, 16
      %v3560 = vor.u32 %v3557, %v3558
      %v3561 = vsel %vm3409, %v3553, %v3560
      %v3562 = vrot.slane %v3557, 4
      %v3564 = vshrl.u32 %v3341, 16
      %v3566 = vrot.slane %v3564, 7
      %v3567 = vshll.u32 %v3341, 16
      %v3569 = vor.u32 %v3566, %v3567
      %v3570 = vrot.slane %v3566, 4
      %v3572 = vshrl.u32 %v3342, 16
      %v3574 = vrot.slane %v3572, 7
      %v3575 = vshll.u32 %v3342, 16
      %v3577 = vor.u32 %v3574, %v3575
      %v3578 = vsel %vm3409, %v3570, %v3577
      %v3579 = vrot.slane %v3574, 4
      %vm3610 = vcmask 1043456
      %vm3611 = vmand %vm3610, %vm3376
      %v3612 = vld [vmem:[#allocation2] sm:$0xf]
      %v3613 = vsel %vm3611, %v3416, %v3612
      %3614 = vst [vmem:[#allocation2] sm:$0xf] %v3613
      %3615 = vst [vmem:[#allocation2 + $0x4] sm:$0xf] %v3425
      %v3616 = vld [vmem:[#allocation2 + $0x8] sm:$0x1]
      %v3617 = vsel %vm3345, %v3426, %v3616
      %3618 = vst [vmem:[#allocation2 + $0x8] sm:$0x1] %v3617
      %v3619 = vld [vmem:[#allocation2 + $0xc] sm:$0xf]
      %v3620 = vsel %vm3611, %v3433, %v3619
      %3621 = vst [vmem:[#allocation2 + $0xc] sm:$0xf] %v3620
      %3622 = vst [vmem:[#allocation2 + $0x10] sm:$0xf] %v3442
      %v3623 = vld [vmem:[#allocation2 + $0x14] sm:$0x1]
      %v3624 = vsel %vm3345, %v3443, %v3623
      %3625 = vst [vmem:[#allocation2 + $0x14] sm:$0x1] %v3624
      %v3626 = vld [vmem:[#allocation2 + $0x18] sm:$0xf]
      %v3627 = vsel %vm3611, %v3450, %v3626
      %3628 = vst [vmem:[#allocation2 + $0x18] sm:$0xf] %v3627
      %3629 = vst [vmem:[#allocation2 + $0x1c] sm:$0xf] %v3459
      %v3630 = vld [vmem:[#allocation2 + $0x20] sm:$0x1]
      %v3631 = vsel %vm3345, %v3460, %v3630
      %3632 = vst [vmem:[#allocation2 + $0x20] sm:$0x1] %v3631
      %v3633 = vld [vmem:[#allocation2 + $0x24] sm:$0xf]
      %v3634 = vsel %vm3611, %v3467, %v3633
      %3635 = vst [vmem:[#allocation2 + $0x24] sm:$0xf] %v3634
      %3636 = vst [vmem:[#allocation2 + $0x28] sm:$0xf] %v3476
      %v3637 = vld [vmem:[#allocation2 + $0x2c] sm:$0x1]
      %v3638 = vsel %vm3345, %v3477, %v3637
      %3639 = vst [vmem:[#allocation2 + $0x2c] sm:$0x1] %v3638
      %v3640 = vld [vmem:[#allocation2 + $0x30] sm:$0xf]
      %v3641 = vsel %vm3611, %v3484, %v3640
      %3642 = vst [vmem:[#allocation2 + $0x30] sm:$0xf] %v3641
      %3643 = vst [vmem:[#allocation2 + $0x34] sm:$0xf] %v3493
      %v3644 = vld [vmem:[#allocation2 + $0x38] sm:$0x1]
      %v3645 = vsel %vm3345, %v3494, %v3644
      %3646 = vst [vmem:[#allocation2 + $0x38] sm:$0x1] %v3645
      %v3647 = vld [vmem:[#allocation2 + $0x3c] sm:$0xf]
      %v3648 = vsel %vm3611, %v3501, %v3647
      %3649 = vst [vmem:[#allocation2 + $0x3c] sm:$0xf] %v3648
      %3650 = vst [vmem:[#allocation2 + $0x40] sm:$0xf] %v3510
      %v3651 = vld [vmem:[#allocation2 + $0x44] sm:$0x1]
      %v3652 = vsel %vm3345, %v3511, %v3651
      %3653 = vst [vmem:[#allocation2 + $0x44] sm:$0x1] %v3652
      %v3654 = vld [vmem:[#allocation2 + $0x48] sm:$0xf]
      %v3655 = vsel %vm3611, %v3518, %v3654
      %3656 = vst [vmem:[#allocation2 + $0x48] sm:$0xf] %v3655
      %3657 = vst [vmem:[#allocation2 + $0x4c] sm:$0xf] %v3527
      %v3658 = vld [vmem:[#allocation2 + $0x50] sm:$0x1]
      %v3659 = vsel %vm3345, %v3528, %v3658
      %3660 = vst [vmem:[#allocation2 + $0x50] sm:$0x1] %v3659
      %v3661 = vld [vmem:[#allocation2 + $0x54] sm:$0xf]
      %v3662 = vsel %vm3611, %v3535, %v3661
      %3663 = vst [vmem:[#allocation2 + $0x54] sm:$0xf] %v3662
      %3664 = vst [vmem:[#allocation2 + $0x58] sm:$0xf] %v3544
      %v3665 = vld [vmem:[#allocation2 + $0x5c] sm:$0x1]
      %v3666 = vsel %vm3345, %v3545, %v3665
      %3667 = vst [vmem:[#allocation2 + $0x5c] sm:$0x1] %v3666
      %v3668 = vld [vmem:[#allocation2 + $0x60] sm:$0xf]
      %v3669 = vsel %vm3611, %v3552, %v3668
      %3670 = vst [vmem:[#allocation2 + $0x60] sm:$0xf] %v3669
      %3671 = vst [vmem:[#allocation2 + $0x64] sm:$0xf] %v3561
      %v3672 = vld [vmem:[#allocation2 + $0x68] sm:$0x1]
      %v3673 = vsel %vm3345, %v3562, %v3672
      %3674 = vst [vmem:[#allocation2 + $0x68] sm:$0x1] %v3673
      %v3675 = vld [vmem:[#allocation2 + $0x6c] sm:$0xf]
      %v3676 = vsel %vm3611, %v3569, %v3675
      %3677 = vst [vmem:[#allocation2 + $0x6c] sm:$0xf] %v3676
      %3678 = vst [vmem:[#allocation2 + $0x70] sm:$0xf] %v3578
      %v3679 = vld [vmem:[#allocation2 + $0x74] sm:$0x1]
      %v3680 = vsel %vm3345, %v3579, %v3679
      %3681 = vst [vmem:[#allocation2 + $0x74] sm:$0x1] %v3680
      %p3682 = scmp.eq.s32.totalorder %s21, 0
      // Predicated region
      $region41: #{tpu_custom_call.1} parent=39 // pred_check
        %p3683 = pneg %p3682
      $region42: #{tpu_custom_call.1} parent=39 // pred_check_branch
        %3685 = sbr.rel (%p3683) target = $region44
      $region43: #{tpu_custom_call.1} parent=39 // pred_region
        %v3686 = vld [vmem:[#allocation2] sm:$0xf]
        %v3687 = vsel %vm3611, 0, %v3686
        %3688 = vst [vmem:[#allocation2] sm:$0xf] %v3687
        %3689 = vst [vmem:[#allocation2 + $0x4] sm:$0xf] 0
        %v3690 = vld [vmem:[#allocation2 + $0x8] sm:$0x1]
        %v3691 = vsel %vm3345, 0, %v3690
        %3692 = vst [vmem:[#allocation2 + $0x8] sm:$0x1] %v3691
      $region44: #{tpu_custom_call.1} parent=39 // pred_fallthru
        _
      %p3693 = scmp.eq.s32.totalorder %s21, 1
      // Predicated region
      $region45: #{tpu_custom_call.1} parent=39 // pred_check
        %p3694 = pneg %p3693
      $region46: #{tpu_custom_call.1} parent=39 // pred_check_branch
        %3696 = sbr.rel (%p3694) target = $region48
      $region47: #{tpu_custom_call.1} parent=39 // pred_region
        %s3697 = scalar_lea.vmem [#allocation2], 108
        %v3698 = vld [vmem:[%s3697] sm:$0xf]
        %v3699 = vsel %vm3611, 0, %v3698
        %3700 = vst [vmem:[%s3697] sm:$0xf] %v3699
        %3701 = vst [vmem:[%s3697 + $0x4] sm:$0xf] 0
        %v3702 = vld [vmem:[%s3697 + $0x8] sm:$0x1]
        %v3703 = vsel %vm3345, 0, %v3702
        %3704 = vst [vmem:[%s3697 + $0x8] sm:$0x1] %v3703
      $region48: #{tpu_custom_call.1} parent=39 // pred_fallthru
        _
      %v3705 = vld [vmem:[#allocation2] sm:$0xf]
      %v3706 = vld [vmem:[#allocation2 + $0x4] sm:$0xf]
      %v3707 = vld [vmem:[#allocation2 + $0xc] sm:$0xf]
      %v3708 = vld [vmem:[#allocation2 + $0x10] sm:$0xf]
      %v3709 = vld [vmem:[#allocation2 + $0x18] sm:$0xf]
      %v3710 = vld [vmem:[#allocation2 + $0x1c] sm:$0xf]
      %v3711 = vld [vmem:[#allocation2 + $0x24] sm:$0xf]
      %v3712 = vld [vmem:[#allocation2 + $0x28] sm:$0xf]
      %v3713 = vld [vmem:[#allocation2 + $0x30] sm:$0xf]
      %v3714 = vld [vmem:[#allocation2 + $0x34] sm:$0xf]
      %v3715 = vld [vmem:[#allocation2 + $0x3c] sm:$0xf]
      %v3716 = vld [vmem:[#allocation2 + $0x40] sm:$0xf]
      %v3717 = vld [vmem:[#allocation2 + $0x48] sm:$0xf]
      %v3718 = vld [vmem:[#allocation2 + $0x4c] sm:$0xf]
      %v3719 = vld [vmem:[#allocation2 + $0x54] sm:$0xf]
      %v3720 = vld [vmem:[#allocation2 + $0x58] sm:$0xf]
      %v3721 = vld [vmem:[%s3] sm:$0xf]
      %v3722 = vld [vmem:[%s3 + $0x4] sm:$0xf]
      %v3723 = vld [vmem:[%s3 + $0x8] sm:$0xf]
      %v3724 = vld [vmem:[%s3 + $0xc] sm:$0xf]
      %v3725 = vld [vmem:[%s3 + $0x10] sm:$0xf]
      %v3726 = vld [vmem:[%s3 + $0x14] sm:$0xf]
      %v3727 = vld [vmem:[%s3 + $0x18] sm:$0xf]
      %v3728 = vld [vmem:[%s3 + $0x1c] sm:$0xf]
      %v3729 = vld [vmem:[%s3 + $0x20] sm:$0xf]
      %v3730 = vld [vmem:[%s3 + $0x24] sm:$0xf]
      %v3731 = vld [vmem:[%s3 + $0x28] sm:$0xf]
      %v3732 = vld [vmem:[%s3 + $0x2c] sm:$0xf]
      %v3733 = vld [vmem:[%s3 + $0x30] sm:$0xf]
      %v3734 = vld [vmem:[%s3 + $0x34] sm:$0xf]
      %v3735 = vld [vmem:[%s3 + $0x38] sm:$0xf]
      %v3736 = vld [vmem:[%s3 + $0x3c] sm:$0xf]
      %v3737 = vld [vmem:[#allocation2 + $0x8] sm:$0x1]
      %v3738 = vld [vmem:[#allocation2 + $0x14] sm:$0x1]
      %v3739 = vld [vmem:[#allocation2 + $0x20] sm:$0x1]
      %v3740 = vld [vmem:[#allocation2 + $0x2c] sm:$0x1]
      %v3741 = vld [vmem:[#allocation2 + $0x38] sm:$0x1]
      %v3742 = vld [vmem:[#allocation2 + $0x44] sm:$0x1]
      %v3743 = vld [vmem:[#allocation2 + $0x50] sm:$0x1]
      %v3744 = vld [vmem:[#allocation2 + $0x5c] sm:$0x1]
      %v3746 = vshrl.u32 %v3705, 16
      %v3748 = vrot.slane %v3746, 4
      %v3749 = vshll.u32 %v3705, 16
      %v3751 = vrot.slane %v3749, 5
      %v3752 = vor.u32 %v3748, %v3751
      %v3753 = vrot.slane %v3752, 4
      %v3755 = vshll.u32 %v3706, 16
      %v3757 = vrot.slane %v3755, 5
      %v3758 = vsel %vm427, %v3753, %v3757
      %v3759 = vshrl.u32 %v3706, 16
      %v3761 = vrot.slane %v3759, 4
      %v3762 = vor.u32 %v3761, %v3757
      %v3763 = vrot.slane %v3762, 4
      %v3765 = vshll.u32 %v3737, 16
      %v3767 = vrot.slane %v3765, 5
      %v3768 = vsel %vm427, %v3763, %v3767
      %v3770 = vshrl.u32 %v3707, 16
      %v3772 = vrot.slane %v3770, 4
      %v3773 = vshll.u32 %v3707, 16
      %v3775 = vrot.slane %v3773, 5
      %v3776 = vor.u32 %v3772, %v3775
      %v3777 = vrot.slane %v3776, 4
      %v3779 = vshll.u32 %v3708, 16
      %v3781 = vrot.slane %v3779, 5
      %v3782 = vsel %vm427, %v3777, %v3781
      %v3783 = vshrl.u32 %v3708, 16
      %v3785 = vrot.slane %v3783, 4
      %v3786 = vor.u32 %v3785, %v3781
      %v3787 = vrot.slane %v3786, 4
      %v3789 = vshll.u32 %v3738, 16
      %v3791 = vrot.slane %v3789, 5
      %v3792 = vsel %vm427, %v3787, %v3791
      %v3794 = vshrl.u32 %v3709, 16
      %v3796 = vrot.slane %v3794, 4
      %v3797 = vshll.u32 %v3709, 16
      %v3799 = vrot.slane %v3797, 5
      %v3800 = vor.u32 %v3796, %v3799
      %v3801 = vrot.slane %v3800, 4
      %v3803 = vshll.u32 %v3710, 16
      %v3805 = vrot.slane %v3803, 5
      %v3806 = vsel %vm427, %v3801, %v3805
      %v3807 = vshrl.u32 %v3710, 16
      %v3809 = vrot.slane %v3807, 4
      %v3810 = vor.u32 %v3809, %v3805
      %v3811 = vrot.slane %v3810, 4
      %v3813 = vshll.u32 %v3739, 16
      %v3815 = vrot.slane %v3813, 5
      %v3816 = vsel %vm427, %v3811, %v3815
      %v3818 = vshrl.u32 %v3711, 16
      %v3820 = vrot.slane %v3818, 4
      %v3821 = vshll.u32 %v3711, 16
      %v3823 = vrot.slane %v3821, 5
      %v3824 = vor.u32 %v3820, %v3823
      %v3825 = vrot.slane %v3824, 4
      %v3827 = vshll.u32 %v3712, 16
      %v3829 = vrot.slane %v3827, 5
      %v3830 = vsel %vm427, %v3825, %v3829
      %v3831 = vshrl.u32 %v3712, 16
      %v3833 = vrot.slane %v3831, 4
      %v3834 = vor.u32 %v3833, %v3829
      %v3835 = vrot.slane %v3834, 4
      %v3837 = vshll.u32 %v3740, 16
      %v3839 = vrot.slane %v3837, 5
      %v3840 = vsel %vm427, %v3835, %v3839
      %v3842 = vshrl.u32 %v3713, 16
      %v3844 = vrot.slane %v3842, 4
      %v3845 = vshll.u32 %v3713, 16
      %v3847 = vrot.slane %v3845, 5
      %v3848 = vor.u32 %v3844, %v3847
      %v3849 = vrot.slane %v3848, 4
      %v3851 = vshll.u32 %v3714, 16
      %v3853 = vrot.slane %v3851, 5
      %v3854 = vsel %vm427, %v3849, %v3853
      %v3855 = vshrl.u32 %v3714, 16
      %v3857 = vrot.slane %v3855, 4
      %v3858 = vor.u32 %v3857, %v3853
      %v3859 = vrot.slane %v3858, 4
      %v3861 = vshll.u32 %v3741, 16
      %v3863 = vrot.slane %v3861, 5
      %v3864 = vsel %vm427, %v3859, %v3863
      %v3866 = vshrl.u32 %v3715, 16
      %v3868 = vrot.slane %v3866, 4
      %v3869 = vshll.u32 %v3715, 16
      %v3871 = vrot.slane %v3869, 5
      %v3872 = vor.u32 %v3868, %v3871
      %v3873 = vrot.slane %v3872, 4
      %v3875 = vshll.u32 %v3716, 16
      %v3877 = vrot.slane %v3875, 5
      %v3878 = vsel %vm427, %v3873, %v3877
      %v3879 = vshrl.u32 %v3716, 16
      %v3881 = vrot.slane %v3879, 4
      %v3882 = vor.u32 %v3881, %v3877
      %v3883 = vrot.slane %v3882, 4
      %v3885 = vshll.u32 %v3742, 16
      %v3887 = vrot.slane %v3885, 5
      %v3888 = vsel %vm427, %v3883, %v3887
      %v3890 = vshrl.u32 %v3717, 16
      %v3892 = vrot.slane %v3890, 4
      %v3893 = vshll.u32 %v3717, 16
      %v3895 = vrot.slane %v3893, 5
      %v3896 = vor.u32 %v3892, %v3895
      %v3897 = vrot.slane %v3896, 4
      %v3899 = vshll.u32 %v3718, 16
      %v3901 = vrot.slane %v3899, 5
      %v3902 = vsel %vm427, %v3897, %v3901
      %v3903 = vshrl.u32 %v3718, 16
      %v3905 = vrot.slane %v3903, 4
      %v3906 = vor.u32 %v3905, %v3901
      %v3907 = vrot.slane %v3906, 4
      %v3909 = vshll.u32 %v3743, 16
      %v3911 = vrot.slane %v3909, 5
      %v3912 = vsel %vm427, %v3907, %v3911
      %v3914 = vshrl.u32 %v3719, 16
      %v3916 = vrot.slane %v3914, 4
      %v3917 = vshll.u32 %v3719, 16
      %v3919 = vrot.slane %v3917, 5
      %v3920 = vor.u32 %v3916, %v3919
      %v3921 = vrot.slane %v3920, 4
      %v3923 = vshll.u32 %v3720, 16
      %v3925 = vrot.slane %v3923, 5
      %v3926 = vsel %vm427, %v3921, %v3925
      %v3927 = vshrl.u32 %v3720, 16
      %v3929 = vrot.slane %v3927, 4
      %v3930 = vor.u32 %v3929, %v3925
      %v3931 = vrot.slane %v3930, 4
      %v3933 = vshll.u32 %v3744, 16
      %v3935 = vrot.slane %v3933, 5
      %v3936 = vsel %vm427, %v3931, %v3935
      %s3937 = scalar_lea.vmem %s3, 64
      %v3938 = vld [vmem:[%s3937] sm:$0xf]
      %v3939 = vld [vmem:[%s3937 + $0x4] sm:$0xf]
      %v3940 = vld [vmem:[%s3937 + $0x8] sm:$0xf]
      %v3941 = vld [vmem:[%s3937 + $0xc] sm:$0xf]
      %v3942 = vld [vmem:[%s3937 + $0x10] sm:$0xf]
      %v3943 = vld [vmem:[%s3937 + $0x14] sm:$0xf]
      %v3944 = vld [vmem:[%s3937 + $0x18] sm:$0xf]
      %v3945 = vld [vmem:[%s3937 + $0x1c] sm:$0xf]
      %v3946 = vld [vmem:[%s3937 + $0x20] sm:$0xf]
      %v3947 = vld [vmem:[%s3937 + $0x24] sm:$0xf]
      %v3948 = vld [vmem:[%s3937 + $0x28] sm:$0xf]
      %v3949 = vld [vmem:[%s3937 + $0x2c] sm:$0xf]
      %v3950 = vld [vmem:[%s3937 + $0x30] sm:$0xf]
      %v3951 = vld [vmem:[%s3937 + $0x34] sm:$0xf]
      %v3952 = vld [vmem:[%s3937 + $0x38] sm:$0xf]
      %v3953 = vld [vmem:[%s3937 + $0x3c] sm:$0xf]
      %v3954 = vunpack.c.l.b16 %v3758
      %v3955 = vunpack.c.l.b16 %v3768
      %v3956 = vunpack.c.l.b16 %v3782
      %v3957 = vunpack.c.l.b16 %v3792
      %v3958 = vunpack.c.l.b16 %v3806
      %v3959 = vunpack.c.l.b16 %v3816
      %v3960 = vunpack.c.l.b16 %v3830
      %v3961 = vunpack.c.l.b16 %v3840
      %v3962 = vunpack.c.l.b16 %v3854
      %v3963 = vunpack.c.l.b16 %v3864
      %v3964 = vunpack.c.l.b16 %v3878
      %v3965 = vunpack.c.l.b16 %v3888
      %v3966 = vunpack.c.l.b16 %v3902
      %v3967 = vunpack.c.l.b16 %v3912
      %v3968 = vunpack.c.l.b16 %v3926
      %v3969 = vunpack.c.l.b16 %v3936
      %v3970 = vpack.c.b16 %v3955, %v3954
      %v3971 = vpack.c.b16 %v3957, %v3956
      %v3972 = vpack.c.b16 %v3959, %v3958
      %v3973 = vpack.c.b16 %v3961, %v3960
      %v3974 = vpack.c.b16 %v3963, %v3962
      %v3975 = vpack.c.b16 %v3965, %v3964
      %v3976 = vpack.c.b16 %v3967, %v3966
      %v3977 = vpack.c.b16 %v3969, %v3968
      %v4002 = vunpack.c.l.b16 %v3938
      %v4003 = vunpack.c.l.b16 %v3939
      %v4004 = vunpack.c.l.b16 %v3940
      %v4005 = vunpack.c.l.b16 %v3941
      %v4006 = vunpack.c.l.b16 %v3942
      %v4007 = vunpack.c.l.b16 %v3943
      %v4008 = vunpack.c.l.b16 %v3944
      %v4009 = vunpack.c.l.b16 %v3945
      %v4010 = vunpack.c.l.b16 %v3946
      %v4011 = vunpack.c.l.b16 %v3947
      %v4012 = vunpack.c.l.b16 %v3948
      %v4013 = vunpack.c.l.b16 %v3949
      %v4014 = vunpack.c.l.b16 %v3950
      %v4015 = vunpack.c.l.b16 %v3951
      %v4016 = vunpack.c.l.b16 %v3952
      %v4017 = vunpack.c.l.b16 %v3953
      %v4018 = vpack.c.b16 %v4003, %v4002
      %v4019 = vpack.c.b16 %v4005, %v4004
      %v4020 = vpack.c.b16 %v4007, %v4006
      %v4021 = vpack.c.b16 %v4009, %v4008
      %v4022 = vpack.c.b16 %v4011, %v4010
      %v4023 = vpack.c.b16 %v4013, %v4012
      %v4024 = vpack.c.b16 %v4015, %v4014
      %v4025 = vpack.c.b16 %v4017, %v4016
      %4034 = vmatpush.bf16.msra.mxu0 %v4025
      %4035 = vmatpush.bf16.msra.mxu0 %v4024
      %4036 = vmatpush.bf16.msra.mxu0 %v4023
      %4037 = vmatpush.bf16.msra.mxu0 %v4022
      %4038 = vmatpush.bf16.msra.mxu0 %v4021
      %4039 = vmatpush.bf16.msra.mxu0 %v4020
      %4040 = vmatpush.bf16.msra.mxu0 %v4019
      %4041 = vmatpush.bf16.msra.mxu0 %v4018
      %4042 = vmatmul.bf16.gmra.mxu0 %v3970
      %v4043 = vpop.f32.mrf.mxu0
      %v4044 = vadd.f32 0.0, %v4043
      %v4045 = vpop.f32.mrf.mxu0
      %v4046 = vadd.f32 0.0, %v4045
      %4047 = vmatmul.bf16.gmra.mxu0 %v3971
      %v4048 = vpop.f32.mrf.mxu0
      %v4049 = vadd.f32 0.0, %v4048
      %v4050 = vpop.f32.mrf.mxu0
      %v4051 = vadd.f32 0.0, %v4050
      %4052 = vmatmul.bf16.gmra.mxu0 %v3972
      %v4053 = vpop.f32.mrf.mxu0
      %v4054 = vadd.f32 0.0, %v4053
      %v4055 = vpop.f32.mrf.mxu0
      %v4056 = vadd.f32 0.0, %v4055
      %4057 = vmatmul.bf16.gmra.mxu0 %v3973
      %v4058 = vpop.f32.mrf.mxu0
      %v4059 = vadd.f32 0.0, %v4058
      %v4060 = vpop.f32.mrf.mxu0
      %v4061 = vadd.f32 0.0, %v4060
      %4062 = vmatmul.bf16.gmra.mxu0 %v3974
      %v4063 = vpop.f32.mrf.mxu0
      %v4064 = vadd.f32 0.0, %v4063
      %v4065 = vpop.f32.mrf.mxu0
      %v4066 = vadd.f32 0.0, %v4065
      %4067 = vmatmul.bf16.gmra.mxu0 %v3975
      %v4068 = vpop.f32.mrf.mxu0
      %v4069 = vadd.f32 0.0, %v4068
      %v4070 = vpop.f32.mrf.mxu0
      %v4071 = vadd.f32 0.0, %v4070
      %4072 = vmatmul.bf16.gmra.mxu0 %v3976
      %v4073 = vpop.f32.mrf.mxu0
      %v4074 = vadd.f32 0.0, %v4073
      %v4075 = vpop.f32.mrf.mxu0
      %v4076 = vadd.f32 0.0, %v4075
      %4077 = vmatmul.bf16.gmra.mxu0 %v3977
      %v4078 = vpop.f32.mrf.mxu0
      %v4079 = vadd.f32 0.0, %v4078
      %v4080 = vpop.f32.mrf.mxu0
      %v4081 = vadd.f32 0.0, %v4080
      %4082 = vdwg.mxu0
      %v4099 = vunpack.c.l.b16 %v3705
      %v4100 = vunpack.c.l.b16 %v3706
      %v4101 = vunpack.c.l.b16 %v3707
      %v4102 = vunpack.c.l.b16 %v3708
      %v4103 = vunpack.c.l.b16 %v3709
      %v4104 = vunpack.c.l.b16 %v3710
      %v4105 = vunpack.c.l.b16 %v3711
      %v4106 = vunpack.c.l.b16 %v3712
      %v4107 = vunpack.c.l.b16 %v3713
      %v4108 = vunpack.c.l.b16 %v3714
      %v4109 = vunpack.c.l.b16 %v3715
      %v4110 = vunpack.c.l.b16 %v3716
      %v4111 = vunpack.c.l.b16 %v3717
      %v4112 = vunpack.c.l.b16 %v3718
      %v4113 = vunpack.c.l.b16 %v3719
      %v4114 = vunpack.c.l.b16 %v3720
      %v4115 = vpack.c.b16 %v4100, %v4099
      %v4116 = vpack.c.b16 %v4102, %v4101
      %v4117 = vpack.c.b16 %v4104, %v4103
      %v4118 = vpack.c.b16 %v4106, %v4105
      %v4119 = vpack.c.b16 %v4108, %v4107
      %v4120 = vpack.c.b16 %v4110, %v4109
      %v4121 = vpack.c.b16 %v4112, %v4111
      %v4122 = vpack.c.b16 %v4114, %v4113
      %v4147 = vunpack.c.l.b16 %v3721
      %v4148 = vunpack.c.l.b16 %v3722
      %v4149 = vunpack.c.l.b16 %v3723
      %v4150 = vunpack.c.l.b16 %v3724
      %v4151 = vunpack.c.l.b16 %v3725
      %v4152 = vunpack.c.l.b16 %v3726
      %v4153 = vunpack.c.l.b16 %v3727
      %v4154 = vunpack.c.l.b16 %v3728
      %v4155 = vunpack.c.l.b16 %v3729
      %v4156 = vunpack.c.l.b16 %v3730
      %v4157 = vunpack.c.l.b16 %v3731
      %v4158 = vunpack.c.l.b16 %v3732
      %v4159 = vunpack.c.l.b16 %v3733
      %v4160 = vunpack.c.l.b16 %v3734
      %v4161 = vunpack.c.l.b16 %v3735
      %v4162 = vunpack.c.l.b16 %v3736
      %v4163 = vpack.c.b16 %v4148, %v4147
      %v4164 = vpack.c.b16 %v4150, %v4149
      %v4165 = vpack.c.b16 %v4152, %v4151
      %v4166 = vpack.c.b16 %v4154, %v4153
      %v4167 = vpack.c.b16 %v4156, %v4155
      %v4168 = vpack.c.b16 %v4158, %v4157
      %v4169 = vpack.c.b16 %v4160, %v4159
      %v4170 = vpack.c.b16 %v4162, %v4161
      %4179 = vmatpush.bf16.msra.mxu0 %v4170
      %4180 = vmatpush.bf16.msra.mxu0 %v4169
      %4181 = vmatpush.bf16.msra.mxu0 %v4168
      %4182 = vmatpush.bf16.msra.mxu0 %v4167
      %4183 = vmatpush.bf16.msra.mxu0 %v4166
      %4184 = vmatpush.bf16.msra.mxu0 %v4165
      %4185 = vmatpush.bf16.msra.mxu0 %v4164
      %4186 = vmatpush.bf16.msra.mxu0 %v4163
      %4187 = vmatmul.bf16.gmra.mxu0 %v4115
      %v4188 = vpop.f32.mrf.mxu0
      %v4189 = vadd.f32 %v4044, %v4188
      %v4190 = vpop.f32.mrf.mxu0
      %v4191 = vadd.f32 %v4046, %v4190
      %4192 = vmatmul.bf16.gmra.mxu0 %v4116
      %v4193 = vpop.f32.mrf.mxu0
      %v4194 = vadd.f32 %v4049, %v4193
      %v4195 = vpop.f32.mrf.mxu0
      %v4196 = vadd.f32 %v4051, %v4195
      %4197 = vmatmul.bf16.gmra.mxu0 %v4117
      %v4198 = vpop.f32.mrf.mxu0
      %v4199 = vadd.f32 %v4054, %v4198
      %v4200 = vpop.f32.mrf.mxu0
      %v4201 = vadd.f32 %v4056, %v4200
      %4202 = vmatmul.bf16.gmra.mxu0 %v4118
      %v4203 = vpop.f32.mrf.mxu0
      %v4204 = vadd.f32 %v4059, %v4203
      %v4205 = vpop.f32.mrf.mxu0
      %v4206 = vadd.f32 %v4061, %v4205
      %4207 = vmatmul.bf16.gmra.mxu0 %v4119
      %v4208 = vpop.f32.mrf.mxu0
      %v4209 = vadd.f32 %v4064, %v4208
      %v4210 = vpop.f32.mrf.mxu0
      %v4211 = vadd.f32 %v4066, %v4210
      %4212 = vmatmul.bf16.gmra.mxu0 %v4120
      %v4213 = vpop.f32.mrf.mxu0
      %v4214 = vadd.f32 %v4069, %v4213
      %v4215 = vpop.f32.mrf.mxu0
      %v4216 = vadd.f32 %v4071, %v4215
      %4217 = vmatmul.bf16.gmra.mxu0 %v4121
      %v4218 = vpop.f32.mrf.mxu0
      %v4219 = vadd.f32 %v4074, %v4218
      %v4220 = vpop.f32.mrf.mxu0
      %v4221 = vadd.f32 %v4076, %v4220
      %4222 = vmatmul.bf16.gmra.mxu0 %v4122
      %v4223 = vpop.f32.mrf.mxu0
      %v4224 = vadd.f32 %v4079, %v4223
      %v4225 = vpop.f32.mrf.mxu0
      %v4226 = vadd.f32 %v4081, %v4225
      %4227 = vdwg.mxu0
      %v4228 = vld [vmem:[#allocation2] sm:$0xe]
      %v4229 = vld [vmem:[#allocation2 + $0xc] sm:$0xe]
      %v4230 = vld [vmem:[#allocation2 + $0x18] sm:$0xe]
      %v4231 = vld [vmem:[#allocation2 + $0x24] sm:$0xe]
      %v4232 = vld [vmem:[#allocation2 + $0x30] sm:$0xe]
      %v4233 = vld [vmem:[#allocation2 + $0x3c] sm:$0xe]
      %v4234 = vld [vmem:[#allocation2 + $0x48] sm:$0xe]
      %v4235 = vld [vmem:[#allocation2 + $0x54] sm:$0xe]
      %v4252 = vrot.slane %v4228, 5
      %v4253 = vrot.slane %v4252, 4
      %v4254 = vrot.slane %v3706, 5
      %v4255 = vsel %vm998, %v4253, %v4254
      %v4256 = vrot.slane %v4254, 4
      %v4257 = vrot.slane %v3737, 5
      %v4258 = vsel %vm998, %v4256, %v4257
      %v4259 = vrot.slane %v4229, 5
      %v4260 = vrot.slane %v4259, 4
      %v4261 = vrot.slane %v3708, 5
      %v4262 = vsel %vm998, %v4260, %v4261
      %v4263 = vrot.slane %v4261, 4
      %v4264 = vrot.slane %v3738, 5
      %v4265 = vsel %vm998, %v4263, %v4264
      %v4266 = vrot.slane %v4230, 5
      %v4267 = vrot.slane %v4266, 4
      %v4268 = vrot.slane %v3710, 5
      %v4269 = vsel %vm998, %v4267, %v4268
      %v4270 = vrot.slane %v4268, 4
      %v4271 = vrot.slane %v3739, 5
      %v4272 = vsel %vm998, %v4270, %v4271
      %v4273 = vrot.slane %v4231, 5
      %v4274 = vrot.slane %v4273, 4
      %v4275 = vrot.slane %v3712, 5
      %v4276 = vsel %vm998, %v4274, %v4275
      %v4277 = vrot.slane %v4275, 4
      %v4278 = vrot.slane %v3740, 5
      %v4279 = vsel %vm998, %v4277, %v4278
      %v4280 = vrot.slane %v4232, 5
      %v4281 = vrot.slane %v4280, 4
      %v4282 = vrot.slane %v3714, 5
      %v4283 = vsel %vm998, %v4281, %v4282
      %v4284 = vrot.slane %v4282, 4
      %v4285 = vrot.slane %v3741, 5
      %v4286 = vsel %vm998, %v4284, %v4285
      %v4287 = vrot.slane %v4233, 5
      %v4288 = vrot.slane %v4287, 4
      %v4289 = vrot.slane %v3716, 5
      %v4290 = vsel %vm998, %v4288, %v4289
      %v4291 = vrot.slane %v4289, 4
      %v4292 = vrot.slane %v3742, 5
      %v4293 = vsel %vm998, %v4291, %v4292
      %v4294 = vrot.slane %v4234, 5
      %v4295 = vrot.slane %v4294, 4
      %v4296 = vrot.slane %v3718, 5
      %v4297 = vsel %vm998, %v4295, %v4296
      %v4298 = vrot.slane %v4296, 4
      %v4299 = vrot.slane %v3743, 5
      %v4300 = vsel %vm998, %v4298, %v4299
      %v4301 = vrot.slane %v4235, 5
      %v4302 = vrot.slane %v4301, 4
      %v4303 = vrot.slane %v3720, 5
      %v4304 = vsel %vm998, %v4302, %v4303
      %v4305 = vrot.slane %v4303, 4
      %v4306 = vrot.slane %v3744, 5
      %v4307 = vsel %vm998, %v4305, %v4306
      %s4308 = scalar_lea.vmem %s3, 128
      %v4309 = vld [vmem:[%s4308] sm:$0xf]
      %v4310 = vld [vmem:[%s4308 + $0x4] sm:$0xf]
      %v4311 = vld [vmem:[%s4308 + $0x8] sm:$0xf]
      %v4312 = vld [vmem:[%s4308 + $0xc] sm:$0xf]
      %v4313 = vld [vmem:[%s4308 + $0x10] sm:$0xf]
      %v4314 = vld [vmem:[%s4308 + $0x14] sm:$0xf]
      %v4315 = vld [vmem:[%s4308 + $0x18] sm:$0xf]
      %v4316 = vld [vmem:[%s4308 + $0x1c] sm:$0xf]
      %v4317 = vld [vmem:[%s4308 + $0x20] sm:$0xf]
      %v4318 = vld [vmem:[%s4308 + $0x24] sm:$0xf]
      %v4319 = vld [vmem:[%s4308 + $0x28] sm:$0xf]
      %v4320 = vld [vmem:[%s4308 + $0x2c] sm:$0xf]
      %v4321 = vld [vmem:[%s4308 + $0x30] sm:$0xf]
      %v4322 = vld [vmem:[%s4308 + $0x34] sm:$0xf]
      %v4323 = vld [vmem:[%s4308 + $0x38] sm:$0xf]
      %v4324 = vld [vmem:[%s4308 + $0x3c] sm:$0xf]
      %v4325 = vunpack.c.l.b16 %v4255
      %v4326 = vunpack.c.l.b16 %v4258
      %v4327 = vunpack.c.l.b16 %v4262
      %v4328 = vunpack.c.l.b16 %v4265
      %v4329 = vunpack.c.l.b16 %v4269
      %v4330 = vunpack.c.l.b16 %v4272
      %v4331 = vunpack.c.l.b16 %v4276
      %v4332 = vunpack.c.l.b16 %v4279
      %v4333 = vunpack.c.l.b16 %v4283
      %v4334 = vunpack.c.l.b16 %v4286
      %v4335 = vunpack.c.l.b16 %v4290
      %v4336 = vunpack.c.l.b16 %v4293
      %v4337 = vunpack.c.l.b16 %v4297
      %v4338 = vunpack.c.l.b16 %v4300
      %v4339 = vunpack.c.l.b16 %v4304
      %v4340 = vunpack.c.l.b16 %v4307
      %v4341 = vpack.c.b16 %v4326, %v4325
      %v4342 = vpack.c.b16 %v4328, %v4327
      %v4343 = vpack.c.b16 %v4330, %v4329
      %v4344 = vpack.c.b16 %v4332, %v4331
      %v4345 = vpack.c.b16 %v4334, %v4333
      %v4346 = vpack.c.b16 %v4336, %v4335
      %v4347 = vpack.c.b16 %v4338, %v4337
      %v4348 = vpack.c.b16 %v4340, %v4339
      %v4373 = vunpack.c.l.b16 %v4309
      %v4374 = vunpack.c.l.b16 %v4310
      %v4375 = vunpack.c.l.b16 %v4311
      %v4376 = vunpack.c.l.b16 %v4312
      %v4377 = vunpack.c.l.b16 %v4313
      %v4378 = vunpack.c.l.b16 %v4314
      %v4379 = vunpack.c.l.b16 %v4315
      %v4380 = vunpack.c.l.b16 %v4316
      %v4381 = vunpack.c.l.b16 %v4317
      %v4382 = vunpack.c.l.b16 %v4318
      %v4383 = vunpack.c.l.b16 %v4319
      %v4384 = vunpack.c.l.b16 %v4320
      %v4385 = vunpack.c.l.b16 %v4321
      %v4386 = vunpack.c.l.b16 %v4322
      %v4387 = vunpack.c.l.b16 %v4323
      %v4388 = vunpack.c.l.b16 %v4324
      %v4389 = vpack.c.b16 %v4374, %v4373
      %v4390 = vpack.c.b16 %v4376, %v4375
      %v4391 = vpack.c.b16 %v4378, %v4377
      %v4392 = vpack.c.b16 %v4380, %v4379
      %v4393 = vpack.c.b16 %v4382, %v4381
      %v4394 = vpack.c.b16 %v4384, %v4383
      %v4395 = vpack.c.b16 %v4386, %v4385
      %v4396 = vpack.c.b16 %v4388, %v4387
      %4405 = vmatpush.bf16.msra.mxu0 %v4396
      %4406 = vmatpush.bf16.msra.mxu0 %v4395
      %4407 = vmatpush.bf16.msra.mxu0 %v4394
      %4408 = vmatpush.bf16.msra.mxu0 %v4393
      %4409 = vmatpush.bf16.msra.mxu0 %v4392
      %4410 = vmatpush.bf16.msra.mxu0 %v4391
      %4411 = vmatpush.bf16.msra.mxu0 %v4390
      %4412 = vmatpush.bf16.msra.mxu0 %v4389
      %4413 = vmatmul.bf16.gmra.mxu0 %v4341
      %v4414 = vpop.f32.mrf.mxu0
      %v4415 = vadd.f32 0.0, %v4414
      %v4416 = vpop.f32.mrf.mxu0
      %v4417 = vadd.f32 0.0, %v4416
      %4418 = vmatmul.bf16.gmra.mxu0 %v4342
      %v4419 = vpop.f32.mrf.mxu0
      %v4420 = vadd.f32 0.0, %v4419
      %v4421 = vpop.f32.mrf.mxu0
      %v4422 = vadd.f32 0.0, %v4421
      %4423 = vmatmul.bf16.gmra.mxu0 %v4343
      %v4424 = vpop.f32.mrf.mxu0
      %v4425 = vadd.f32 0.0, %v4424
      %v4426 = vpop.f32.mrf.mxu0
      %v4427 = vadd.f32 0.0, %v4426
      %4428 = vmatmul.bf16.gmra.mxu0 %v4344
      %v4429 = vpop.f32.mrf.mxu0
      %v4430 = vadd.f32 0.0, %v4429
      %v4431 = vpop.f32.mrf.mxu0
      %v4432 = vadd.f32 0.0, %v4431
      %4433 = vmatmul.bf16.gmra.mxu0 %v4345
      %v4434 = vpop.f32.mrf.mxu0
      %v4435 = vadd.f32 0.0, %v4434
      %v4436 = vpop.f32.mrf.mxu0
      %v4437 = vadd.f32 0.0, %v4436
      %4438 = vmatmul.bf16.gmra.mxu0 %v4346
      %v4439 = vpop.f32.mrf.mxu0
      %v4440 = vadd.f32 0.0, %v4439
      %v4441 = vpop.f32.mrf.mxu0
      %v4442 = vadd.f32 0.0, %v4441
      %4443 = vmatmul.bf16.gmra.mxu0 %v4347
      %v4444 = vpop.f32.mrf.mxu0
      %v4445 = vadd.f32 0.0, %v4444
      %v4446 = vpop.f32.mrf.mxu0
      %v4447 = vadd.f32 0.0, %v4446
      %4448 = vmatmul.bf16.gmra.mxu0 %v4348
      %v4449 = vpop.f32.mrf.mxu0
      %v4450 = vadd.f32 0.0, %v4449
      %v4451 = vpop.f32.mrf.mxu0
      %v4452 = vadd.f32 0.0, %v4451
      %4453 = vdwg.mxu0
      %v4454 = vadd.f32 %v4189, %v4415
      %v4455 = vadd.f32 %v4191, %v4417
      %v4456 = vadd.f32 %v4194, %v4420
      %v4457 = vadd.f32 %v4196, %v4422
      %v4458 = vadd.f32 %v4199, %v4425
      %v4459 = vadd.f32 %v4201, %v4427
      %v4460 = vadd.f32 %v4204, %v4430
      %v4461 = vadd.f32 %v4206, %v4432
      %v4462 = vadd.f32 %v4209, %v4435
      %v4463 = vadd.f32 %v4211, %v4437
      %v4464 = vadd.f32 %v4214, %v4440
      %v4465 = vadd.f32 %v4216, %v4442
      %v4466 = vadd.f32 %v4219, %v4445
      %v4467 = vadd.f32 %v4221, %v4447
      %v4468 = vadd.f32 %v4224, %v4450
      %v4469 = vadd.f32 %v4226, %v4452
      %s4470 = scalar_lea.vmem [#allocation2], 12
      %v4471 = vld [vmem:[%s4470] sm:$0xf]
      %v4472 = vld [vmem:[%s4470 + $0x4] sm:$0xf]
      %v4473 = vld [vmem:[%s4470 + $0xc] sm:$0xf]
      %v4474 = vld [vmem:[%s4470 + $0x10] sm:$0xf]
      %v4475 = vld [vmem:[%s4470 + $0x18] sm:$0xf]
      %v4476 = vld [vmem:[%s4470 + $0x1c] sm:$0xf]
      %v4477 = vld [vmem:[%s4470 + $0x24] sm:$0xf]
      %v4478 = vld [vmem:[%s4470 + $0x28] sm:$0xf]
      %v4479 = vld [vmem:[%s4470 + $0x30] sm:$0xf]
      %v4480 = vld [vmem:[%s4470 + $0x34] sm:$0xf]
      %v4481 = vld [vmem:[%s4470 + $0x3c] sm:$0xf]
      %v4482 = vld [vmem:[%s4470 + $0x40] sm:$0xf]
      %v4483 = vld [vmem:[%s4470 + $0x48] sm:$0xf]
      %v4484 = vld [vmem:[%s4470 + $0x4c] sm:$0xf]
      %v4485 = vld [vmem:[%s4470 + $0x54] sm:$0xf]
      %v4486 = vld [vmem:[%s4470 + $0x58] sm:$0xf]
      %s4487 = scalar_lea.vmem %s3, 192
      %v4488 = vld [vmem:[%s4487] sm:$0xf]
      %v4489 = vld [vmem:[%s4487 + $0x4] sm:$0xf]
      %v4490 = vld [vmem:[%s4487 + $0x8] sm:$0xf]
      %v4491 = vld [vmem:[%s4487 + $0xc] sm:$0xf]
      %v4492 = vld [vmem:[%s4487 + $0x10] sm:$0xf]
      %v4493 = vld [vmem:[%s4487 + $0x14] sm:$0xf]
      %v4494 = vld [vmem:[%s4487 + $0x18] sm:$0xf]
      %v4495 = vld [vmem:[%s4487 + $0x1c] sm:$0xf]
      %v4496 = vld [vmem:[%s4487 + $0x20] sm:$0xf]
      %v4497 = vld [vmem:[%s4487 + $0x24] sm:$0xf]
      %v4498 = vld [vmem:[%s4487 + $0x28] sm:$0xf]
      %v4499 = vld [vmem:[%s4487 + $0x2c] sm:$0xf]
      %v4500 = vld [vmem:[%s4487 + $0x30] sm:$0xf]
      %v4501 = vld [vmem:[%s4487 + $0x34] sm:$0xf]
      %v4502 = vld [vmem:[%s4487 + $0x38] sm:$0xf]
      %v4503 = vld [vmem:[%s4487 + $0x3c] sm:$0xf]
      %v4520 = vunpack.c.l.b16 %v4471
      %v4521 = vunpack.c.l.b16 %v4472
      %v4522 = vunpack.c.l.b16 %v4473
      %v4523 = vunpack.c.l.b16 %v4474
      %v4524 = vunpack.c.l.b16 %v4475
      %v4525 = vunpack.c.l.b16 %v4476
      %v4526 = vunpack.c.l.b16 %v4477
      %v4527 = vunpack.c.l.b16 %v4478
      %v4528 = vunpack.c.l.b16 %v4479
      %v4529 = vunpack.c.l.b16 %v4480
      %v4530 = vunpack.c.l.b16 %v4481
      %v4531 = vunpack.c.l.b16 %v4482
      %v4532 = vunpack.c.l.b16 %v4483
      %v4533 = vunpack.c.l.b16 %v4484
      %v4534 = vunpack.c.l.b16 %v4485
      %v4535 = vunpack.c.l.b16 %v4486
      %v4536 = vpack.c.b16 %v4521, %v4520
      %v4537 = vpack.c.b16 %v4523, %v4522
      %v4538 = vpack.c.b16 %v4525, %v4524
      %v4539 = vpack.c.b16 %v4527, %v4526
      %v4540 = vpack.c.b16 %v4529, %v4528
      %v4541 = vpack.c.b16 %v4531, %v4530
      %v4542 = vpack.c.b16 %v4533, %v4532
      %v4543 = vpack.c.b16 %v4535, %v4534
      %v4568 = vunpack.c.l.b16 %v4488
      %v4569 = vunpack.c.l.b16 %v4489
      %v4570 = vunpack.c.l.b16 %v4490
      %v4571 = vunpack.c.l.b16 %v4491
      %v4572 = vunpack.c.l.b16 %v4492
      %v4573 = vunpack.c.l.b16 %v4493
      %v4574 = vunpack.c.l.b16 %v4494
      %v4575 = vunpack.c.l.b16 %v4495
      %v4576 = vunpack.c.l.b16 %v4496
      %v4577 = vunpack.c.l.b16 %v4497
      %v4578 = vunpack.c.l.b16 %v4498
      %v4579 = vunpack.c.l.b16 %v4499
      %v4580 = vunpack.c.l.b16 %v4500
      %v4581 = vunpack.c.l.b16 %v4501
      %v4582 = vunpack.c.l.b16 %v4502
      %v4583 = vunpack.c.l.b16 %v4503
      %v4584 = vpack.c.b16 %v4569, %v4568
      %v4585 = vpack.c.b16 %v4571, %v4570
      %v4586 = vpack.c.b16 %v4573, %v4572
      %v4587 = vpack.c.b16 %v4575, %v4574
      %v4588 = vpack.c.b16 %v4577, %v4576
      %v4589 = vpack.c.b16 %v4579, %v4578
      %v4590 = vpack.c.b16 %v4581, %v4580
      %v4591 = vpack.c.b16 %v4583, %v4582
      %4600 = vmatpush.bf16.msra.mxu0 %v4591
      %4601 = vmatpush.bf16.msra.mxu0 %v4590
      %4602 = vmatpush.bf16.msra.mxu0 %v4589
      %4603 = vmatpush.bf16.msra.mxu0 %v4588
      %4604 = vmatpush.bf16.msra.mxu0 %v4587
      %4605 = vmatpush.bf16.msra.mxu0 %v4586
      %4606 = vmatpush.bf16.msra.mxu0 %v4585
      %4607 = vmatpush.bf16.msra.mxu0 %v4584
      %4608 = vmatmul.bf16.gmra.mxu0 %v4536
      %v4609 = vpop.f32.mrf.mxu0
      %v4610 = vadd.f32 0.0, %v4609
      %v4611 = vpop.f32.mrf.mxu0
      %v4612 = vadd.f32 0.0, %v4611
      %4613 = vmatmul.bf16.gmra.mxu0 %v4537
      %v4614 = vpop.f32.mrf.mxu0
      %v4615 = vadd.f32 0.0, %v4614
      %v4616 = vpop.f32.mrf.mxu0
      %v4617 = vadd.f32 0.0, %v4616
      %4618 = vmatmul.bf16.gmra.mxu0 %v4538
      %v4619 = vpop.f32.mrf.mxu0
      %v4620 = vadd.f32 0.0, %v4619
      %v4621 = vpop.f32.mrf.mxu0
      %v4622 = vadd.f32 0.0, %v4621
      %4623 = vmatmul.bf16.gmra.mxu0 %v4539
      %v4624 = vpop.f32.mrf.mxu0
      %v4625 = vadd.f32 0.0, %v4624
      %v4626 = vpop.f32.mrf.mxu0
      %v4627 = vadd.f32 0.0, %v4626
      %4628 = vmatmul.bf16.gmra.mxu0 %v4540
      %v4629 = vpop.f32.mrf.mxu0
      %v4630 = vadd.f32 0.0, %v4629
      %v4631 = vpop.f32.mrf.mxu0
      %v4632 = vadd.f32 0.0, %v4631
      %4633 = vmatmul.bf16.gmra.mxu0 %v4541
      %v4634 = vpop.f32.mrf.mxu0
      %v4635 = vadd.f32 0.0, %v4634
      %v4636 = vpop.f32.mrf.mxu0
      %v4637 = vadd.f32 0.0, %v4636
      %4638 = vmatmul.bf16.gmra.mxu0 %v4542
      %v4639 = vpop.f32.mrf.mxu0
      %v4640 = vadd.f32 0.0, %v4639
      %v4641 = vpop.f32.mrf.mxu0
      %v4642 = vadd.f32 0.0, %v4641
      %4643 = vmatmul.bf16.gmra.mxu0 %v4543
      %v4644 = vpop.f32.mrf.mxu0
      %v4645 = vadd.f32 0.0, %v4644
      %v4646 = vpop.f32.mrf.mxu0
      %v4647 = vadd.f32 0.0, %v4646
      %4648 = vdwg.mxu0
      %v4649 = vadd.f32 %v4454, %v4610
      %v4650 = vadd.f32 %v4455, %v4612
      %v4651 = vadd.f32 %v4456, %v4615
      %v4652 = vadd.f32 %v4457, %v4617
      %v4653 = vadd.f32 %v4458, %v4620
      %v4654 = vadd.f32 %v4459, %v4622
      %v4655 = vadd.f32 %v4460, %v4625
      %v4656 = vadd.f32 %v4461, %v4627
      %v4657 = vadd.f32 %v4462, %v4630
      %v4658 = vadd.f32 %v4463, %v4632
      %v4659 = vadd.f32 %v4464, %v4635
      %v4660 = vadd.f32 %v4465, %v4637
      %v4661 = vadd.f32 %v4466, %v4640
      %v4662 = vadd.f32 %v4467, %v4642
      %v4663 = vadd.f32 %v4468, %v4645
      %v4664 = vadd.f32 %v4469, %v4647
      %v4665 = vld [vmem:[%s4470] sm:$0xf]
      %v4666 = vld [vmem:[%s4470 + $0x4] sm:$0xf]
      %v4667 = vld [vmem:[%s4470 + $0x8] sm:$0x1]
      %v4668 = vld [vmem:[%s4470 + $0xc] sm:$0xf]
      %v4669 = vld [vmem:[%s4470 + $0x10] sm:$0xf]
      %v4670 = vld [vmem:[%s4470 + $0x14] sm:$0x1]
      %v4671 = vld [vmem:[%s4470 + $0x18] sm:$0xf]
      %v4672 = vld [vmem:[%s4470 + $0x1c] sm:$0xf]
      %v4673 = vld [vmem:[%s4470 + $0x20] sm:$0x1]
      %v4674 = vld [vmem:[%s4470 + $0x24] sm:$0xf]
      %v4675 = vld [vmem:[%s4470 + $0x28] sm:$0xf]
      %v4676 = vld [vmem:[%s4470 + $0x2c] sm:$0x1]
      %v4677 = vld [vmem:[%s4470 + $0x30] sm:$0xf]
      %v4678 = vld [vmem:[%s4470 + $0x34] sm:$0xf]
      %v4679 = vld [vmem:[%s4470 + $0x38] sm:$0x1]
      %v4680 = vld [vmem:[%s4470 + $0x3c] sm:$0xf]
      %v4681 = vld [vmem:[%s4470 + $0x40] sm:$0xf]
      %v4682 = vld [vmem:[%s4470 + $0x44] sm:$0x1]
      %v4683 = vld [vmem:[%s4470 + $0x48] sm:$0xf]
      %v4684 = vld [vmem:[%s4470 + $0x4c] sm:$0xf]
      %v4685 = vld [vmem:[%s4470 + $0x50] sm:$0x1]
      %v4686 = vld [vmem:[%s4470 + $0x54] sm:$0xf]
      %v4687 = vld [vmem:[%s4470 + $0x58] sm:$0xf]
      %v4688 = vld [vmem:[%s4470 + $0x5c] sm:$0x1]
      %v4690 = vshrl.u32 %v4665, 16
      %v4692 = vrot.slane %v4690, 4
      %v4693 = vshll.u32 %v4665, 16
      %v4695 = vrot.slane %v4693, 5
      %v4696 = vor.u32 %v4692, %v4695
      %v4697 = vrot.slane %v4696, 4
      %v4699 = vshll.u32 %v4666, 16
      %v4701 = vrot.slane %v4699, 5
      %v4702 = vsel %vm427, %v4697, %v4701
      %v4703 = vshrl.u32 %v4666, 16
      %v4705 = vrot.slane %v4703, 4
      %v4706 = vor.u32 %v4705, %v4701
      %v4707 = vrot.slane %v4706, 4
      %v4709 = vshll.u32 %v4667, 16
      %v4711 = vrot.slane %v4709, 5
      %v4712 = vsel %vm427, %v4707, %v4711
      %v4714 = vshrl.u32 %v4668, 16
      %v4716 = vrot.slane %v4714, 4
      %v4717 = vshll.u32 %v4668, 16
      %v4719 = vrot.slane %v4717, 5
      %v4720 = vor.u32 %v4716, %v4719
      %v4721 = vrot.slane %v4720, 4
      %v4723 = vshll.u32 %v4669, 16
      %v4725 = vrot.slane %v4723, 5
      %v4726 = vsel %vm427, %v4721, %v4725
      %v4727 = vshrl.u32 %v4669, 16
      %v4729 = vrot.slane %v4727, 4
      %v4730 = vor.u32 %v4729, %v4725
      %v4731 = vrot.slane %v4730, 4
      %v4733 = vshll.u32 %v4670, 16
      %v4735 = vrot.slane %v4733, 5
      %v4736 = vsel %vm427, %v4731, %v4735
      %v4738 = vshrl.u32 %v4671, 16
      %v4740 = vrot.slane %v4738, 4
      %v4741 = vshll.u32 %v4671, 16
      %v4743 = vrot.slane %v4741, 5
      %v4744 = vor.u32 %v4740, %v4743
      %v4745 = vrot.slane %v4744, 4
      %v4747 = vshll.u32 %v4672, 16
      %v4749 = vrot.slane %v4747, 5
      %v4750 = vsel %vm427, %v4745, %v4749
      %v4751 = vshrl.u32 %v4672, 16
      %v4753 = vrot.slane %v4751, 4
      %v4754 = vor.u32 %v4753, %v4749
      %v4755 = vrot.slane %v4754, 4
      %v4757 = vshll.u32 %v4673, 16
      %v4759 = vrot.slane %v4757, 5
      %v4760 = vsel %vm427, %v4755, %v4759
      %v4762 = vshrl.u32 %v4674, 16
      %v4764 = vrot.slane %v4762, 4
      %v4765 = vshll.u32 %v4674, 16
      %v4767 = vrot.slane %v4765, 5
      %v4768 = vor.u32 %v4764, %v4767
      %v4769 = vrot.slane %v4768, 4
      %v4771 = vshll.u32 %v4675, 16
      %v4773 = vrot.slane %v4771, 5
      %v4774 = vsel %vm427, %v4769, %v4773
      %v4775 = vshrl.u32 %v4675, 16
      %v4777 = vrot.slane %v4775, 4
      %v4778 = vor.u32 %v4777, %v4773
      %v4779 = vrot.slane %v4778, 4
      %v4781 = vshll.u32 %v4676, 16
      %v4783 = vrot.slane %v4781, 5
      %v4784 = vsel %vm427, %v4779, %v4783
      %v4786 = vshrl.u32 %v4677, 16
      %v4788 = vrot.slane %v4786, 4
      %v4789 = vshll.u32 %v4677, 16
      %v4791 = vrot.slane %v4789, 5
      %v4792 = vor.u32 %v4788, %v4791
      %v4793 = vrot.slane %v4792, 4
      %v4795 = vshll.u32 %v4678, 16
      %v4797 = vrot.slane %v4795, 5
      %v4798 = vsel %vm427, %v4793, %v4797
      %v4799 = vshrl.u32 %v4678, 16
      %v4801 = vrot.slane %v4799, 4
      %v4802 = vor.u32 %v4801, %v4797
      %v4803 = vrot.slane %v4802, 4
      %v4805 = vshll.u32 %v4679, 16
      %v4807 = vrot.slane %v4805, 5
      %v4808 = vsel %vm427, %v4803, %v4807
      %v4810 = vshrl.u32 %v4680, 16
      %v4812 = vrot.slane %v4810, 4
      %v4813 = vshll.u32 %v4680, 16
      %v4815 = vrot.slane %v4813, 5
      %v4816 = vor.u32 %v4812, %v4815
      %v4817 = vrot.slane %v4816, 4
      %v4819 = vshll.u32 %v4681, 16
      %v4821 = vrot.slane %v4819, 5
      %v4822 = vsel %vm427, %v4817, %v4821
      %v4823 = vshrl.u32 %v4681, 16
      %v4825 = vrot.slane %v4823, 4
      %v4826 = vor.u32 %v4825, %v4821
      %v4827 = vrot.slane %v4826, 4
      %v4829 = vshll.u32 %v4682, 16
      %v4831 = vrot.slane %v4829, 5
      %v4832 = vsel %vm427, %v4827, %v4831
      %v4834 = vshrl.u32 %v4683, 16
      %v4836 = vrot.slane %v4834, 4
      %v4837 = vshll.u32 %v4683, 16
      %v4839 = vrot.slane %v4837, 5
      %v4840 = vor.u32 %v4836, %v4839
      %v4841 = vrot.slane %v4840, 4
      %v4843 = vshll.u32 %v4684, 16
      %v4845 = vrot.slane %v4843, 5
      %v4846 = vsel %vm427, %v4841, %v4845
      %v4847 = vshrl.u32 %v4684, 16
      %v4849 = vrot.slane %v4847, 4
      %v4850 = vor.u32 %v4849, %v4845
      %v4851 = vrot.slane %v4850, 4
      %v4853 = vshll.u32 %v4685, 16
      %v4855 = vrot.slane %v4853, 5
      %v4856 = vsel %vm427, %v4851, %v4855
      %v4858 = vshrl.u32 %v4686, 16
      %v4860 = vrot.slane %v4858, 4
      %v4861 = vshll.u32 %v4686, 16
      %v4863 = vrot.slane %v4861, 5
      %v4864 = vor.u32 %v4860, %v4863
      %v4865 = vrot.slane %v4864, 4
      %v4867 = vshll.u32 %v4687, 16
      %v4869 = vrot.slane %v4867, 5
      %v4870 = vsel %vm427, %v4865, %v4869
      %v4871 = vshrl.u32 %v4687, 16
      %v4873 = vrot.slane %v4871, 4
      %v4874 = vor.u32 %v4873, %v4869
      %v4875 = vrot.slane %v4874, 4
      %v4877 = vshll.u32 %v4688, 16
      %v4879 = vrot.slane %v4877, 5
      %v4880 = vsel %vm427, %v4875, %v4879
      %s4881 = scalar_lea.vmem %s3, 256
      %v4882 = vld [vmem:[%s4881] sm:$0xf]
      %v4883 = vld [vmem:[%s4881 + $0x4] sm:$0xf]
      %v4884 = vld [vmem:[%s4881 + $0x8] sm:$0xf]
      %v4885 = vld [vmem:[%s4881 + $0xc] sm:$0xf]
      %v4886 = vld [vmem:[%s4881 + $0x10] sm:$0xf]
      %v4887 = vld [vmem:[%s4881 + $0x14] sm:$0xf]
      %v4888 = vld [vmem:[%s4881 + $0x18] sm:$0xf]
      %v4889 = vld [vmem:[%s4881 + $0x1c] sm:$0xf]
      %v4890 = vld [vmem:[%s4881 + $0x20] sm:$0xf]
      %v4891 = vld [vmem:[%s4881 + $0x24] sm:$0xf]
      %v4892 = vld [vmem:[%s4881 + $0x28] sm:$0xf]
      %v4893 = vld [vmem:[%s4881 + $0x2c] sm:$0xf]
      %v4894 = vld [vmem:[%s4881 + $0x30] sm:$0xf]
      %v4895 = vld [vmem:[%s4881 + $0x34] sm:$0xf]
      %v4896 = vld [vmem:[%s4881 + $0x38] sm:$0xf]
      %v4897 = vld [vmem:[%s4881 + $0x3c] sm:$0xf]
      %v4898 = vunpack.c.l.b16 %v4702
      %v4899 = vunpack.c.l.b16 %v4712
      %v4900 = vunpack.c.l.b16 %v4726
      %v4901 = vunpack.c.l.b16 %v4736
      %v4902 = vunpack.c.l.b16 %v4750
      %v4903 = vunpack.c.l.b16 %v4760
      %v4904 = vunpack.c.l.b16 %v4774
      %v4905 = vunpack.c.l.b16 %v4784
      %v4906 = vunpack.c.l.b16 %v4798
      %v4907 = vunpack.c.l.b16 %v4808
      %v4908 = vunpack.c.l.b16 %v4822
      %v4909 = vunpack.c.l.b16 %v4832
      %v4910 = vunpack.c.l.b16 %v4846
      %v4911 = vunpack.c.l.b16 %v4856
      %v4912 = vunpack.c.l.b16 %v4870
      %v4913 = vunpack.c.l.b16 %v4880
      %v4914 = vpack.c.b16 %v4899, %v4898
      %v4915 = vpack.c.b16 %v4901, %v4900
      %v4916 = vpack.c.b16 %v4903, %v4902
      %v4917 = vpack.c.b16 %v4905, %v4904
      %v4918 = vpack.c.b16 %v4907, %v4906
      %v4919 = vpack.c.b16 %v4909, %v4908
      %v4920 = vpack.c.b16 %v4911, %v4910
      %v4921 = vpack.c.b16 %v4913, %v4912
      %v4946 = vunpack.c.l.b16 %v4882
      %v4947 = vunpack.c.l.b16 %v4883
      %v4948 = vunpack.c.l.b16 %v4884
      %v4949 = vunpack.c.l.b16 %v4885
      %v4950 = vunpack.c.l.b16 %v4886
      %v4951 = vunpack.c.l.b16 %v4887
      %v4952 = vunpack.c.l.b16 %v4888
      %v4953 = vunpack.c.l.b16 %v4889
      %v4954 = vunpack.c.l.b16 %v4890
      %v4955 = vunpack.c.l.b16 %v4891
      %v4956 = vunpack.c.l.b16 %v4892
      %v4957 = vunpack.c.l.b16 %v4893
      %v4958 = vunpack.c.l.b16 %v4894
      %v4959 = vunpack.c.l.b16 %v4895
      %v4960 = vunpack.c.l.b16 %v4896
      %v4961 = vunpack.c.l.b16 %v4897
      %v4962 = vpack.c.b16 %v4947, %v4946
      %v4963 = vpack.c.b16 %v4949, %v4948
      %v4964 = vpack.c.b16 %v4951, %v4950
      %v4965 = vpack.c.b16 %v4953, %v4952
      %v4966 = vpack.c.b16 %v4955, %v4954
      %v4967 = vpack.c.b16 %v4957, %v4956
      %v4968 = vpack.c.b16 %v4959, %v4958
      %v4969 = vpack.c.b16 %v4961, %v4960
      %4978 = vmatpush.bf16.msra.mxu0 %v4969
      %4979 = vmatpush.bf16.msra.mxu0 %v4968
      %4980 = vmatpush.bf16.msra.mxu0 %v4967
      %4981 = vmatpush.bf16.msra.mxu0 %v4966
      %4982 = vmatpush.bf16.msra.mxu0 %v4965
      %4983 = vmatpush.bf16.msra.mxu0 %v4964
      %4984 = vmatpush.bf16.msra.mxu0 %v4963
      %4985 = vmatpush.bf16.msra.mxu0 %v4962
      %4986 = vmatmul.bf16.gmra.mxu0 %v4914
      %v4987 = vpop.f32.mrf.mxu0
      %v4988 = vadd.f32 0.0, %v4987
      %v4989 = vpop.f32.mrf.mxu0
      %v4990 = vadd.f32 0.0, %v4989
      %4991 = vmatmul.bf16.gmra.mxu0 %v4915
      %v4992 = vpop.f32.mrf.mxu0
      %v4993 = vadd.f32 0.0, %v4992
      %v4994 = vpop.f32.mrf.mxu0
      %v4995 = vadd.f32 0.0, %v4994
      %4996 = vmatmul.bf16.gmra.mxu0 %v4916
      %v4997 = vpop.f32.mrf.mxu0
      %v4998 = vadd.f32 0.0, %v4997
      %v4999 = vpop.f32.mrf.mxu0
      %v5000 = vadd.f32 0.0, %v4999
      %5001 = vmatmul.bf16.gmra.mxu0 %v4917
      %v5002 = vpop.f32.mrf.mxu0
      %v5003 = vadd.f32 0.0, %v5002
      %v5004 = vpop.f32.mrf.mxu0
      %v5005 = vadd.f32 0.0, %v5004
      %5006 = vmatmul.bf16.gmra.mxu0 %v4918
      %v5007 = vpop.f32.mrf.mxu0
      %v5008 = vadd.f32 0.0, %v5007
      %v5009 = vpop.f32.mrf.mxu0
      %v5010 = vadd.f32 0.0, %v5009
      %5011 = vmatmul.bf16.gmra.mxu0 %v4919
      %v5012 = vpop.f32.mrf.mxu0
      %v5013 = vadd.f32 0.0, %v5012
      %v5014 = vpop.f32.mrf.mxu0
      %v5015 = vadd.f32 0.0, %v5014
      %5016 = vmatmul.bf16.gmra.mxu0 %v4920
      %v5017 = vpop.f32.mrf.mxu0
      %v5018 = vadd.f32 0.0, %v5017
      %v5019 = vpop.f32.mrf.mxu0
      %v5020 = vadd.f32 0.0, %v5019
      %5021 = vmatmul.bf16.gmra.mxu0 %v4921
      %v5022 = vpop.f32.mrf.mxu0
      %v5023 = vadd.f32 0.0, %v5022
      %v5024 = vpop.f32.mrf.mxu0
      %v5025 = vadd.f32 0.0, %v5024
      %5026 = vdwg.mxu0
      %v5027 = vadd.f32 %v4649, %v4988
      %v5028 = vadd.f32 %v4650, %v4990
      %v5029 = vadd.f32 %v4651, %v4993
      %v5030 = vadd.f32 %v4652, %v4995
      %v5031 = vadd.f32 %v4653, %v4998
      %v5032 = vadd.f32 %v4654, %v5000
      %v5033 = vadd.f32 %v4655, %v5003
      %v5034 = vadd.f32 %v4656, %v5005
      %v5035 = vadd.f32 %v4657, %v5008
      %v5036 = vadd.f32 %v4658, %v5010
      %v5037 = vadd.f32 %v4659, %v5013
      %v5038 = vadd.f32 %v4660, %v5015
      %v5039 = vadd.f32 %v4661, %v5018
      %v5040 = vadd.f32 %v4662, %v5020
      %v5041 = vadd.f32 %v4663, %v5023
      %v5042 = vadd.f32 %v4664, %v5025
      %v5043 = vld [vmem:[%s4470] sm:$0xe]
      %v5044 = vld [vmem:[%s4470 + $0xc] sm:$0xe]
      %v5045 = vld [vmem:[%s4470 + $0x18] sm:$0xe]
      %v5046 = vld [vmem:[%s4470 + $0x24] sm:$0xe]
      %v5047 = vld [vmem:[%s4470 + $0x30] sm:$0xe]
      %v5048 = vld [vmem:[%s4470 + $0x3c] sm:$0xe]
      %v5049 = vld [vmem:[%s4470 + $0x48] sm:$0xe]
      %v5050 = vld [vmem:[%s4470 + $0x54] sm:$0xe]
      %v5075 = vrot.slane %v5043, 5
      %v5076 = vrot.slane %v5075, 4
      %v5077 = vrot.slane %v4666, 5
      %v5078 = vsel %vm998, %v5076, %v5077
      %v5079 = vrot.slane %v5077, 4
      %v5080 = vrot.slane %v4667, 5
      %v5081 = vsel %vm998, %v5079, %v5080
      %v5082 = vrot.slane %v5044, 5
      %v5083 = vrot.slane %v5082, 4
      %v5084 = vrot.slane %v4669, 5
      %v5085 = vsel %vm998, %v5083, %v5084
      %v5086 = vrot.slane %v5084, 4
      %v5087 = vrot.slane %v4670, 5
      %v5088 = vsel %vm998, %v5086, %v5087
      %v5089 = vrot.slane %v5045, 5
      %v5090 = vrot.slane %v5089, 4
      %v5091 = vrot.slane %v4672, 5
      %v5092 = vsel %vm998, %v5090, %v5091
      %v5093 = vrot.slane %v5091, 4
      %v5094 = vrot.slane %v4673, 5
      %v5095 = vsel %vm998, %v5093, %v5094
      %v5096 = vrot.slane %v5046, 5
      %v5097 = vrot.slane %v5096, 4
      %v5098 = vrot.slane %v4675, 5
      %v5099 = vsel %vm998, %v5097, %v5098
      %v5100 = vrot.slane %v5098, 4
      %v5101 = vrot.slane %v4676, 5
      %v5102 = vsel %vm998, %v5100, %v5101
      %v5103 = vrot.slane %v5047, 5
      %v5104 = vrot.slane %v5103, 4
      %v5105 = vrot.slane %v4678, 5
      %v5106 = vsel %vm998, %v5104, %v5105
      %v5107 = vrot.slane %v5105, 4
      %v5108 = vrot.slane %v4679, 5
      %v5109 = vsel %vm998, %v5107, %v5108
      %v5110 = vrot.slane %v5048, 5
      %v5111 = vrot.slane %v5110, 4
      %v5112 = vrot.slane %v4681, 5
      %v5113 = vsel %vm998, %v5111, %v5112
      %v5114 = vrot.slane %v5112, 4
      %v5115 = vrot.slane %v4682, 5
      %v5116 = vsel %vm998, %v5114, %v5115
      %v5117 = vrot.slane %v5049, 5
      %v5118 = vrot.slane %v5117, 4
      %v5119 = vrot.slane %v4684, 5
      %v5120 = vsel %vm998, %v5118, %v5119
      %v5121 = vrot.slane %v5119, 4
      %v5122 = vrot.slane %v4685, 5
      %v5123 = vsel %vm998, %v5121, %v5122
      %v5124 = vrot.slane %v5050, 5
      %v5125 = vrot.slane %v5124, 4
      %v5126 = vrot.slane %v4687, 5
      %v5127 = vsel %vm998, %v5125, %v5126
      %v5128 = vrot.slane %v5126, 4
      %v5129 = vrot.slane %v4688, 5
      %v5130 = vsel %vm998, %v5128, %v5129
      %s5131 = scalar_lea.vmem %s3, 320
      %v5132 = vld [vmem:[%s5131] sm:$0xf]
      %v5133 = vld [vmem:[%s5131 + $0x4] sm:$0xf]
      %v5134 = vld [vmem:[%s5131 + $0x8] sm:$0xf]
      %v5135 = vld [vmem:[%s5131 + $0xc] sm:$0xf]
      %v5136 = vld [vmem:[%s5131 + $0x10] sm:$0xf]
      %v5137 = vld [vmem:[%s5131 + $0x14] sm:$0xf]
      %v5138 = vld [vmem:[%s5131 + $0x18] sm:$0xf]
      %v5139 = vld [vmem:[%s5131 + $0x1c] sm:$0xf]
      %v5140 = vld [vmem:[%s5131 + $0x20] sm:$0xf]
      %v5141 = vld [vmem:[%s5131 + $0x24] sm:$0xf]
      %v5142 = vld [vmem:[%s5131 + $0x28] sm:$0xf]
      %v5143 = vld [vmem:[%s5131 + $0x2c] sm:$0xf]
      %v5144 = vld [vmem:[%s5131 + $0x30] sm:$0xf]
      %v5145 = vld [vmem:[%s5131 + $0x34] sm:$0xf]
      %v5146 = vld [vmem:[%s5131 + $0x38] sm:$0xf]
      %v5147 = vld [vmem:[%s5131 + $0x3c] sm:$0xf]
      %v5148 = vunpack.c.l.b16 %v5078
      %v5149 = vunpack.c.l.b16 %v5081
      %v5150 = vunpack.c.l.b16 %v5085
      %v5151 = vunpack.c.l.b16 %v5088
      %v5152 = vunpack.c.l.b16 %v5092
      %v5153 = vunpack.c.l.b16 %v5095
      %v5154 = vunpack.c.l.b16 %v5099
      %v5155 = vunpack.c.l.b16 %v5102
      %v5156 = vunpack.c.l.b16 %v5106
      %v5157 = vunpack.c.l.b16 %v5109
      %v5158 = vunpack.c.l.b16 %v5113
      %v5159 = vunpack.c.l.b16 %v5116
      %v5160 = vunpack.c.l.b16 %v5120
      %v5161 = vunpack.c.l.b16 %v5123
      %v5162 = vunpack.c.l.b16 %v5127
      %v5163 = vunpack.c.l.b16 %v5130
      %v5164 = vpack.c.b16 %v5149, %v5148
      %v5165 = vpack.c.b16 %v5151, %v5150
      %v5166 = vpack.c.b16 %v5153, %v5152
      %v5167 = vpack.c.b16 %v5155, %v5154
      %v5168 = vpack.c.b16 %v5157, %v5156
      %v5169 = vpack.c.b16 %v5159, %v5158
      %v5170 = vpack.c.b16 %v5161, %v5160
      %v5171 = vpack.c.b16 %v5163, %v5162
      %v5196 = vunpack.c.l.b16 %v5132
      %v5197 = vunpack.c.l.b16 %v5133
      %v5198 = vunpack.c.l.b16 %v5134
      %v5199 = vunpack.c.l.b16 %v5135
      %v5200 = vunpack.c.l.b16 %v5136
      %v5201 = vunpack.c.l.b16 %v5137
      %v5202 = vunpack.c.l.b16 %v5138
      %v5203 = vunpack.c.l.b16 %v5139
      %v5204 = vunpack.c.l.b16 %v5140
      %v5205 = vunpack.c.l.b16 %v5141
      %v5206 = vunpack.c.l.b16 %v5142
      %v5207 = vunpack.c.l.b16 %v5143
      %v5208 = vunpack.c.l.b16 %v5144
      %v5209 = vunpack.c.l.b16 %v5145
      %v5210 = vunpack.c.l.b16 %v5146
      %v5211 = vunpack.c.l.b16 %v5147
      %v5212 = vpack.c.b16 %v5197, %v5196
      %v5213 = vpack.c.b16 %v5199, %v5198
      %v5214 = vpack.c.b16 %v5201, %v5200
      %v5215 = vpack.c.b16 %v5203, %v5202
      %v5216 = vpack.c.b16 %v5205, %v5204
      %v5217 = vpack.c.b16 %v5207, %v5206
      %v5218 = vpack.c.b16 %v5209, %v5208
      %v5219 = vpack.c.b16 %v5211, %v5210
      %5228 = vmatpush.bf16.msra.mxu0 %v5219
      %5229 = vmatpush.bf16.msra.mxu0 %v5218
      %5230 = vmatpush.bf16.msra.mxu0 %v5217
      %5231 = vmatpush.bf16.msra.mxu0 %v5216
      %5232 = vmatpush.bf16.msra.mxu0 %v5215
      %5233 = vmatpush.bf16.msra.mxu0 %v5214
      %5234 = vmatpush.bf16.msra.mxu0 %v5213
      %5235 = vmatpush.bf16.msra.mxu0 %v5212
      %5236 = vmatmul.bf16.gmra.mxu0 %v5164
      %v5237 = vpop.f32.mrf.mxu0
      %v5238 = vadd.f32 0.0, %v5237
      %v5239 = vpop.f32.mrf.mxu0
      %v5240 = vadd.f32 0.0, %v5239
      %5241 = vmatmul.bf16.gmra.mxu0 %v5165
      %v5242 = vpop.f32.mrf.mxu0
      %v5243 = vadd.f32 0.0, %v5242
      %v5244 = vpop.f32.mrf.mxu0
      %v5245 = vadd.f32 0.0, %v5244
      %5246 = vmatmul.bf16.gmra.mxu0 %v5166
      %v5247 = vpop.f32.mrf.mxu0
      %v5248 = vadd.f32 0.0, %v5247
      %v5249 = vpop.f32.mrf.mxu0
      %v5250 = vadd.f32 0.0, %v5249
      %5251 = vmatmul.bf16.gmra.mxu0 %v5167
      %v5252 = vpop.f32.mrf.mxu0
      %v5253 = vadd.f32 0.0, %v5252
      %v5254 = vpop.f32.mrf.mxu0
      %v5255 = vadd.f32 0.0, %v5254
      %5256 = vmatmul.bf16.gmra.mxu0 %v5168
      %v5257 = vpop.f32.mrf.mxu0
      %v5258 = vadd.f32 0.0, %v5257
      %v5259 = vpop.f32.mrf.mxu0
      %v5260 = vadd.f32 0.0, %v5259
      %5261 = vmatmul.bf16.gmra.mxu0 %v5169
      %v5262 = vpop.f32.mrf.mxu0
      %v5263 = vadd.f32 0.0, %v5262
      %v5264 = vpop.f32.mrf.mxu0
      %v5265 = vadd.f32 0.0, %v5264
      %5266 = vmatmul.bf16.gmra.mxu0 %v5170
      %v5267 = vpop.f32.mrf.mxu0
      %v5268 = vadd.f32 0.0, %v5267
      %v5269 = vpop.f32.mrf.mxu0
      %v5270 = vadd.f32 0.0, %v5269
      %5271 = vmatmul.bf16.gmra.mxu0 %v5171
      %v5272 = vpop.f32.mrf.mxu0
      %v5273 = vadd.f32 0.0, %v5272
      %v5274 = vpop.f32.mrf.mxu0
      %v5275 = vadd.f32 0.0, %v5274
      %5276 = vdwg.mxu0
      %v5277 = vadd.f32 %v5027, %v5238
      %v5278 = vadd.f32 %v5028, %v5240
      %v5279 = vadd.f32 %v5029, %v5243
      %v5280 = vadd.f32 %v5030, %v5245
      %v5281 = vadd.f32 %v5031, %v5248
      %v5282 = vadd.f32 %v5032, %v5250
      %v5283 = vadd.f32 %v5033, %v5253
      %v5284 = vadd.f32 %v5034, %v5255
      %v5285 = vadd.f32 %v5035, %v5258
      %v5286 = vadd.f32 %v5036, %v5260
      %v5287 = vadd.f32 %v5037, %v5263
      %v5288 = vadd.f32 %v5038, %v5265
      %v5289 = vadd.f32 %v5039, %v5268
      %v5290 = vadd.f32 %v5040, %v5270
      %v5291 = vadd.f32 %v5041, %v5273
      %v5292 = vadd.f32 %v5042, %v5275
      %s5293 = scalar_lea.vmem [#allocation2], 24
      %v5294 = vld [vmem:[%s5293] sm:$0xf]
      %v5295 = vld [vmem:[%s5293 + $0x4] sm:$0xf]
      %v5296 = vld [vmem:[%s5293 + $0xc] sm:$0xf]
      %v5297 = vld [vmem:[%s5293 + $0x10] sm:$0xf]
      %v5298 = vld [vmem:[%s5293 + $0x18] sm:$0xf]
      %v5299 = vld [vmem:[%s5293 + $0x1c] sm:$0xf]
      %v5300 = vld [vmem:[%s5293 + $0x24] sm:$0xf]
      %v5301 = vld [vmem:[%s5293 + $0x28] sm:$0xf]
      %v5302 = vld [vmem:[%s5293 + $0x30] sm:$0xf]
      %v5303 = vld [vmem:[%s5293 + $0x34] sm:$0xf]
      %v5304 = vld [vmem:[%s5293 + $0x3c] sm:$0xf]
      %v5305 = vld [vmem:[%s5293 + $0x40] sm:$0xf]
      %v5306 = vld [vmem:[%s5293 + $0x48] sm:$0xf]
      %v5307 = vld [vmem:[%s5293 + $0x4c] sm:$0xf]
      %v5308 = vld [vmem:[%s5293 + $0x54] sm:$0xf]
      %v5309 = vld [vmem:[%s5293 + $0x58] sm:$0xf]
      %s5310 = scalar_lea.vmem %s3, 384
      %v5311 = vld [vmem:[%s5310] sm:$0xf]
      %v5312 = vld [vmem:[%s5310 + $0x4] sm:$0xf]
      %v5313 = vld [vmem:[%s5310 + $0x8] sm:$0xf]
      %v5314 = vld [vmem:[%s5310 + $0xc] sm:$0xf]
      %v5315 = vld [vmem:[%s5310 + $0x10] sm:$0xf]
      %v5316 = vld [vmem:[%s5310 + $0x14] sm:$0xf]
      %v5317 = vld [vmem:[%s5310 + $0x18] sm:$0xf]
      %v5318 = vld [vmem:[%s5310 + $0x1c] sm:$0xf]
      %v5319 = vld [vmem:[%s5310 + $0x20] sm:$0xf]
      %v5320 = vld [vmem:[%s5310 + $0x24] sm:$0xf]
      %v5321 = vld [vmem:[%s5310 + $0x28] sm:$0xf]
      %v5322 = vld [vmem:[%s5310 + $0x2c] sm:$0xf]
      %v5323 = vld [vmem:[%s5310 + $0x30] sm:$0xf]
      %v5324 = vld [vmem:[%s5310 + $0x34] sm:$0xf]
      %v5325 = vld [vmem:[%s5310 + $0x38] sm:$0xf]
      %v5326 = vld [vmem:[%s5310 + $0x3c] sm:$0xf]
      %v5343 = vunpack.c.l.b16 %v5294
      %v5344 = vunpack.c.l.b16 %v5295
      %v5345 = vunpack.c.l.b16 %v5296
      %v5346 = vunpack.c.l.b16 %v5297
      %v5347 = vunpack.c.l.b16 %v5298
      %v5348 = vunpack.c.l.b16 %v5299
      %v5349 = vunpack.c.l.b16 %v5300
      %v5350 = vunpack.c.l.b16 %v5301
      %v5351 = vunpack.c.l.b16 %v5302
      %v5352 = vunpack.c.l.b16 %v5303
      %v5353 = vunpack.c.l.b16 %v5304
      %v5354 = vunpack.c.l.b16 %v5305
      %v5355 = vunpack.c.l.b16 %v5306
      %v5356 = vunpack.c.l.b16 %v5307
      %v5357 = vunpack.c.l.b16 %v5308
      %v5358 = vunpack.c.l.b16 %v5309
      %v5359 = vpack.c.b16 %v5344, %v5343
      %v5360 = vpack.c.b16 %v5346, %v5345
      %v5361 = vpack.c.b16 %v5348, %v5347
      %v5362 = vpack.c.b16 %v5350, %v5349
      %v5363 = vpack.c.b16 %v5352, %v5351
      %v5364 = vpack.c.b16 %v5354, %v5353
      %v5365 = vpack.c.b16 %v5356, %v5355
      %v5366 = vpack.c.b16 %v5358, %v5357
      %v5391 = vunpack.c.l.b16 %v5311
      %v5392 = vunpack.c.l.b16 %v5312
      %v5393 = vunpack.c.l.b16 %v5313
      %v5394 = vunpack.c.l.b16 %v5314
      %v5395 = vunpack.c.l.b16 %v5315
      %v5396 = vunpack.c.l.b16 %v5316
      %v5397 = vunpack.c.l.b16 %v5317
      %v5398 = vunpack.c.l.b16 %v5318
      %v5399 = vunpack.c.l.b16 %v5319
      %v5400 = vunpack.c.l.b16 %v5320
      %v5401 = vunpack.c.l.b16 %v5321
      %v5402 = vunpack.c.l.b16 %v5322
      %v5403 = vunpack.c.l.b16 %v5323
      %v5404 = vunpack.c.l.b16 %v5324
      %v5405 = vunpack.c.l.b16 %v5325
      %v5406 = vunpack.c.l.b16 %v5326
      %v5407 = vpack.c.b16 %v5392, %v5391
      %v5408 = vpack.c.b16 %v5394, %v5393
      %v5409 = vpack.c.b16 %v5396, %v5395
      %v5410 = vpack.c.b16 %v5398, %v5397
      %v5411 = vpack.c.b16 %v5400, %v5399
      %v5412 = vpack.c.b16 %v5402, %v5401
      %v5413 = vpack.c.b16 %v5404, %v5403
      %v5414 = vpack.c.b16 %v5406, %v5405
      %5423 = vmatpush.bf16.msra.mxu0 %v5414
      %5424 = vmatpush.bf16.msra.mxu0 %v5413
      %5425 = vmatpush.bf16.msra.mxu0 %v5412
      %5426 = vmatpush.bf16.msra.mxu0 %v5411
      %5427 = vmatpush.bf16.msra.mxu0 %v5410
      %5428 = vmatpush.bf16.msra.mxu0 %v5409
      %5429 = vmatpush.bf16.msra.mxu0 %v5408
      %5430 = vmatpush.bf16.msra.mxu0 %v5407
      %5431 = vmatmul.bf16.gmra.mxu0 %v5359
      %v5432 = vpop.f32.mrf.mxu0
      %v5433 = vadd.f32 0.0, %v5432
      %v5434 = vpop.f32.mrf.mxu0
      %v5435 = vadd.f32 0.0, %v5434
      %5436 = vmatmul.bf16.gmra.mxu0 %v5360
      %v5437 = vpop.f32.mrf.mxu0
      %v5438 = vadd.f32 0.0, %v5437
      %v5439 = vpop.f32.mrf.mxu0
      %v5440 = vadd.f32 0.0, %v5439
      %5441 = vmatmul.bf16.gmra.mxu0 %v5361
      %v5442 = vpop.f32.mrf.mxu0
      %v5443 = vadd.f32 0.0, %v5442
      %v5444 = vpop.f32.mrf.mxu0
      %v5445 = vadd.f32 0.0, %v5444
      %5446 = vmatmul.bf16.gmra.mxu0 %v5362
      %v5447 = vpop.f32.mrf.mxu0
      %v5448 = vadd.f32 0.0, %v5447
      %v5449 = vpop.f32.mrf.mxu0
      %v5450 = vadd.f32 0.0, %v5449
      %5451 = vmatmul.bf16.gmra.mxu0 %v5363
      %v5452 = vpop.f32.mrf.mxu0
      %v5453 = vadd.f32 0.0, %v5452
      %v5454 = vpop.f32.mrf.mxu0
      %v5455 = vadd.f32 0.0, %v5454
      %5456 = vmatmul.bf16.gmra.mxu0 %v5364
      %v5457 = vpop.f32.mrf.mxu0
      %v5458 = vadd.f32 0.0, %v5457
      %v5459 = vpop.f32.mrf.mxu0
      %v5460 = vadd.f32 0.0, %v5459
      %5461 = vmatmul.bf16.gmra.mxu0 %v5365
      %v5462 = vpop.f32.mrf.mxu0
      %v5463 = vadd.f32 0.0, %v5462
      %v5464 = vpop.f32.mrf.mxu0
      %v5465 = vadd.f32 0.0, %v5464
      %5466 = vmatmul.bf16.gmra.mxu0 %v5366
      %v5467 = vpop.f32.mrf.mxu0
      %v5468 = vadd.f32 0.0, %v5467
      %v5469 = vpop.f32.mrf.mxu0
      %v5470 = vadd.f32 0.0, %v5469
      %5471 = vdwg.mxu0
      %v5472 = vadd.f32 %v5277, %v5433
      %v5473 = vadd.f32 %v5278, %v5435
      %v5474 = vadd.f32 %v5279, %v5438
      %v5475 = vadd.f32 %v5280, %v5440
      %v5476 = vadd.f32 %v5281, %v5443
      %v5477 = vadd.f32 %v5282, %v5445
      %v5478 = vadd.f32 %v5283, %v5448
      %v5479 = vadd.f32 %v5284, %v5450
      %v5480 = vadd.f32 %v5285, %v5453
      %v5481 = vadd.f32 %v5286, %v5455
      %v5482 = vadd.f32 %v5287, %v5458
      %v5483 = vadd.f32 %v5288, %v5460
      %v5484 = vadd.f32 %v5289, %v5463
      %v5485 = vadd.f32 %v5290, %v5465
      %v5486 = vadd.f32 %v5291, %v5468
      %v5487 = vadd.f32 %v5292, %v5470
      %v5488 = vld [vmem:[%s5293] sm:$0xf]
      %v5489 = vld [vmem:[%s5293 + $0x4] sm:$0xf]
      %v5490 = vld [vmem:[%s5293 + $0x8] sm:$0x1]
      %v5491 = vld [vmem:[%s5293 + $0xc] sm:$0xf]
      %v5492 = vld [vmem:[%s5293 + $0x10] sm:$0xf]
      %v5493 = vld [vmem:[%s5293 + $0x14] sm:$0x1]
      %v5494 = vld [vmem:[%s5293 + $0x18] sm:$0xf]
      %v5495 = vld [vmem:[%s5293 + $0x1c] sm:$0xf]
      %v5496 = vld [vmem:[%s5293 + $0x20] sm:$0x1]
      %v5497 = vld [vmem:[%s5293 + $0x24] sm:$0xf]
      %v5498 = vld [vmem:[%s5293 + $0x28] sm:$0xf]
      %v5499 = vld [vmem:[%s5293 + $0x2c] sm:$0x1]
      %v5500 = vld [vmem:[%s5293 + $0x30] sm:$0xf]
      %v5501 = vld [vmem:[%s5293 + $0x34] sm:$0xf]
      %v5502 = vld [vmem:[%s5293 + $0x38] sm:$0x1]
      %v5503 = vld [vmem:[%s5293 + $0x3c] sm:$0xf]
      %v5504 = vld [vmem:[%s5293 + $0x40] sm:$0xf]
      %v5505 = vld [vmem:[%s5293 + $0x44] sm:$0x1]
      %v5506 = vld [vmem:[%s5293 + $0x48] sm:$0xf]
      %v5507 = vld [vmem:[%s5293 + $0x4c] sm:$0xf]
      %v5508 = vld [vmem:[%s5293 + $0x50] sm:$0x1]
      %v5509 = vld [vmem:[%s5293 + $0x54] sm:$0xf]
      %v5510 = vld [vmem:[%s5293 + $0x58] sm:$0xf]
      %v5511 = vld [vmem:[%s5293 + $0x5c] sm:$0x1]
      %v5513 = vshrl.u32 %v5488, 16
      %v5515 = vrot.slane %v5513, 4
      %v5516 = vshll.u32 %v5488, 16
      %v5518 = vrot.slane %v5516, 5
      %v5519 = vor.u32 %v5515, %v5518
      %v5520 = vrot.slane %v5519, 4
      %v5522 = vshll.u32 %v5489, 16
      %v5524 = vrot.slane %v5522, 5
      %v5525 = vsel %vm427, %v5520, %v5524
      %v5526 = vshrl.u32 %v5489, 16
      %v5528 = vrot.slane %v5526, 4
      %v5529 = vor.u32 %v5528, %v5524
      %v5530 = vrot.slane %v5529, 4
      %v5532 = vshll.u32 %v5490, 16
      %v5534 = vrot.slane %v5532, 5
      %v5535 = vsel %vm427, %v5530, %v5534
      %v5537 = vshrl.u32 %v5491, 16
      %v5539 = vrot.slane %v5537, 4
      %v5540 = vshll.u32 %v5491, 16
      %v5542 = vrot.slane %v5540, 5
      %v5543 = vor.u32 %v5539, %v5542
      %v5544 = vrot.slane %v5543, 4
      %v5546 = vshll.u32 %v5492, 16
      %v5548 = vrot.slane %v5546, 5
      %v5549 = vsel %vm427, %v5544, %v5548
      %v5550 = vshrl.u32 %v5492, 16
      %v5552 = vrot.slane %v5550, 4
      %v5553 = vor.u32 %v5552, %v5548
      %v5554 = vrot.slane %v5553, 4
      %v5556 = vshll.u32 %v5493, 16
      %v5558 = vrot.slane %v5556, 5
      %v5559 = vsel %vm427, %v5554, %v5558
      %v5561 = vshrl.u32 %v5494, 16
      %v5563 = vrot.slane %v5561, 4
      %v5564 = vshll.u32 %v5494, 16
      %v5566 = vrot.slane %v5564, 5
      %v5567 = vor.u32 %v5563, %v5566
      %v5568 = vrot.slane %v5567, 4
      %v5570 = vshll.u32 %v5495, 16
      %v5572 = vrot.slane %v5570, 5
      %v5573 = vsel %vm427, %v5568, %v5572
      %v5574 = vshrl.u32 %v5495, 16
      %v5576 = vrot.slane %v5574, 4
      %v5577 = vor.u32 %v5576, %v5572
      %v5578 = vrot.slane %v5577, 4
      %v5580 = vshll.u32 %v5496, 16
      %v5582 = vrot.slane %v5580, 5
      %v5583 = vsel %vm427, %v5578, %v5582
      %v5585 = vshrl.u32 %v5497, 16
      %v5587 = vrot.slane %v5585, 4
      %v5588 = vshll.u32 %v5497, 16
      %v5590 = vrot.slane %v5588, 5
      %v5591 = vor.u32 %v5587, %v5590
      %v5592 = vrot.slane %v5591, 4
      %v5594 = vshll.u32 %v5498, 16
      %v5596 = vrot.slane %v5594, 5
      %v5597 = vsel %vm427, %v5592, %v5596
      %v5598 = vshrl.u32 %v5498, 16
      %v5600 = vrot.slane %v5598, 4
      %v5601 = vor.u32 %v5600, %v5596
      %v5602 = vrot.slane %v5601, 4
      %v5604 = vshll.u32 %v5499, 16
      %v5606 = vrot.slane %v5604, 5
      %v5607 = vsel %vm427, %v5602, %v5606
      %v5609 = vshrl.u32 %v5500, 16
      %v5611 = vrot.slane %v5609, 4
      %v5612 = vshll.u32 %v5500, 16
      %v5614 = vrot.slane %v5612, 5
      %v5615 = vor.u32 %v5611, %v5614
      %v5616 = vrot.slane %v5615, 4
      %v5618 = vshll.u32 %v5501, 16
      %v5620 = vrot.slane %v5618, 5
      %v5621 = vsel %vm427, %v5616, %v5620
      %v5622 = vshrl.u32 %v5501, 16
      %v5624 = vrot.slane %v5622, 4
      %v5625 = vor.u32 %v5624, %v5620
      %v5626 = vrot.slane %v5625, 4
      %v5628 = vshll.u32 %v5502, 16
      %v5630 = vrot.slane %v5628, 5
      %v5631 = vsel %vm427, %v5626, %v5630
      %v5633 = vshrl.u32 %v5503, 16
      %v5635 = vrot.slane %v5633, 4
      %v5636 = vshll.u32 %v5503, 16
      %v5638 = vrot.slane %v5636, 5
      %v5639 = vor.u32 %v5635, %v5638
      %v5640 = vrot.slane %v5639, 4
      %v5642 = vshll.u32 %v5504, 16
      %v5644 = vrot.slane %v5642, 5
      %v5645 = vsel %vm427, %v5640, %v5644
      %v5646 = vshrl.u32 %v5504, 16
      %v5648 = vrot.slane %v5646, 4
      %v5649 = vor.u32 %v5648, %v5644
      %v5650 = vrot.slane %v5649, 4
      %v5652 = vshll.u32 %v5505, 16
      %v5654 = vrot.slane %v5652, 5
      %v5655 = vsel %vm427, %v5650, %v5654
      %v5657 = vshrl.u32 %v5506, 16
      %v5659 = vrot.slane %v5657, 4
      %v5660 = vshll.u32 %v5506, 16
      %v5662 = vrot.slane %v5660, 5
      %v5663 = vor.u32 %v5659, %v5662
      %v5664 = vrot.slane %v5663, 4
      %v5666 = vshll.u32 %v5507, 16
      %v5668 = vrot.slane %v5666, 5
      %v5669 = vsel %vm427, %v5664, %v5668
      %v5670 = vshrl.u32 %v5507, 16
      %v5672 = vrot.slane %v5670, 4
      %v5673 = vor.u32 %v5672, %v5668
      %v5674 = vrot.slane %v5673, 4
      %v5676 = vshll.u32 %v5508, 16
      %v5678 = vrot.slane %v5676, 5
      %v5679 = vsel %vm427, %v5674, %v5678
      %v5681 = vshrl.u32 %v5509, 16
      %v5683 = vrot.slane %v5681, 4
      %v5684 = vshll.u32 %v5509, 16
      %v5686 = vrot.slane %v5684, 5
      %v5687 = vor.u32 %v5683, %v5686
      %v5688 = vrot.slane %v5687, 4
      %v5690 = vshll.u32 %v5510, 16
      %v5692 = vrot.slane %v5690, 5
      %v5693 = vsel %vm427, %v5688, %v5692
      %v5694 = vshrl.u32 %v5510, 16
      %v5696 = vrot.slane %v5694, 4
      %v5697 = vor.u32 %v5696, %v5692
      %v5698 = vrot.slane %v5697, 4
      %v5700 = vshll.u32 %v5511, 16
      %v5702 = vrot.slane %v5700, 5
      %v5703 = vsel %vm427, %v5698, %v5702
      %s5704 = scalar_lea.vmem %s3, 448
      %v5705 = vld [vmem:[%s5704] sm:$0xf]
      %v5706 = vld [vmem:[%s5704 + $0x4] sm:$0xf]
      %v5707 = vld [vmem:[%s5704 + $0x8] sm:$0xf]
      %v5708 = vld [vmem:[%s5704 + $0xc] sm:$0xf]
      %v5709 = vld [vmem:[%s5704 + $0x10] sm:$0xf]
      %v5710 = vld [vmem:[%s5704 + $0x14] sm:$0xf]
      %v5711 = vld [vmem:[%s5704 + $0x18] sm:$0xf]
      %v5712 = vld [vmem:[%s5704 + $0x1c] sm:$0xf]
      %v5713 = vld [vmem:[%s5704 + $0x20] sm:$0xf]
      %v5714 = vld [vmem:[%s5704 + $0x24] sm:$0xf]
      %v5715 = vld [vmem:[%s5704 + $0x28] sm:$0xf]
      %v5716 = vld [vmem:[%s5704 + $0x2c] sm:$0xf]
      %v5717 = vld [vmem:[%s5704 + $0x30] sm:$0xf]
      %v5718 = vld [vmem:[%s5704 + $0x34] sm:$0xf]
      %v5719 = vld [vmem:[%s5704 + $0x38] sm:$0xf]
      %v5720 = vld [vmem:[%s5704 + $0x3c] sm:$0xf]
      %v5721 = vunpack.c.l.b16 %v5525
      %v5722 = vunpack.c.l.b16 %v5535
      %v5723 = vunpack.c.l.b16 %v5549
      %v5724 = vunpack.c.l.b16 %v5559
      %v5725 = vunpack.c.l.b16 %v5573
      %v5726 = vunpack.c.l.b16 %v5583
      %v5727 = vunpack.c.l.b16 %v5597
      %v5728 = vunpack.c.l.b16 %v5607
      %v5729 = vunpack.c.l.b16 %v5621
      %v5730 = vunpack.c.l.b16 %v5631
      %v5731 = vunpack.c.l.b16 %v5645
      %v5732 = vunpack.c.l.b16 %v5655
      %v5733 = vunpack.c.l.b16 %v5669
      %v5734 = vunpack.c.l.b16 %v5679
      %v5735 = vunpack.c.l.b16 %v5693
      %v5736 = vunpack.c.l.b16 %v5703
      %v5737 = vpack.c.b16 %v5722, %v5721
      %v5738 = vpack.c.b16 %v5724, %v5723
      %v5739 = vpack.c.b16 %v5726, %v5725
      %v5740 = vpack.c.b16 %v5728, %v5727
      %v5741 = vpack.c.b16 %v5730, %v5729
      %v5742 = vpack.c.b16 %v5732, %v5731
      %v5743 = vpack.c.b16 %v5734, %v5733
      %v5744 = vpack.c.b16 %v5736, %v5735
      %v5769 = vunpack.c.l.b16 %v5705
      %v5770 = vunpack.c.l.b16 %v5706
      %v5771 = vunpack.c.l.b16 %v5707
      %v5772 = vunpack.c.l.b16 %v5708
      %v5773 = vunpack.c.l.b16 %v5709
      %v5774 = vunpack.c.l.b16 %v5710
      %v5775 = vunpack.c.l.b16 %v5711
      %v5776 = vunpack.c.l.b16 %v5712
      %v5777 = vunpack.c.l.b16 %v5713
      %v5778 = vunpack.c.l.b16 %v5714
      %v5779 = vunpack.c.l.b16 %v5715
      %v5780 = vunpack.c.l.b16 %v5716
      %v5781 = vunpack.c.l.b16 %v5717
      %v5782 = vunpack.c.l.b16 %v5718
      %v5783 = vunpack.c.l.b16 %v5719
      %v5784 = vunpack.c.l.b16 %v5720
      %v5785 = vpack.c.b16 %v5770, %v5769
      %v5786 = vpack.c.b16 %v5772, %v5771
      %v5787 = vpack.c.b16 %v5774, %v5773
      %v5788 = vpack.c.b16 %v5776, %v5775
      %v5789 = vpack.c.b16 %v5778, %v5777
      %v5790 = vpack.c.b16 %v5780, %v5779
      %v5791 = vpack.c.b16 %v5782, %v5781
      %v5792 = vpack.c.b16 %v5784, %v5783
      %5801 = vmatpush.bf16.msra.mxu0 %v5792
      %5802 = vmatpush.bf16.msra.mxu0 %v5791
      %5803 = vmatpush.bf16.msra.mxu0 %v5790
      %5804 = vmatpush.bf16.msra.mxu0 %v5789
      %5805 = vmatpush.bf16.msra.mxu0 %v5788
      %5806 = vmatpush.bf16.msra.mxu0 %v5787
      %5807 = vmatpush.bf16.msra.mxu0 %v5786
      %5808 = vmatpush.bf16.msra.mxu0 %v5785
      %5809 = vmatmul.bf16.gmra.mxu0 %v5737
      %v5810 = vpop.f32.mrf.mxu0
      %v5811 = vadd.f32 0.0, %v5810
      %v5812 = vpop.f32.mrf.mxu0
      %v5813 = vadd.f32 0.0, %v5812
      %5814 = vmatmul.bf16.gmra.mxu0 %v5738
      %v5815 = vpop.f32.mrf.mxu0
      %v5816 = vadd.f32 0.0, %v5815
      %v5817 = vpop.f32.mrf.mxu0
      %v5818 = vadd.f32 0.0, %v5817
      %5819 = vmatmul.bf16.gmra.mxu0 %v5739
      %v5820 = vpop.f32.mrf.mxu0
      %v5821 = vadd.f32 0.0, %v5820
      %v5822 = vpop.f32.mrf.mxu0
      %v5823 = vadd.f32 0.0, %v5822
      %5824 = vmatmul.bf16.gmra.mxu0 %v5740
      %v5825 = vpop.f32.mrf.mxu0
      %v5826 = vadd.f32 0.0, %v5825
      %v5827 = vpop.f32.mrf.mxu0
      %v5828 = vadd.f32 0.0, %v5827
      %5829 = vmatmul.bf16.gmra.mxu0 %v5741
      %v5830 = vpop.f32.mrf.mxu0
      %v5831 = vadd.f32 0.0, %v5830
      %v5832 = vpop.f32.mrf.mxu0
      %v5833 = vadd.f32 0.0, %v5832
      %5834 = vmatmul.bf16.gmra.mxu0 %v5742
      %v5835 = vpop.f32.mrf.mxu0
      %v5836 = vadd.f32 0.0, %v5835
      %v5837 = vpop.f32.mrf.mxu0
      %v5838 = vadd.f32 0.0, %v5837
      %5839 = vmatmul.bf16.gmra.mxu0 %v5743
      %v5840 = vpop.f32.mrf.mxu0
      %v5841 = vadd.f32 0.0, %v5840
      %v5842 = vpop.f32.mrf.mxu0
      %v5843 = vadd.f32 0.0, %v5842
      %5844 = vmatmul.bf16.gmra.mxu0 %v5744
      %v5845 = vpop.f32.mrf.mxu0
      %v5846 = vadd.f32 0.0, %v5845
      %v5847 = vpop.f32.mrf.mxu0
      %v5848 = vadd.f32 0.0, %v5847
      %5849 = vdwg.mxu0
      %v5850 = vadd.f32 %v5472, %v5811
      %v5851 = vadd.f32 %v5473, %v5813
      %v5852 = vadd.f32 %v5474, %v5816
      %v5853 = vadd.f32 %v5475, %v5818
      %v5854 = vadd.f32 %v5476, %v5821
      %v5855 = vadd.f32 %v5477, %v5823
      %v5856 = vadd.f32 %v5478, %v5826
      %v5857 = vadd.f32 %v5479, %v5828
      %v5858 = vadd.f32 %v5480, %v5831
      %v5859 = vadd.f32 %v5481, %v5833
      %v5860 = vadd.f32 %v5482, %v5836
      %v5861 = vadd.f32 %v5483, %v5838
      %v5862 = vadd.f32 %v5484, %v5841
      %v5863 = vadd.f32 %v5485, %v5843
      %v5864 = vadd.f32 %v5486, %v5846
      %v5865 = vadd.f32 %v5487, %v5848
      %v5866 = vld [vmem:[%s5293] sm:$0xe]
      %v5867 = vld [vmem:[%s5293 + $0xc] sm:$0xe]
      %v5868 = vld [vmem:[%s5293 + $0x18] sm:$0xe]
      %v5869 = vld [vmem:[%s5293 + $0x24] sm:$0xe]
      %v5870 = vld [vmem:[%s5293 + $0x30] sm:$0xe]
      %v5871 = vld [vmem:[%s5293 + $0x3c] sm:$0xe]
      %v5872 = vld [vmem:[%s5293 + $0x48] sm:$0xe]
      %v5873 = vld [vmem:[%s5293 + $0x54] sm:$0xe]
      %v5898 = vrot.slane %v5866, 5
      %v5899 = vrot.slane %v5898, 4
      %v5900 = vrot.slane %v5489, 5
      %v5901 = vsel %vm998, %v5899, %v5900
      %v5902 = vrot.slane %v5900, 4
      %v5903 = vrot.slane %v5490, 5
      %v5904 = vsel %vm998, %v5902, %v5903
      %v5905 = vrot.slane %v5867, 5
      %v5906 = vrot.slane %v5905, 4
      %v5907 = vrot.slane %v5492, 5
      %v5908 = vsel %vm998, %v5906, %v5907
      %v5909 = vrot.slane %v5907, 4
      %v5910 = vrot.slane %v5493, 5
      %v5911 = vsel %vm998, %v5909, %v5910
      %v5912 = vrot.slane %v5868, 5
      %v5913 = vrot.slane %v5912, 4
      %v5914 = vrot.slane %v5495, 5
      %v5915 = vsel %vm998, %v5913, %v5914
      %v5916 = vrot.slane %v5914, 4
      %v5917 = vrot.slane %v5496, 5
      %v5918 = vsel %vm998, %v5916, %v5917
      %v5919 = vrot.slane %v5869, 5
      %v5920 = vrot.slane %v5919, 4
      %v5921 = vrot.slane %v5498, 5
      %v5922 = vsel %vm998, %v5920, %v5921
      %v5923 = vrot.slane %v5921, 4
      %v5924 = vrot.slane %v5499, 5
      %v5925 = vsel %vm998, %v5923, %v5924
      %v5926 = vrot.slane %v5870, 5
      %v5927 = vrot.slane %v5926, 4
      %v5928 = vrot.slane %v5501, 5
      %v5929 = vsel %vm998, %v5927, %v5928
      %v5930 = vrot.slane %v5928, 4
      %v5931 = vrot.slane %v5502, 5
      %v5932 = vsel %vm998, %v5930, %v5931
      %v5933 = vrot.slane %v5871, 5
      %v5934 = vrot.slane %v5933, 4
      %v5935 = vrot.slane %v5504, 5
      %v5936 = vsel %vm998, %v5934, %v5935
      %v5937 = vrot.slane %v5935, 4
      %v5938 = vrot.slane %v5505, 5
      %v5939 = vsel %vm998, %v5937, %v5938
      %v5940 = vrot.slane %v5872, 5
      %v5941 = vrot.slane %v5940, 4
      %v5942 = vrot.slane %v5507, 5
      %v5943 = vsel %vm998, %v5941, %v5942
      %v5944 = vrot.slane %v5942, 4
      %v5945 = vrot.slane %v5508, 5
      %v5946 = vsel %vm998, %v5944, %v5945
      %v5947 = vrot.slane %v5873, 5
      %v5948 = vrot.slane %v5947, 4
      %v5949 = vrot.slane %v5510, 5
      %v5950 = vsel %vm998, %v5948, %v5949
      %v5951 = vrot.slane %v5949, 4
      %v5952 = vrot.slane %v5511, 5
      %v5953 = vsel %vm998, %v5951, %v5952
      %s5954 = scalar_lea.vmem %s3, 512
      %v5955 = vld [vmem:[%s5954] sm:$0xf]
      %v5956 = vld [vmem:[%s5954 + $0x4] sm:$0xf]
      %v5957 = vld [vmem:[%s5954 + $0x8] sm:$0xf]
      %v5958 = vld [vmem:[%s5954 + $0xc] sm:$0xf]
      %v5959 = vld [vmem:[%s5954 + $0x10] sm:$0xf]
      %v5960 = vld [vmem:[%s5954 + $0x14] sm:$0xf]
      %v5961 = vld [vmem:[%s5954 + $0x18] sm:$0xf]
      %v5962 = vld [vmem:[%s5954 + $0x1c] sm:$0xf]
      %v5963 = vld [vmem:[%s5954 + $0x20] sm:$0xf]
      %v5964 = vld [vmem:[%s5954 + $0x24] sm:$0xf]
      %v5965 = vld [vmem:[%s5954 + $0x28] sm:$0xf]
      %v5966 = vld [vmem:[%s5954 + $0x2c] sm:$0xf]
      %v5967 = vld [vmem:[%s5954 + $0x30] sm:$0xf]
      %v5968 = vld [vmem:[%s5954 + $0x34] sm:$0xf]
      %v5969 = vld [vmem:[%s5954 + $0x38] sm:$0xf]
      %v5970 = vld [vmem:[%s5954 + $0x3c] sm:$0xf]
      %v5971 = vunpack.c.l.b16 %v5901
      %v5972 = vunpack.c.l.b16 %v5904
      %v5973 = vunpack.c.l.b16 %v5908
      %v5974 = vunpack.c.l.b16 %v5911
      %v5975 = vunpack.c.l.b16 %v5915
      %v5976 = vunpack.c.l.b16 %v5918
      %v5977 = vunpack.c.l.b16 %v5922
      %v5978 = vunpack.c.l.b16 %v5925
      %v5979 = vunpack.c.l.b16 %v5929
      %v5980 = vunpack.c.l.b16 %v5932
      %v5981 = vunpack.c.l.b16 %v5936
      %v5982 = vunpack.c.l.b16 %v5939
      %v5983 = vunpack.c.l.b16 %v5943
      %v5984 = vunpack.c.l.b16 %v5946
      %v5985 = vunpack.c.l.b16 %v5950
      %v5986 = vunpack.c.l.b16 %v5953
      %v5987 = vpack.c.b16 %v5972, %v5971
      %v5988 = vpack.c.b16 %v5974, %v5973
      %v5989 = vpack.c.b16 %v5976, %v5975
      %v5990 = vpack.c.b16 %v5978, %v5977
      %v5991 = vpack.c.b16 %v5980, %v5979
      %v5992 = vpack.c.b16 %v5982, %v5981
      %v5993 = vpack.c.b16 %v5984, %v5983
      %v5994 = vpack.c.b16 %v5986, %v5985
      %v6019 = vunpack.c.l.b16 %v5955
      %v6020 = vunpack.c.l.b16 %v5956
      %v6021 = vunpack.c.l.b16 %v5957
      %v6022 = vunpack.c.l.b16 %v5958
      %v6023 = vunpack.c.l.b16 %v5959
      %v6024 = vunpack.c.l.b16 %v5960
      %v6025 = vunpack.c.l.b16 %v5961
      %v6026 = vunpack.c.l.b16 %v5962
      %v6027 = vunpack.c.l.b16 %v5963
      %v6028 = vunpack.c.l.b16 %v5964
      %v6029 = vunpack.c.l.b16 %v5965
      %v6030 = vunpack.c.l.b16 %v5966
      %v6031 = vunpack.c.l.b16 %v5967
      %v6032 = vunpack.c.l.b16 %v5968
      %v6033 = vunpack.c.l.b16 %v5969
      %v6034 = vunpack.c.l.b16 %v5970
      %v6035 = vpack.c.b16 %v6020, %v6019
      %v6036 = vpack.c.b16 %v6022, %v6021
      %v6037 = vpack.c.b16 %v6024, %v6023
      %v6038 = vpack.c.b16 %v6026, %v6025
      %v6039 = vpack.c.b16 %v6028, %v6027
      %v6040 = vpack.c.b16 %v6030, %v6029
      %v6041 = vpack.c.b16 %v6032, %v6031
      %v6042 = vpack.c.b16 %v6034, %v6033
      %6051 = vmatpush.bf16.msra.mxu0 %v6042
      %6052 = vmatpush.bf16.msra.mxu0 %v6041
      %6053 = vmatpush.bf16.msra.mxu0 %v6040
      %6054 = vmatpush.bf16.msra.mxu0 %v6039
      %6055 = vmatpush.bf16.msra.mxu0 %v6038
      %6056 = vmatpush.bf16.msra.mxu0 %v6037
      %6057 = vmatpush.bf16.msra.mxu0 %v6036
      %6058 = vmatpush.bf16.msra.mxu0 %v6035
      %6059 = vmatmul.bf16.gmra.mxu0 %v5987
      %v6060 = vpop.f32.mrf.mxu0
      %v6061 = vadd.f32 0.0, %v6060
      %v6062 = vpop.f32.mrf.mxu0
      %v6063 = vadd.f32 0.0, %v6062
      %6064 = vmatmul.bf16.gmra.mxu0 %v5988
      %v6065 = vpop.f32.mrf.mxu0
      %v6066 = vadd.f32 0.0, %v6065
      %v6067 = vpop.f32.mrf.mxu0
      %v6068 = vadd.f32 0.0, %v6067
      %6069 = vmatmul.bf16.gmra.mxu0 %v5989
      %v6070 = vpop.f32.mrf.mxu0
      %v6071 = vadd.f32 0.0, %v6070
      %v6072 = vpop.f32.mrf.mxu0
      %v6073 = vadd.f32 0.0, %v6072
      %6074 = vmatmul.bf16.gmra.mxu0 %v5990
      %v6075 = vpop.f32.mrf.mxu0
      %v6076 = vadd.f32 0.0, %v6075
      %v6077 = vpop.f32.mrf.mxu0
      %v6078 = vadd.f32 0.0, %v6077
      %6079 = vmatmul.bf16.gmra.mxu0 %v5991
      %v6080 = vpop.f32.mrf.mxu0
      %v6081 = vadd.f32 0.0, %v6080
      %v6082 = vpop.f32.mrf.mxu0
      %v6083 = vadd.f32 0.0, %v6082
      %6084 = vmatmul.bf16.gmra.mxu0 %v5992
      %v6085 = vpop.f32.mrf.mxu0
      %v6086 = vadd.f32 0.0, %v6085
      %v6087 = vpop.f32.mrf.mxu0
      %v6088 = vadd.f32 0.0, %v6087
      %6089 = vmatmul.bf16.gmra.mxu0 %v5993
      %v6090 = vpop.f32.mrf.mxu0
      %v6091 = vadd.f32 0.0, %v6090
      %v6092 = vpop.f32.mrf.mxu0
      %v6093 = vadd.f32 0.0, %v6092
      %6094 = vmatmul.bf16.gmra.mxu0 %v5994
      %v6095 = vpop.f32.mrf.mxu0
      %v6096 = vadd.f32 0.0, %v6095
      %v6097 = vpop.f32.mrf.mxu0
      %v6098 = vadd.f32 0.0, %v6097
      %6099 = vdwg.mxu0
      %v6100 = vadd.f32 %v5850, %v6061
      %v6101 = vadd.f32 %v5851, %v6063
      %v6102 = vadd.f32 %v5852, %v6066
      %v6103 = vadd.f32 %v5853, %v6068
      %v6104 = vadd.f32 %v5854, %v6071
      %v6105 = vadd.f32 %v5855, %v6073
      %v6106 = vadd.f32 %v5856, %v6076
      %v6107 = vadd.f32 %v5857, %v6078
      %v6108 = vadd.f32 %v5858, %v6081
      %v6109 = vadd.f32 %v5859, %v6083
      %v6110 = vadd.f32 %v5860, %v6086
      %v6111 = vadd.f32 %v5861, %v6088
      %v6112 = vadd.f32 %v5862, %v6091
      %v6113 = vadd.f32 %v5863, %v6093
      %v6114 = vadd.f32 %v5864, %v6096
      %v6115 = vadd.f32 %v5865, %v6098
      %v6116 = vld [vmem:[%s290] sm:$0xff]
      %v6117 = vld [vmem:[%s290 + $0x8] sm:$0xff]
      %v6118 = vld [vmem:[%s290 + $0x10] sm:$0xff]
      %v6119 = vld [vmem:[%s290 + $0x18] sm:$0xff]
      %v6120 = vld [vmem:[%s290 + $0x20] sm:$0xff]
      %v6121 = vld [vmem:[%s290 + $0x28] sm:$0xff]
      %v6122 = vld [vmem:[%s290 + $0x30] sm:$0xff]
      %v6123 = vld [vmem:[%s290 + $0x38] sm:$0xff]
      %v6124 = vld [vmem:[%s290 + $0x40] sm:$0xff]
      %v6125 = vld [vmem:[%s290 + $0x48] sm:$0xff]
      %v6126 = vld [vmem:[%s290 + $0x50] sm:$0xff]
      %v6127 = vld [vmem:[%s290 + $0x58] sm:$0xff]
      %v6128 = vld [vmem:[%s290 + $0x60] sm:$0xff]
      %v6129 = vld [vmem:[%s290 + $0x68] sm:$0xff]
      %v6130 = vld [vmem:[%s290 + $0x70] sm:$0xff]
      %v6131 = vld [vmem:[%s290 + $0x78] sm:$0xff]
      %v6132 = vadd.f32 %v6100, %v6116
      %v6133 = vadd.f32 %v6101, %v6117
      %v6134 = vadd.f32 %v6102, %v6118
      %v6135 = vadd.f32 %v6103, %v6119
      %v6136 = vadd.f32 %v6104, %v6120
      %v6137 = vadd.f32 %v6105, %v6121
      %v6138 = vadd.f32 %v6106, %v6122
      %v6139 = vadd.f32 %v6107, %v6123
      %v6140 = vadd.f32 %v6108, %v6124
      %v6141 = vadd.f32 %v6109, %v6125
      %v6142 = vadd.f32 %v6110, %v6126
      %v6143 = vadd.f32 %v6111, %v6127
      %v6144 = vadd.f32 %v6112, %v6128
      %v6145 = vadd.f32 %v6113, %v6129
      %v6146 = vadd.f32 %v6114, %v6130
      %v6147 = vadd.f32 %v6115, %v6131
      %6148 = vst.msk [vmem:[%s301] sm:$0xff] %vm700, %v6132
      %6149 = vst.msk [vmem:[%s301 + $0x8] sm:$0xff] %vm700, %v6133
      %6150 = vst.msk [vmem:[%s301 + $0x10] sm:$0xff] %vm700, %v6134
      %6151 = vst.msk [vmem:[%s301 + $0x18] sm:$0xff] %vm700, %v6135
      %6152 = vst.msk [vmem:[%s301 + $0x20] sm:$0xff] %vm700, %v6136
      %6153 = vst.msk [vmem:[%s301 + $0x28] sm:$0xff] %vm700, %v6137
      %6154 = vst.msk [vmem:[%s301 + $0x30] sm:$0xff] %vm700, %v6138
      %6155 = vst.msk [vmem:[%s301 + $0x38] sm:$0xff] %vm700, %v6139
      %6156 = vst.msk [vmem:[%s301 + $0x40] sm:$0xff] %vm700, %v6140
      %6157 = vst.msk [vmem:[%s301 + $0x48] sm:$0xff] %vm700, %v6141
      %6158 = vst.msk [vmem:[%s301 + $0x50] sm:$0xff] %vm700, %v6142
      %6159 = vst.msk [vmem:[%s301 + $0x58] sm:$0xff] %vm700, %v6143
      %6160 = vst.msk [vmem:[%s301 + $0x60] sm:$0xff] %vm700, %v6144
      %6161 = vst.msk [vmem:[%s301 + $0x68] sm:$0xff] %vm700, %v6145
      %6162 = vst.msk [vmem:[%s301 + $0x70] sm:$0xff] %vm700, %v6146
      %6163 = vst.msk [vmem:[%s301 + $0x78] sm:$0xff] %vm700, %v6147
      %s6164 = smul.u32 8, %s21
      %p6165 = scmp.lt.s32.totalorder %s20, 1
      %s6166 = scalar_select %p6165, %s20, 1
      %p6167 = scmp.lt.s32.totalorder %s6164, 15
      %s6168 = scalar_select %p6167, %s6164, 15
      %s6169 = smul.addr %s6168, 2
      %s6170 = smul.addr %s6166, 32
      %s6171 = sadd.s32 %s6169, %s6170
      %s6172 = smul.addr %s6171, 8
      %s6173 = scalar_lea.vmem %s5, %s6172
      // Predicated region
      $region49: #{tpu_custom_call.1} parent=39 // pred_check
        %p6174 = pneg %p167
      $region50: #{tpu_custom_call.1} parent=39 // pred_check_branch
        %6176 = sbr.rel (%p6174) target = $region52
      $region51: #{tpu_custom_call.1} parent=39 // pred_region
        %s6177 = smul.u32 8, %s21
      $region52: #{tpu_custom_call.1} parent=39 // pred_fallthru
        _
    $region40: #{tpu_custom_call.1} parent=5 // pred_fallthru
      _
    %p6178 = scmp.le.s32.totalorder 2, %s11
    // Predicated region
    $region53: #{tpu_custom_call.1} parent=5 // pred_check
      %p6179 = pneg %p6178
    $region54: #{tpu_custom_call.1} parent=5 // pred_check_branch
      %6181 = sbr.rel (%p6179) target = $region56
    $region55: #{tpu_custom_call.1} parent=5 // pred_region
      %s6182 = ssub.s32 %s11, 2
      // Predicated region
      $region57: #{tpu_custom_call.1} parent=55 // pred_check
        %p6183 = pneg %p173
      $region58: #{tpu_custom_call.1} parent=55 // pred_check_branch
        %6185 = sbr.rel (%p6183) target = $region60
      $region59: #{tpu_custom_call.1} parent=55 // pred_region
        %s6186 = smul.u32 8, %s23
        %p6187 = scmp.lt.s32.totalorder %s22, 1
        %s6188 = scalar_select %p6187, %s22, 1
        %p6189 = scmp.lt.s32.totalorder %s6186, 15
        %s6190 = scalar_select %p6189, %s6186, 15
        %s6191 = smul.addr %s6190, 2
        %s6192 = smul.addr %s6188, 32
        %s6193 = sadd.s32 %s6191, %s6192
        %s6194 = smul.addr %s6193, 8
        %s6195 = scalar_lea.vmem %s5, %s6194
      $region60: #{tpu_custom_call.1} parent=55 // pred_fallthru
        _
    $region56: #{tpu_custom_call.1} parent=5 // pred_fallthru
      _
  $region6: #{tpu_custom_call.1} parent=0 // loop_footer
    %s15 = sadd.s32 1, %s11
  $region7: #{tpu_custom_call.1} parent=0 // loop_footer_branch
    %10 = sbr.rel target = $region3
  $region8: #{tpu_custom_call.1} parent=0 // loop_exit
    _

</llo_original>
